<compile_context>
chip_gen: v7x
topology: tpu7x:2x2x1
jax: 0.10.0
libtpu: 0.0.40
codegen_flags: <defaults>
</compile_context>

<pallas_src>
import functools

import jax
import jax.numpy as jnp
from jax import lax
from jax.experimental import pallas as pl
from jax.experimental.pallas import tpu as pltpu


# --------------------------------------------------------------------------
# 3x3 "same" convolution as 3 dy-chunked MXU matmuls (K = 3*C each).
# --------------------------------------------------------------------------
def _conv3x3_same(v, w_ref, n_out):
    """v: (H, W, C) values (MXU operand dtype).
    w_ref: (9*C, n_out) weights, row index = (ky*3 + kx)*C + c.
    Returns (H*W, n_out) float32."""
    H, W, C = v.shape
    zrow = jnp.zeros((1, W, C), v.dtype)
    zcol = jnp.zeros((H, 1, C), v.dtype)

    def shift_w(t, s):
        # shifted[:, x, :] = t[:, x + s, :]  (zero padded at the border)
        if s == 0:
            return t
        if s < 0:
            return jnp.concatenate([zcol, t[:, :W - 1, :]], axis=1)
        return jnp.concatenate([t[:, 1:, :], zcol], axis=1)

    acc = jnp.zeros((H * W, n_out), jnp.float32)
    for ky in range(3):
        if ky == 0:                       # needs input row y-1
            vh = jnp.concatenate([zrow, v[:H - 1]], axis=0)
        elif ky == 1:
            vh = v
        else:                             # needs input row y+1
            vh = jnp.concatenate([v[1:], zrow], axis=0)
        # (H, W, 3*C): lane order matches weight rows [kx=0 | kx=1 | kx=2].
        taps = jnp.concatenate([shift_w(vh, -1), vh, shift_w(vh, 1)], axis=-1)
        acc = acc + jnp.dot(taps.reshape(H * W, 3 * C),
                            w_ref[ky * 3 * C:(ky + 1) * 3 * C, :],
                            preferred_element_type=jnp.float32)
    return acc


# --------------------------------------------------------------------------
# Fused kernel: conv1(+shortcut columns)+ReLU -> conv2 -> add -> avgpool2x2.
# One (1, H, W, Cin) image tile per grid step; h never leaves VMEM.
# --------------------------------------------------------------------------
def _fused_block_kernel(x_ref, w1e_ref, b1e_ref, w2_ref, b2_ref, o_ref, *,
                        fold_output):
    _, H, W, Cin = x_ref.shape
    Cout = w2_ref.shape[1]
    Hp, Wp = H // 2, W // 2
    cdt = w1e_ref.dtype

    x = x_ref[0].astype(cdt)                                   # (H, W, Cin)

    # conv1 (3x3) with the shortcut 1x1 conv fused in as extra output columns
    # on the centre-tap rows: one dy-chunked matmul chain, 2*Cout columns.
    a1 = _conv3x3_same(x, w1e_ref, 2 * Cout) + b1e_ref[...]    # (H*W, 2*Cout) f32
    h = jnp.maximum(a1[:, :Cout], 0.0)                         # ReLU branch
    sc = a1[:, Cout:]                                          # pre-pool shortcut

    # conv2 (3x3) on the ReLU output.
    a2 = _conv3x3_same(h.reshape(H, W, Cout).astype(cdt), w2_ref, Cout)
    a2 = a2 + b2_ref[...]                                      # (H*W, Cout) f32

    # residual + shortcut at full resolution, then ONE 2x2 average pool
    # (avgpool commutes with the 1x1 conv, its bias, and the addition).
    t = (a2 + sc).reshape(Hp, 2, W, Cout)
    t = t[:, 0] + t[:, 1]                                      # (Hp, W, Cout)

    if fold_output:
        # Lane-dense store for small Cout: fold (Wp, Cout) into the last dim
        # using W-pair adds + a lane concat (no minor-dim shape cast).
        cols = [t[:, 2 * j, :] + t[:, 2 * j + 1, :] for j in range(Wp)]
        out = jnp.concatenate(cols, axis=-1) * 0.25            # (Hp, Wp*Cout)
    else:
        tt = t.reshape(Hp, Wp, 2, Cout)
        out = (tt[:, :, 0] + tt[:, :, 1]) * 0.25               # (Hp, Wp, Cout)
    o_ref[0] = out.astype(o_ref.dtype)


# --------------------------------------------------------------------------
# Wrappers
# --------------------------------------------------------------------------
def optimized_dis_block_nhwc(x, params, *, compute_dtype=jnp.bfloat16):
    """Fused OptimizedDisBlock forward; NHWC in / NHWC out."""
    N, H, W, Cin = x.shape
    Cout = params["w1"].shape[3]
    assert H % 2 == 0 and W % 2 == 0, "2x2 avg-pool requires even H, W"
    Hp, Wp = H // 2, W // 2

    # Fused conv1 weights: (9*Cin, 2*Cout); w_sc sits on the centre-tap rows
    # (ky=1, kx=1 -> rows [4*Cin, 5*Cin)) of the extra Cout columns.
    w1_flat = params["w1"].reshape(9 * Cin, Cout)
    sc_cols = jnp.zeros((9 * Cin, Cout), w1_flat.dtype)
    sc_cols = sc_cols.at[4 * Cin:5 * Cin, :].set(params["w_sc"])
    w1e = jnp.concatenate([w1_flat, sc_cols], axis=1).astype(compute_dtype)
    b1e = jnp.concatenate([params["b1"], params["b_sc"]],
                          axis=1).astype(jnp.float32)          # (1, 2*Cout)
    w2 = params["w2"].reshape(9 * Cout, Cout).astype(compute_dtype)
    b2 = params["b2"].astype(jnp.float32)                      # (1, Cout)

    fold = Cout < 128   # sub-vreg channel count -> fold W into lanes for the store
    if fold:
        out_shape = jax.ShapeDtypeStruct((N, Hp, Wp * Cout), x.dtype)
        out_spec = pl.BlockSpec((1, Hp, Wp * Cout), lambda n: (n, 0, 0))
    else:
        out_shape = jax.ShapeDtypeStruct((N, Hp, Wp, Cout), x.dtype)
        out_spec = pl.BlockSpec((1, Hp, Wp, Cout), lambda n: (n, 0, 0, 0))

    out = pl.pallas_call(
        functools.partial(_fused_block_kernel, fold_output=fold),
        out_shape=out_shape,
        grid=(N,),
        in_specs=[
            pl.BlockSpec((1, H, W, Cin), lambda n: (n, 0, 0, 0)),
            pl.BlockSpec((9 * Cin, 2 * Cout), lambda n: (0, 0)),
            pl.BlockSpec((1, 2 * Cout), lambda n: (0, 0)),
            pl.BlockSpec((9 * Cout, Cout), lambda n: (0, 0)),
            pl.BlockSpec((1, Cout), lambda n: (0, 0)),
        ],
        out_specs=out_spec,
        compiler_params=pltpu.CompilerParams(
            dimension_semantics=("parallel",),
            # Above the 32 MiB scoped default (lets large images keep
            # whole-image tiles on v6e), below v7x's 64 MiB physical VMEM.
            vmem_limit_bytes=48 * 1024 * 1024),
    )(x, w1e, b1e, w2, b2)

    if fold:
        out = out.reshape(N, Hp, Wp, Cout)
    return out


def optimized_dis_block(x_nchw, params, *, compute_dtype=jnp.bfloat16):
    """PyTorch-style NCHW in / NCHW out wrapper.

    TODO(synk): in a full discriminator keep activations NHWC end-to-end and
    call optimized_dis_block_nhwc directly; these boundary transposes are a
    per-block HBM round-trip the kernel cannot hide."""
    x = jnp.transpose(x_nchw, (0, 2, 3, 1))                    # NCHW -> NHWC
    out = optimized_dis_block_nhwc(x, params, compute_dtype=compute_dtype)
    return jnp.transpose(out, (0, 3, 1, 2))                    # NHWC -> NCHW


# --------------------------------------------------------------------------
# Pure-JAX reference (for correctness check)
# --------------------------------------------------------------------------
def _avgpool2(x_nhwc):
    n, h, w, c = x_nhwc.shape
    return x_nhwc.reshape(n, h // 2, 2, w // 2, 2, c).mean(axis=(2, 4))


def reference(x_nchw, params):
    x = jnp.transpose(x_nchw, (0, 2, 3, 1))
    dn1 = lax.conv_dimension_numbers(x.shape, params["w1"].shape,
                                     ("NHWC", "HWIO", "NHWC"))
    h = lax.conv_general_dilated(x, params["w1"], (1, 1), ((1, 1), (1, 1)),
                                 dimension_numbers=dn1)
    h = jnp.maximum(h + params["b1"].reshape(1, 1, 1, -1), 0.0)
    dn2 = lax.conv_dimension_numbers(h.shape, params["w2"].shape,
                                     ("NHWC", "HWIO", "NHWC"))
    h = lax.conv_general_dilated(h, params["w2"], (1, 1), ((1, 1), (1, 1)),
                                 dimension_numbers=dn2)
    h = _avgpool2(h + params["b2"].reshape(1, 1, 1, -1))
    sc = _avgpool2(x)
    sc = jnp.einsum("nhwc,co->nhwo", sc, params["w_sc"])
    sc = sc + params["b_sc"].reshape(1, 1, 1, -1)
    return jnp.transpose(h + sc, (0, 3, 1, 2))


# --------------------------------------------------------------------------
def init_params(key, in_channels, out_channels):
    k1, k2, k3, k4, k5, k6 = jax.random.split(key, 6)
    s1 = 1.0 / (3 * 3 * in_channels) ** 0.5
    s2 = 1.0 / (3 * 3 * out_channels) ** 0.5
    s3 = 1.0 / in_channels ** 0.5
    return {
        # HWIO layout for NHWC kernels (PyTorch stores OIHW).
        "w1": jax.random.normal(k1, (3, 3, in_channels, out_channels),
                                jnp.float32) * s1,
        "b1": jax.random.normal(k2, (1, out_channels), jnp.float32) * s1,
        "w2": jax.random.normal(k3, (3, 3, out_channels, out_channels),
                                jnp.float32) * s2,
        "b2": jax.random.normal(k4, (1, out_channels), jnp.float32) * s2,
        "w_sc": jax.random.normal(k5, (in_channels, out_channels),
                                  jnp.float32) * s3,
        "b_sc": jax.random.normal(k6, (1, out_channels), jnp.float32) * s3,
    }


if __name__ == "__main__":
    key = jax.random.PRNGKey(0)
    kx, kp = jax.random.split(key)

    N, C_in, C_out, H, W = 2, 4, 8, 16, 16
    x = jax.random.normal(kx, (N, C_in, H, W), jnp.float32)   # NCHW, like PyTorch
    params = init_params(kp, C_in, C_out)

    ref = jax.block_until_ready(reference(x, params))

    # f32 MXU operands: tight tolerance vs the XLA reference.
    out_f32 = jax.block_until_ready(
        jax.jit(lambda a, p: optimized_dis_block(
            a, p, compute_dtype=jnp.float32))(x, params))
    assert out_f32.shape == (N, C_out, H // 2, W // 2), out_f32.shape
    assert jnp.allclose(out_f32, ref, atol=1e-4, rtol=1e-4), \
        float(jnp.max(jnp.abs(out_f32 - ref)))

    # Default bf16 MXU operands (f32 accumulation): loose tolerance.
    out_bf16 = jax.block_until_ready(jax.jit(optimized_dis_block)(x, params))
    assert out_bf16.shape == out_f32.shape
    assert jnp.allclose(out_bf16, ref, atol=1e-1, rtol=1e-1), \
        float(jnp.max(jnp.abs(out_bf16 - ref)))

    print("KERNEL_OK")
</pallas_src>

<mosaic_0001>
module attributes {stable_mosaic.version = 11 : i64} {
  func.func @_fused_block_kernel(%arg0: i32, %arg1: memref<1x16x16x4xf32, #tpu.memory_space<vmem>>, %arg2: memref<36x16xf32, #tpu.memory_space<vmem>>, %arg3: memref<1x16xf32, #tpu.memory_space<vmem>>, %arg4: memref<72x8xf32, #tpu.memory_space<vmem>>, %arg5: memref<1x8xf32, #tpu.memory_space<vmem>>, %arg6: memref<1x8x64xf32, #tpu.memory_space<vmem>>) attributes {dimension_semantics = [#tpu.dimension_semantics<parallel>], iteration_bounds = array<i64: 2>, scalar_prefetch = 0 : i64, scratch_operands = 0 : i64, tpu.core_type = #tpu.core_type<tc>, window_params = [{transform_indices = @transform_0, window_bounds = array<i64: 1, 16, 16, 4>}, {pipeline_mode = #tpu.pipeline_mode<synchronous>, transform_indices = @transform_1, window_bounds = array<i64: 36, 16>}, {pipeline_mode = #tpu.pipeline_mode<synchronous>, transform_indices = @transform_2, window_bounds = array<i64: 1, 16>}, {pipeline_mode = #tpu.pipeline_mode<synchronous>, transform_indices = @transform_3, window_bounds = array<i64: 72, 8>}, {pipeline_mode = #tpu.pipeline_mode<synchronous>, transform_indices = @transform_4, window_bounds = array<i64: 1, 8>}, {transform_indices = @transform_5, window_bounds = array<i64: 1, 8, 64>}]} {
    %c0 = arith.constant 0 : index
    %c0_0 = arith.constant 0 : index
    %c0_1 = arith.constant 0 : index
    %c0_2 = arith.constant 0 : index
    %0 = vector.load %arg1[%c0, %c0_0, %c0_1, %c0_2] : memref<1x16x16x4xf32, #tpu.memory_space<vmem>>, vector<1x16x16x4xf32>
    %1 = vector.shape_cast %0 : vector<1x16x16x4xf32> to vector<16x16x4xf32>
    %cst = arith.constant 0.000000e+00 : f32
    %2 = vector.broadcast %cst : f32 to vector<1x16x4xf32>
    %cst_3 = arith.constant 0.000000e+00 : f32
    %3 = vector.broadcast %cst_3 : f32 to vector<16x1x4xf32>
    %cst_4 = arith.constant 0.000000e+00 : f32
    %4 = vector.broadcast %cst_4 : f32 to vector<256x16xf32>
    %5 = vector.extract_strided_slice %1 {offsets = [0, 0, 0], sizes = [15, 16, 4], strides = [1, 1, 1]} : vector<16x16x4xf32> to vector<15x16x4xf32>
    %6 = tpu.concatenate %2, %5 in 0 : vector<1x16x4xf32>, vector<15x16x4xf32> -> vector<16x16x4xf32>
    %7 = vector.extract_strided_slice %6 {offsets = [0, 0, 0], sizes = [16, 15, 4], strides = [1, 1, 1]} : vector<16x16x4xf32> to vector<16x15x4xf32>
    %8 = tpu.concatenate %3, %7 in 1 : vector<16x1x4xf32>, vector<16x15x4xf32> -> vector<16x16x4xf32>
    %9 = vector.extract_strided_slice %6 {offsets = [0, 1, 0], sizes = [16, 15, 4], strides = [1, 1, 1]} : vector<16x16x4xf32> to vector<16x15x4xf32>
    %10 = tpu.concatenate %9, %3 in 1 : vector<16x15x4xf32>, vector<16x1x4xf32> -> vector<16x16x4xf32>
    %11 = tpu.concatenate %8, %6, %10 in 2 : vector<16x16x4xf32>, vector<16x16x4xf32>, vector<16x16x4xf32> -> vector<16x16x12xf32>
    %12 = vector.shape_cast %11 : vector<16x16x12xf32> to vector<256x12xf32>
    %c0_5 = arith.constant 0 : index
    %c0_6 = arith.constant 0 : index
    %13 = vector.load %arg2[%c0_5, %c0_6] : memref<36x16xf32, #tpu.memory_space<vmem>>, vector<12x16xf32>
    %cst_7 = arith.constant dense<0.000000e+00> : vector<256x16xf32>
    %14 = tpu.matmul %12, %13, %cst_7 {dimension_numbers = #tpu.dot_dimension_numbers<[1], [0], [0], [1], [0, 0, 1, 1], [], []>} : vector<256x12xf32>, vector<12x16xf32>, vector<256x16xf32> -> vector<256x16xf32>
    %15 = arith.addf %4, %14 : vector<256x16xf32>
    %16 = vector.extract_strided_slice %1 {offsets = [0, 0, 0], sizes = [16, 15, 4], strides = [1, 1, 1]} : vector<16x16x4xf32> to vector<16x15x4xf32>
    %17 = tpu.concatenate %3, %16 in 1 : vector<16x1x4xf32>, vector<16x15x4xf32> -> vector<16x16x4xf32>
    %18 = vector.extract_strided_slice %1 {offsets = [0, 1, 0], sizes = [16, 15, 4], strides = [1, 1, 1]} : vector<16x16x4xf32> to vector<16x15x4xf32>
    %19 = tpu.concatenate %18, %3 in 1 : vector<16x15x4xf32>, vector<16x1x4xf32> -> vector<16x16x4xf32>
    %20 = tpu.concatenate %17, %1, %19 in 2 : vector<16x16x4xf32>, vector<16x16x4xf32>, vector<16x16x4xf32> -> vector<16x16x12xf32>
    %21 = vector.shape_cast %20 : vector<16x16x12xf32> to vector<256x12xf32>
    %c12 = arith.constant 12 : index
    %c0_8 = arith.constant 0 : index
    %22 = vector.load %arg2[%c12, %c0_8] : memref<36x16xf32, #tpu.memory_space<vmem>>, vector<12x16xf32>
    %cst_9 = arith.constant dense<0.000000e+00> : vector<256x16xf32>
    %23 = tpu.matmul %21, %22, %cst_9 {dimension_numbers = #tpu.dot_dimension_numbers<[1], [0], [0], [1], [0, 0, 1, 1], [], []>} : vector<256x12xf32>, vector<12x16xf32>, vector<256x16xf32> -> vector<256x16xf32>
    %24 = arith.addf %15, %23 : vector<256x16xf32>
    %25 = vector.extract_strided_slice %1 {offsets = [1, 0, 0], sizes = [15, 16, 4], strides = [1, 1, 1]} : vector<16x16x4xf32> to vector<15x16x4xf32>
    %26 = tpu.concatenate %25, %2 in 0 : vector<15x16x4xf32>, vector<1x16x4xf32> -> vector<16x16x4xf32>
    %27 = vector.extract_strided_slice %26 {offsets = [0, 0, 0], sizes = [16, 15, 4], strides = [1, 1, 1]} : vector<16x16x4xf32> to vector<16x15x4xf32>
    %28 = tpu.concatenate %3, %27 in 1 : vector<16x1x4xf32>, vector<16x15x4xf32> -> vector<16x16x4xf32>
    %29 = vector.extract_strided_slice %26 {offsets = [0, 1, 0], sizes = [16, 15, 4], strides = [1, 1, 1]} : vector<16x16x4xf32> to vector<16x15x4xf32>
    %30 = tpu.concatenate %29, %3 in 1 : vector<16x15x4xf32>, vector<16x1x4xf32> -> vector<16x16x4xf32>
    %31 = tpu.concatenate %28, %26, %30 in 2 : vector<16x16x4xf32>, vector<16x16x4xf32>, vector<16x16x4xf32> -> vector<16x16x12xf32>
    %32 = vector.shape_cast %31 : vector<16x16x12xf32> to vector<256x12xf32>
    %c24 = arith.constant 24 : index
    %c0_10 = arith.constant 0 : index
    %33 = vector.load %arg2[%c24, %c0_10] : memref<36x16xf32, #tpu.memory_space<vmem>>, vector<12x16xf32>
    %cst_11 = arith.constant dense<0.000000e+00> : vector<256x16xf32>
    %34 = tpu.matmul %32, %33, %cst_11 {dimension_numbers = #tpu.dot_dimension_numbers<[1], [0], [0], [1], [0, 0, 1, 1], [], []>} : vector<256x12xf32>, vector<12x16xf32>, vector<256x16xf32> -> vector<256x16xf32>
    %35 = arith.addf %24, %34 : vector<256x16xf32>
    %c0_12 = arith.constant 0 : index
    %c0_13 = arith.constant 0 : index
    %36 = vector.load %arg3[%c0_12, %c0_13] : memref<1x16xf32, #tpu.memory_space<vmem>>, vector<1x16xf32>
    %37 = vector.broadcast %36 : vector<1x16xf32> to vector<256x16xf32>
    %38 = arith.addf %35, %37 : vector<256x16xf32>
    %39 = vector.extract_strided_slice %38 {offsets = [0, 0], sizes = [256, 8], strides = [1, 1]} : vector<256x16xf32> to vector<256x8xf32>
    %cst_14 = arith.constant 0.000000e+00 : f32
    %40 = vector.broadcast %cst_14 : f32 to vector<256x8xf32>
    %41 = arith.maximumf %39, %40 : vector<256x8xf32>
    %42 = vector.extract_strided_slice %38 {offsets = [0, 8], sizes = [256, 8], strides = [1, 1]} : vector<256x16xf32> to vector<256x8xf32>
    %43 = vector.shape_cast %41 : vector<256x8xf32> to vector<16x16x8xf32>
    %cst_15 = arith.constant 0.000000e+00 : f32
    %44 = vector.broadcast %cst_15 : f32 to vector<1x16x8xf32>
    %cst_16 = arith.constant 0.000000e+00 : f32
    %45 = vector.broadcast %cst_16 : f32 to vector<16x1x8xf32>
    %cst_17 = arith.constant 0.000000e+00 : f32
    %46 = vector.broadcast %cst_17 : f32 to vector<256x8xf32>
    %47 = vector.extract_strided_slice %43 {offsets = [0, 0, 0], sizes = [15, 16, 8], strides = [1, 1, 1]} : vector<16x16x8xf32> to vector<15x16x8xf32>
    %48 = tpu.concatenate %44, %47 in 0 : vector<1x16x8xf32>, vector<15x16x8xf32> -> vector<16x16x8xf32>
    %49 = vector.extract_strided_slice %48 {offsets = [0, 0, 0], sizes = [16, 15, 8], strides = [1, 1, 1]} : vector<16x16x8xf32> to vector<16x15x8xf32>
    %50 = tpu.concatenate %45, %49 in 1 : vector<16x1x8xf32>, vector<16x15x8xf32> -> vector<16x16x8xf32>
    %51 = vector.extract_strided_slice %48 {offsets = [0, 1, 0], sizes = [16, 15, 8], strides = [1, 1, 1]} : vector<16x16x8xf32> to vector<16x15x8xf32>
    %52 = tpu.concatenate %51, %45 in 1 : vector<16x15x8xf32>, vector<16x1x8xf32> -> vector<16x16x8xf32>
    %53 = tpu.concatenate %50, %48, %52 in 2 : vector<16x16x8xf32>, vector<16x16x8xf32>, vector<16x16x8xf32> -> vector<16x16x24xf32>
    %54 = vector.shape_cast %53 : vector<16x16x24xf32> to vector<256x24xf32>
    %c0_18 = arith.constant 0 : index
    %c0_19 = arith.constant 0 : index
    %55 = vector.load %arg4[%c0_18, %c0_19] : memref<72x8xf32, #tpu.memory_space<vmem>>, vector<24x8xf32>
    %cst_20 = arith.constant dense<0.000000e+00> : vector<256x8xf32>
    %56 = tpu.matmul %54, %55, %cst_20 {dimension_numbers = #tpu.dot_dimension_numbers<[1], [0], [0], [1], [0, 0, 1, 1], [], []>} : vector<256x24xf32>, vector<24x8xf32>, vector<256x8xf32> -> vector<256x8xf32>
    %57 = arith.addf %46, %56 : vector<256x8xf32>
    %58 = vector.extract_strided_slice %43 {offsets = [0, 0, 0], sizes = [16, 15, 8], strides = [1, 1, 1]} : vector<16x16x8xf32> to vector<16x15x8xf32>
    %59 = tpu.concatenate %45, %58 in 1 : vector<16x1x8xf32>, vector<16x15x8xf32> -> vector<16x16x8xf32>
    %60 = vector.extract_strided_slice %43 {offsets = [0, 1, 0], sizes = [16, 15, 8], strides = [1, 1, 1]} : vector<16x16x8xf32> to vector<16x15x8xf32>
    %61 = tpu.concatenate %60, %45 in 1 : vector<16x15x8xf32>, vector<16x1x8xf32> -> vector<16x16x8xf32>
    %62 = tpu.concatenate %59, %43, %61 in 2 : vector<16x16x8xf32>, vector<16x16x8xf32>, vector<16x16x8xf32> -> vector<16x16x24xf32>
    %63 = vector.shape_cast %62 : vector<16x16x24xf32> to vector<256x24xf32>
    %c24_21 = arith.constant 24 : index
    %c0_22 = arith.constant 0 : index
    %64 = vector.load %arg4[%c24_21, %c0_22] : memref<72x8xf32, #tpu.memory_space<vmem>>, vector<24x8xf32>
    %cst_23 = arith.constant dense<0.000000e+00> : vector<256x8xf32>
    %65 = tpu.matmul %63, %64, %cst_23 {dimension_numbers = #tpu.dot_dimension_numbers<[1], [0], [0], [1], [0, 0, 1, 1], [], []>} : vector<256x24xf32>, vector<24x8xf32>, vector<256x8xf32> -> vector<256x8xf32>
    %66 = arith.addf %57, %65 : vector<256x8xf32>
    %67 = vector.extract_strided_slice %43 {offsets = [1, 0, 0], sizes = [15, 16, 8], strides = [1, 1, 1]} : vector<16x16x8xf32> to vector<15x16x8xf32>
    %68 = tpu.concatenate %67, %44 in 0 : vector<15x16x8xf32>, vector<1x16x8xf32> -> vector<16x16x8xf32>
    %69 = vector.extract_strided_slice %68 {offsets = [0, 0, 0], sizes = [16, 15, 8], strides = [1, 1, 1]} : vector<16x16x8xf32> to vector<16x15x8xf32>
    %70 = tpu.concatenate %45, %69 in 1 : vector<16x1x8xf32>, vector<16x15x8xf32> -> vector<16x16x8xf32>
    %71 = vector.extract_strided_slice %68 {offsets = [0, 1, 0], sizes = [16, 15, 8], strides = [1, 1, 1]} : vector<16x16x8xf32> to vector<16x15x8xf32>
    %72 = tpu.concatenate %71, %45 in 1 : vector<16x15x8xf32>, vector<16x1x8xf32> -> vector<16x16x8xf32>
    %73 = tpu.concatenate %70, %68, %72 in 2 : vector<16x16x8xf32>, vector<16x16x8xf32>, vector<16x16x8xf32> -> vector<16x16x24xf32>
    %74 = vector.shape_cast %73 : vector<16x16x24xf32> to vector<256x24xf32>
    %c48 = arith.constant 48 : index
    %c0_24 = arith.constant 0 : index
    %75 = vector.load %arg4[%c48, %c0_24] : memref<72x8xf32, #tpu.memory_space<vmem>>, vector<24x8xf32>
    %cst_25 = arith.constant dense<0.000000e+00> : vector<256x8xf32>
    %76 = tpu.matmul %74, %75, %cst_25 {dimension_numbers = #tpu.dot_dimension_numbers<[1], [0], [0], [1], [0, 0, 1, 1], [], []>} : vector<256x24xf32>, vector<24x8xf32>, vector<256x8xf32> -> vector<256x8xf32>
    %77 = arith.addf %66, %76 : vector<256x8xf32>
    %c0_26 = arith.constant 0 : index
    %c0_27 = arith.constant 0 : index
    %78 = vector.load %arg5[%c0_26, %c0_27] : memref<1x8xf32, #tpu.memory_space<vmem>>, vector<1x8xf32>
    %79 = vector.broadcast %78 : vector<1x8xf32> to vector<256x8xf32>
    %80 = arith.addf %77, %79 : vector<256x8xf32>
    %81 = arith.addf %80, %42 : vector<256x8xf32>
    %82 = vector.shape_cast %81 : vector<256x8xf32> to vector<8x2x16x8xf32>
    %83 = vector.extract_strided_slice %82 {offsets = [0, 0, 0, 0], sizes = [8, 1, 16, 8], strides = [1, 1, 1, 1]} : vector<8x2x16x8xf32> to vector<8x1x16x8xf32>
    %84 = vector.shape_cast %83 : vector<8x1x16x8xf32> to vector<8x16x8xf32>
    %85 = vector.extract_strided_slice %82 {offsets = [0, 1, 0, 0], sizes = [8, 1, 16, 8], strides = [1, 1, 1, 1]} : vector<8x2x16x8xf32> to vector<8x1x16x8xf32>
    %86 = vector.shape_cast %85 : vector<8x1x16x8xf32> to vector<8x16x8xf32>
    %87 = arith.addf %84, %86 : vector<8x16x8xf32>
    %88 = vector.extract_strided_slice %87 {offsets = [0, 0, 0], sizes = [8, 1, 8], strides = [1, 1, 1]} : vector<8x16x8xf32> to vector<8x1x8xf32>
    %89 = vector.shape_cast %88 : vector<8x1x8xf32> to vector<8x8xf32>
    %90 = vector.extract_strided_slice %87 {offsets = [0, 1, 0], sizes = [8, 1, 8], strides = [1, 1, 1]} : vector<8x16x8xf32> to vector<8x1x8xf32>
    %91 = vector.shape_cast %90 : vector<8x1x8xf32> to vector<8x8xf32>
    %92 = arith.addf %89, %91 : vector<8x8xf32>
    %93 = vector.extract_strided_slice %87 {offsets = [0, 2, 0], sizes = [8, 1, 8], strides = [1, 1, 1]} : vector<8x16x8xf32> to vector<8x1x8xf32>
    %94 = vector.shape_cast %93 : vector<8x1x8xf32> to vector<8x8xf32>
    %95 = vector.extract_strided_slice %87 {offsets = [0, 3, 0], sizes = [8, 1, 8], strides = [1, 1, 1]} : vector<8x16x8xf32> to vector<8x1x8xf32>
    %96 = vector.shape_cast %95 : vector<8x1x8xf32> to vector<8x8xf32>
    %97 = arith.addf %94, %96 : vector<8x8xf32>
    %98 = vector.extract_strided_slice %87 {offsets = [0, 4, 0], sizes = [8, 1, 8], strides = [1, 1, 1]} : vector<8x16x8xf32> to vector<8x1x8xf32>
    %99 = vector.shape_cast %98 : vector<8x1x8xf32> to vector<8x8xf32>
    %100 = vector.extract_strided_slice %87 {offsets = [0, 5, 0], sizes = [8, 1, 8], strides = [1, 1, 1]} : vector<8x16x8xf32> to vector<8x1x8xf32>
    %101 = vector.shape_cast %100 : vector<8x1x8xf32> to vector<8x8xf32>
    %102 = arith.addf %99, %101 : vector<8x8xf32>
    %103 = vector.extract_strided_slice %87 {offsets = [0, 6, 0], sizes = [8, 1, 8], strides = [1, 1, 1]} : vector<8x16x8xf32> to vector<8x1x8xf32>
    %104 = vector.shape_cast %103 : vector<8x1x8xf32> to vector<8x8xf32>
    %105 = vector.extract_strided_slice %87 {offsets = [0, 7, 0], sizes = [8, 1, 8], strides = [1, 1, 1]} : vector<8x16x8xf32> to vector<8x1x8xf32>
    %106 = vector.shape_cast %105 : vector<8x1x8xf32> to vector<8x8xf32>
    %107 = arith.addf %104, %106 : vector<8x8xf32>
    %108 = vector.extract_strided_slice %87 {offsets = [0, 8, 0], sizes = [8, 1, 8], strides = [1, 1, 1]} : vector<8x16x8xf32> to vector<8x1x8xf32>
    %109 = vector.shape_cast %108 : vector<8x1x8xf32> to vector<8x8xf32>
    %110 = vector.extract_strided_slice %87 {offsets = [0, 9, 0], sizes = [8, 1, 8], strides = [1, 1, 1]} : vector<8x16x8xf32> to vector<8x1x8xf32>
    %111 = vector.shape_cast %110 : vector<8x1x8xf32> to vector<8x8xf32>
    %112 = arith.addf %109, %111 : vector<8x8xf32>
    %113 = vector.extract_strided_slice %87 {offsets = [0, 10, 0], sizes = [8, 1, 8], strides = [1, 1, 1]} : vector<8x16x8xf32> to vector<8x1x8xf32>
    %114 = vector.shape_cast %113 : vector<8x1x8xf32> to vector<8x8xf32>
    %115 = vector.extract_strided_slice %87 {offsets = [0, 11, 0], sizes = [8, 1, 8], strides = [1, 1, 1]} : vector<8x16x8xf32> to vector<8x1x8xf32>
    %116 = vector.shape_cast %115 : vector<8x1x8xf32> to vector<8x8xf32>
    %117 = arith.addf %114, %116 : vector<8x8xf32>
    %118 = vector.extract_strided_slice %87 {offsets = [0, 12, 0], sizes = [8, 1, 8], strides = [1, 1, 1]} : vector<8x16x8xf32> to vector<8x1x8xf32>
    %119 = vector.shape_cast %118 : vector<8x1x8xf32> to vector<8x8xf32>
    %120 = vector.extract_strided_slice %87 {offsets = [0, 13, 0], sizes = [8, 1, 8], strides = [1, 1, 1]} : vector<8x16x8xf32> to vector<8x1x8xf32>
    %121 = vector.shape_cast %120 : vector<8x1x8xf32> to vector<8x8xf32>
    %122 = arith.addf %119, %121 : vector<8x8xf32>
    %123 = vector.extract_strided_slice %87 {offsets = [0, 14, 0], sizes = [8, 1, 8], strides = [1, 1, 1]} : vector<8x16x8xf32> to vector<8x1x8xf32>
    %124 = vector.shape_cast %123 : vector<8x1x8xf32> to vector<8x8xf32>
    %125 = vector.extract_strided_slice %87 {offsets = [0, 15, 0], sizes = [8, 1, 8], strides = [1, 1, 1]} : vector<8x16x8xf32> to vector<8x1x8xf32>
    %126 = vector.shape_cast %125 : vector<8x1x8xf32> to vector<8x8xf32>
    %127 = arith.addf %124, %126 : vector<8x8xf32>
    %128 = tpu.concatenate %92, %97, %102, %107, %112, %117, %122, %127 in 1 : vector<8x8xf32>, vector<8x8xf32>, vector<8x8xf32>, vector<8x8xf32>, vector<8x8xf32>, vector<8x8xf32>, vector<8x8xf32>, vector<8x8xf32> -> vector<8x64xf32>
    %cst_28 = arith.constant 2.500000e-01 : f32
    %129 = vector.broadcast %cst_28 : f32 to vector<8x64xf32>
    %130 = arith.mulf %128, %129 : vector<8x64xf32>
    %c0_29 = arith.constant 0 : index
    %c0_30 = arith.constant 0 : index
    %c0_31 = arith.constant 0 : index
    %131 = vector.load %arg6[%c0_29, %c0_30, %c0_31] : memref<1x8x64xf32, #tpu.memory_space<vmem>>, vector<1x8x64xf32>
    %132 = vector.shape_cast %131 : vector<1x8x64xf32> to vector<8x64xf32>
    %133 = vector.shape_cast %130 : vector<8x64xf32> to vector<1x8x64xf32>
    tpu.vector_store %arg6[%c0_29, %c0_30, %c0_31], %133 {strides = array<i32>} : memref<1x8x64xf32, #tpu.memory_space<vmem>>, vector<1x8x64xf32>,
    return
  }
  func.func @transform_0(%arg0: i32) -> (i32, i32, i32, i32) {
    %c0_i32 = arith.constant 0 : i32
    %c0_i32_0 = arith.constant 0 : i32
    %c0_i32_1 = arith.constant 0 : i32
    %c0_i32_2 = arith.constant 0 : i32
    return %arg0, %c0_i32, %c0_i32_0, %c0_i32_1 : i32, i32, i32, i32
  }
  func.func @transform_1(%arg0: i32) -> (i32, i32) {
    %c0_i32 = arith.constant 0 : i32
    %c0_i32_0 = arith.constant 0 : i32
    %c0_i32_1 = arith.constant 0 : i32
    return %c0_i32, %c0_i32_0 : i32, i32
  }
  func.func @transform_2(%arg0: i32) -> (i32, i32) {
    %c0_i32 = arith.constant 0 : i32
    %c0_i32_0 = arith.constant 0 : i32
    %c0_i32_1 = arith.constant 0 : i32
    return %c0_i32, %c0_i32_0 : i32, i32
  }
  func.func @transform_3(%arg0: i32) -> (i32, i32) {
    %c0_i32 = arith.constant 0 : i32
    %c0_i32_0 = arith.constant 0 : i32
    %c0_i32_1 = arith.constant 0 : i32
    return %c0_i32, %c0_i32_0 : i32, i32
  }
  func.func @transform_4(%arg0: i32) -> (i32, i32) {
    %c0_i32 = arith.constant 0 : i32
    %c0_i32_0 = arith.constant 0 : i32
    %c0_i32_1 = arith.constant 0 : i32
    return %c0_i32, %c0_i32_0 : i32, i32
  }
  func.func @transform_5(%arg0: i32) -> (i32, i32, i32) {
    %c0_i32 = arith.constant 0 : i32
    %c0_i32_0 = arith.constant 0 : i32
    %c0_i32_1 = arith.constant 0 : i32
    return %arg0, %c0_i32, %c0_i32_0 : i32, i32, i32
  }
}

</mosaic_0001>

<llo_original>
// kernel: _lambda_.1
$region0: #{_lambda_.1}
  #allocation0 [shape = 'u32[]', space=smem, size = 0x4, offset = 0x4, fixed_abs, tag = 'smem constant byte address 0x4 - core index']
  #allocation1 [shape = 'u32[144,128]{1,0:T(1,128)}', space=vmem, size = 0x12000, scoped, tag = 'internal scratch']
  %s0 = inlined_call_operand.vmem [shape: f32[2,16,16,4], index: 0, kind: input, shape index: {}]
  %s1 = inlined_call_operand.vmem [shape: f32[36,16], index: 1, kind: input, shape index: {}]
  %s2 = inlined_call_operand.vmem [shape: f32[1,16], index: 2, kind: input, shape index: {}]
  %s3 = inlined_call_operand.vmem [shape: f32[72,8], index: 3, kind: input, shape index: {}]
  %s4 = inlined_call_operand.vmem [shape: f32[1,8], index: 4, kind: input, shape index: {}]
  %s5 = inlined_call_operand.vmem [shape: f32[2,8,64], index: 5, kind: output, shape index: {}]
  %s6 = sld [smem:[#allocation0]]
  $region53: #{_lambda_.1} parent=0
    _
  %s8 = ssub.s32 1, %s6
  %s9 = scalar_select 0, %s8, %s6
  loop: start=0, step=1, limit=4
  $region2: #{_lambda_.1} parent=0 // loop_pre_header
    _
  $region3: #{_lambda_.1} parent=0 // loop_header
    %s11 = sphi 0, %s15
    %p12 = scmp.ge.s32.totalorder %s11, 4
    %s21 = sphi 0, %s23
    %s24 = sphi 0, %s21
    %s25 = sphi 0, %s24
    %s41 = sphi 0, %s25
    %s45 = sphi 0, %s45
    %s47 = sphi 0, %s45
    %s48 = sphi 0, %s47
    %s62 = sphi 0, %s48
    %s66 = sphi 0, %s66
    %s68 = sphi 0, %s66
    %s69 = sphi 0, %s68
    %s83 = sphi 0, %s69
    %s87 = sphi 0, %s87
    %s89 = sphi 0, %s87
    %s90 = sphi 0, %s89
    %s104 = sphi 0, %s90
    %s108 = sphi 0, %s108
    %s110 = sphi 0, %s108
    %s111 = sphi 0, %s110
    %s125 = sphi 0, %s111
    %s131 = sphi 0, %s133
    %s134 = sphi 0, %s131
    %s135 = sphi 0, %s134
    %s151 = sphi 0, %s135
  $region4: #{_lambda_.1} parent=0 // loop_header_branch
    %14 = sbr.rel (%p12) target = $region8
  $region5: #{_lambda_.1} parent=0 // loop_body
    %s16 = ssub.s32 %s11, 1
    %s17 = ssub.s32 %s11, 2
    %s18 = sadd.s32 %s11, 1
    %s19 = ssub.s32 %s11, %s18
    %p20 = scmp.eq.s32.totalorder %s19, 0
    %s22 = sadd.s32 %s21, 1
    %s23 = scalar_select %p20, %s21, %s22
    %p26 = pneg %p20
    %p27 = scmp.eq.s32.totalorder %s11, 1
    %p28 = por %p26, %p27
    %p29 = scmp.ne.s32.totalorder %s21, %s24
    %p30 = scmp.eq.s32.totalorder %s11, 0
    %p31 = por %p29, %p30
    %p32 = scmp.ne.s32.totalorder %s21, %s24
    %p33 = scmp.eq.s32.totalorder %s16, 1
    %p34 = por %p32, %p33
    %p35 = scmp.ne.s32.totalorder %s24, %s25
    %p36 = scmp.eq.s32.totalorder %s16, 0
    %p37 = por %p35, %p36
    %p38 = scmp.ne.s32.totalorder %s24, %s25
    %p39 = scmp.eq.s32.totalorder %s17, 1
    %p40 = por %p38, %p39
    %p42 = scmp.ne.s32.totalorder %s25, %s41
    %p43 = scmp.eq.s32.totalorder %s17, 0
    %p44 = por %p42, %p43
    %s46 = sadd.s32 %s45, 1
    %p49 = scmp.eq.s32.totalorder %s11, 1
    %p50 = scmp.ne.s32.totalorder %s45, %s47
    %p51 = scmp.eq.s32.totalorder %s11, 0
    %p52 = por %p50, %p51
    %p53 = scmp.ne.s32.totalorder %s45, %s47
    %p54 = scmp.eq.s32.totalorder %s16, 1
    %p55 = por %p53, %p54
    %p56 = scmp.ne.s32.totalorder %s47, %s48
    %p57 = scmp.eq.s32.totalorder %s16, 0
    %p58 = por %p56, %p57
    %p59 = scmp.ne.s32.totalorder %s47, %s48
    %p60 = scmp.eq.s32.totalorder %s17, 1
    %p61 = por %p59, %p60
    %p63 = scmp.ne.s32.totalorder %s48, %s62
    %p64 = scmp.eq.s32.totalorder %s17, 0
    %p65 = por %p63, %p64
    %s67 = sadd.s32 %s66, 1
    %p70 = scmp.eq.s32.totalorder %s11, 1
    %p71 = scmp.ne.s32.totalorder %s66, %s68
    %p72 = scmp.eq.s32.totalorder %s11, 0
    %p73 = por %p71, %p72
    %p74 = scmp.ne.s32.totalorder %s66, %s68
    %p75 = scmp.eq.s32.totalorder %s16, 1
    %p76 = por %p74, %p75
    %p77 = scmp.ne.s32.totalorder %s68, %s69
    %p78 = scmp.eq.s32.totalorder %s16, 0
    %p79 = por %p77, %p78
    %p80 = scmp.ne.s32.totalorder %s68, %s69
    %p81 = scmp.eq.s32.totalorder %s17, 1
    %p82 = por %p80, %p81
    %p84 = scmp.ne.s32.totalorder %s69, %s83
    %p85 = scmp.eq.s32.totalorder %s17, 0
    %p86 = por %p84, %p85
    %s88 = sadd.s32 %s87, 1
    %p91 = scmp.eq.s32.totalorder %s11, 1
    %p92 = scmp.ne.s32.totalorder %s87, %s89
    %p93 = scmp.eq.s32.totalorder %s11, 0
    %p94 = por %p92, %p93
    %p95 = scmp.ne.s32.totalorder %s87, %s89
    %p96 = scmp.eq.s32.totalorder %s16, 1
    %p97 = por %p95, %p96
    %p98 = scmp.ne.s32.totalorder %s89, %s90
    %p99 = scmp.eq.s32.totalorder %s16, 0
    %p100 = por %p98, %p99
    %p101 = scmp.ne.s32.totalorder %s89, %s90
    %p102 = scmp.eq.s32.totalorder %s17, 1
    %p103 = por %p101, %p102
    %p105 = scmp.ne.s32.totalorder %s90, %s104
    %p106 = scmp.eq.s32.totalorder %s17, 0
    %p107 = por %p105, %p106
    %s109 = sadd.s32 %s108, 1
    %p112 = scmp.eq.s32.totalorder %s11, 1
    %p113 = scmp.ne.s32.totalorder %s108, %s110
    %p114 = scmp.eq.s32.totalorder %s11, 0
    %p115 = por %p113, %p114
    %p116 = scmp.ne.s32.totalorder %s108, %s110
    %p117 = scmp.eq.s32.totalorder %s16, 1
    %p118 = por %p116, %p117
    %p119 = scmp.ne.s32.totalorder %s110, %s111
    %p120 = scmp.eq.s32.totalorder %s16, 0
    %p121 = por %p119, %p120
    %p122 = scmp.ne.s32.totalorder %s110, %s111
    %p123 = scmp.eq.s32.totalorder %s17, 1
    %p124 = por %p122, %p123
    %p126 = scmp.ne.s32.totalorder %s111, %s125
    %p127 = scmp.eq.s32.totalorder %s17, 0
    %p128 = por %p126, %p127
    %s129 = ssub.s32 %s11, %s18
    %p130 = scmp.eq.s32.totalorder %s129, 0
    %s132 = sadd.s32 %s131, 1
    %s133 = scalar_select %p130, %s131, %s132
    %p136 = pneg %p130
    %p137 = scmp.eq.s32.totalorder %s11, 1
    %p138 = por %p136, %p137
    %p139 = scmp.ne.s32.totalorder %s131, %s134
    %p140 = scmp.eq.s32.totalorder %s11, 0
    %p141 = por %p139, %p140
    %p142 = scmp.ne.s32.totalorder %s131, %s134
    %p143 = scmp.eq.s32.totalorder %s16, 1
    %p144 = por %p142, %p143
    %p145 = scmp.ne.s32.totalorder %s134, %s135
    %p146 = scmp.eq.s32.totalorder %s16, 0
    %p147 = por %p145, %p146
    %p148 = scmp.ne.s32.totalorder %s134, %s135
    %p149 = scmp.eq.s32.totalorder %s17, 1
    %p150 = por %p148, %p149
    %p152 = scmp.ne.s32.totalorder %s135, %s151
    %p153 = scmp.eq.s32.totalorder %s17, 0
    %p154 = por %p152, %p153
    %p155 = scmp.le.s32.totalorder 1, %s11
    %p156 = scmp.lt.s32.totalorder %s11, 3
    %p157 = pnand %p155, %p156
    %p158 = pneg %p157
    // Predicated region
    $region9: #{_lambda_.1} parent=5 // pred_check
      _
    $region10: #{_lambda_.1} parent=5 // pred_check_branch
      %160 = sbr.rel (%p157) target = $region12
    $region11: #{_lambda_.1} parent=5 // pred_region
      %s161 = ssub.s32 %s11, 1
      // Predicated region
      $region13: #{_lambda_.1} parent=11 // pred_check
        %p162 = pneg %p58
      $region14: #{_lambda_.1} parent=11 // pred_check_branch
        %164 = sbr.rel (%p162) target = $region16
      $region15: #{_lambda_.1} parent=11 // pred_region
        _
      $region16: #{_lambda_.1} parent=11 // pred_fallthru
        _
      // Predicated region
      $region17: #{_lambda_.1} parent=11 // pred_check
        %p165 = pneg %p79
      $region18: #{_lambda_.1} parent=11 // pred_check_branch
        %167 = sbr.rel (%p165) target = $region20
      $region19: #{_lambda_.1} parent=11 // pred_region
        _
      $region20: #{_lambda_.1} parent=11 // pred_fallthru
        _
      // Predicated region
      $region21: #{_lambda_.1} parent=11 // pred_check
        %p168 = pneg %p100
      $region22: #{_lambda_.1} parent=11 // pred_check_branch
        %170 = sbr.rel (%p168) target = $region24
      $region23: #{_lambda_.1} parent=11 // pred_region
        _
      $region24: #{_lambda_.1} parent=11 // pred_fallthru
        _
      // Predicated region
      $region25: #{_lambda_.1} parent=11 // pred_check
        %p171 = pneg %p121
      $region26: #{_lambda_.1} parent=11 // pred_check_branch
        %173 = sbr.rel (%p171) target = $region28
      $region27: #{_lambda_.1} parent=11 // pred_region
        _
      $region28: #{_lambda_.1} parent=11 // pred_fallthru
        _
    $region12: #{_lambda_.1} parent=5 // pred_fallthru
      _
    %p174 = scmp.lt.s32.totalorder %s11, 2
    // Predicated region
    $region29: #{_lambda_.1} parent=5 // pred_check
      %p175 = pneg %p174
    $region30: #{_lambda_.1} parent=5 // pred_check_branch
      %177 = sbr.rel (%p175) target = $region32
    $region31: #{_lambda_.1} parent=5 // pred_region
      // Predicated region
      $region33: #{_lambda_.1} parent=31 // pred_check
        %p178 = pneg %p31
      $region34: #{_lambda_.1} parent=31 // pred_check_branch
        %180 = sbr.rel (%p178) target = $region36
      $region35: #{_lambda_.1} parent=31 // pred_region
        %p181 = scmp.lt.s32.totalorder %s11, 1
        %s182 = scalar_select %p181, %s11, 1
        %s183 = smul.addr %s182, 32
        %s184 = smul.addr %s183, 8
        %s185 = scalar_lea.vmem %s0, %s184
      $region36: #{_lambda_.1} parent=31 // pred_fallthru
        _
    $region32: #{_lambda_.1} parent=5 // pred_fallthru
      _
    %p186 = scmp.le.s32.totalorder 1, %s11
    %p187 = scmp.lt.s32.totalorder %s11, 3
    %p188 = pnand %p186, %p187
    %p189 = pneg %p188
    // Predicated region
    $region37: #{_lambda_.1} parent=5 // pred_check
      _
    $region38: #{_lambda_.1} parent=5 // pred_check_branch
      %191 = sbr.rel (%p188) target = $region40
    $region39: #{_lambda_.1} parent=5 // pred_region
      %s192 = ssub.s32 %s11, 1
      %p193 = scmp.lt.s32.totalorder %s16, 1
      %s194 = scalar_select %p193, %s16, 1
      %s195 = smul.addr %s194, 32
      %s196 = smul.addr %s195, 8
      %s197 = scalar_lea.vmem %s0, %s196
      %p198 = pneg %p37
      %p199 = pneg %p34
      %p200 = pneg %p58
      %p201 = pneg %p55
      %p202 = pneg %p79
      %p203 = pneg %p76
      %p204 = pneg %p100
      %p205 = pneg %p97
      %p206 = pneg %p121
      %p207 = pneg %p118
      %p208 = pneg %p147
      %p209 = pneg %p144
      %p210 = scmp.lt.s32.totalorder %s16, 1
      %s211 = scalar_select %p210, %s16, 1
      %s212 = smul.addr %s211, 8
      %s213 = scalar_lea.vmem %s5, %s212
      %p214 = scmp.lt.s32.totalorder %s16, 1
      %s215 = scalar_select %p214, %s16, 1
      %s216 = smul.addr %s215, 32
      %s217 = smul.addr %s216, 8
      %s218 = scalar_lea.vmem %s0, %s217
      %p219 = scmp.lt.s32.totalorder %s16, 1
      %s220 = scalar_select %p219, %s16, 1
      %s221 = smul.addr %s220, 8
      %s222 = scalar_lea.vmem %s5, %s221
      %v223 = vld [vmem:[%s218] sm:$0xff]
      %v224 = vld [vmem:[%s218 + $0x8] sm:$0xff]
      %v225 = vld [vmem:[%s218 + $0x10] sm:$0xff]
      %v226 = vld [vmem:[%s218 + $0x18] sm:$0xff]
      %v227 = vld [vmem:[%s218 + $0x20] sm:$0xff]
      %v228 = vld [vmem:[%s218 + $0x28] sm:$0xff]
      %v229 = vld [vmem:[%s218 + $0x30] sm:$0xff]
      %v230 = vld [vmem:[%s218 + $0x38] sm:$0xff]
      %v231 = vld [vmem:[%s218 + $0x40] sm:$0xff]
      %v232 = vld [vmem:[%s218 + $0x48] sm:$0xff]
      %v233 = vld [vmem:[%s218 + $0x50] sm:$0xff]
      %v234 = vld [vmem:[%s218 + $0x58] sm:$0xff]
      %v235 = vld [vmem:[%s218 + $0x60] sm:$0xff]
      %v236 = vld [vmem:[%s218 + $0x68] sm:$0xff]
      %v237 = vld [vmem:[%s218 + $0x70] sm:$0xff]
      %v238 = vld [vmem:[%s218 + $0x78] sm:$0xff]
      %v239 = vld [vmem:[%s218 + $0x80] sm:$0xff]
      %v240 = vld [vmem:[%s218 + $0x88] sm:$0xff]
      %v241 = vld [vmem:[%s218 + $0x90] sm:$0xff]
      %v242 = vld [vmem:[%s218 + $0x98] sm:$0xff]
      %v243 = vld [vmem:[%s218 + $0xa0] sm:$0xff]
      %v244 = vld [vmem:[%s218 + $0xa8] sm:$0xff]
      %v245 = vld [vmem:[%s218 + $0xb0] sm:$0xff]
      %v246 = vld [vmem:[%s218 + $0xb8] sm:$0xff]
      %v247 = vld [vmem:[%s218 + $0xc0] sm:$0xff]
      %v248 = vld [vmem:[%s218 + $0xc8] sm:$0xff]
      %v249 = vld [vmem:[%s218 + $0xd0] sm:$0xff]
      %v250 = vld [vmem:[%s218 + $0xd8] sm:$0xff]
      %v251 = vld [vmem:[%s218 + $0xe0] sm:$0xff]
      %v252 = vld [vmem:[%s218 + $0xe8] sm:$0xff]
      %v253 = vld [vmem:[%s218 + $0xf0] sm:$0xff]
      %v254 = vld [vmem:[%s218 + $0xf8] sm:$0xff]
      %vm286 = vcmask 1040384
      %v287 = vrot.slane 0.0, 7
      %v288 = vsel %vm286, %v287, %v287
      %v289 = vrot.slane %v223, 7
      %v290 = vrot.slane %v224, 7
      %v291 = vsel %vm286, %v289, %v290
      %v292 = vrot.slane %v225, 7
      %v293 = vrot.slane %v226, 7
      %v294 = vsel %vm286, %v292, %v293
      %v295 = vrot.slane %v227, 7
      %v296 = vrot.slane %v228, 7
      %v297 = vsel %vm286, %v295, %v296
      %v298 = vrot.slane %v229, 7
      %v299 = vrot.slane %v230, 7
      %v300 = vsel %vm286, %v298, %v299
      %v301 = vrot.slane %v231, 7
      %v302 = vrot.slane %v232, 7
      %v303 = vsel %vm286, %v301, %v302
      %v304 = vrot.slane %v233, 7
      %v305 = vrot.slane %v234, 7
      %v306 = vsel %vm286, %v304, %v305
      %v307 = vrot.slane %v235, 7
      %v308 = vrot.slane %v236, 7
      %v309 = vsel %vm286, %v307, %v308
      %v310 = vrot.slane %v237, 7
      %v311 = vrot.slane %v238, 7
      %v312 = vsel %vm286, %v310, %v311
      %v313 = vrot.slane %v239, 7
      %v314 = vrot.slane %v240, 7
      %v315 = vsel %vm286, %v313, %v314
      %v316 = vrot.slane %v241, 7
      %v317 = vrot.slane %v242, 7
      %v318 = vsel %vm286, %v316, %v317
      %v319 = vrot.slane %v243, 7
      %v320 = vrot.slane %v244, 7
      %v321 = vsel %vm286, %v319, %v320
      %v322 = vrot.slane %v245, 7
      %v323 = vrot.slane %v246, 7
      %v324 = vsel %vm286, %v322, %v323
      %v325 = vrot.slane %v247, 7
      %v326 = vrot.slane %v248, 7
      %v327 = vsel %vm286, %v325, %v326
      %v328 = vrot.slane %v249, 7
      %v329 = vrot.slane %v250, 7
      %v330 = vsel %vm286, %v328, %v329
      %v331 = vrot.slane %v251, 7
      %v332 = vrot.slane %v252, 7
      %v333 = vsel %vm286, %v331, %v332
      %v366 = vsel %vm286, 0.0, %v287
      %v367 = vsel %vm286, 0.0, %v289
      %v368 = vsel %vm286, 0.0, %v292
      %v369 = vsel %vm286, 0.0, %v295
      %v370 = vsel %vm286, 0.0, %v298
      %v371 = vsel %vm286, 0.0, %v301
      %v372 = vsel %vm286, 0.0, %v304
      %v373 = vsel %vm286, 0.0, %v307
      %v374 = vsel %vm286, 0.0, %v310
      %v375 = vsel %vm286, 0.0, %v313
      %v376 = vsel %vm286, 0.0, %v316
      %v377 = vsel %vm286, 0.0, %v319
      %v378 = vsel %vm286, 0.0, %v322
      %v379 = vsel %vm286, 0.0, %v325
      %v380 = vsel %vm286, 0.0, %v328
      %v381 = vsel %vm286, 0.0, %v331
      %vm382 = vcmask 1046528
      %v383 = vrot.slane 0.0, 1
      %v384 = vsel %vm382, %v383, %v383
      %v385 = vrot.slane %v223, 1
      %v386 = vrot.slane %v224, 1
      %v387 = vsel %vm382, %v385, %v386
      %v388 = vrot.slane %v225, 1
      %v389 = vrot.slane %v226, 1
      %v390 = vsel %vm382, %v388, %v389
      %v391 = vrot.slane %v227, 1
      %v392 = vrot.slane %v228, 1
      %v393 = vsel %vm382, %v391, %v392
      %v394 = vrot.slane %v229, 1
      %v395 = vrot.slane %v230, 1
      %v396 = vsel %vm382, %v394, %v395
      %v397 = vrot.slane %v231, 1
      %v398 = vrot.slane %v232, 1
      %v399 = vsel %vm382, %v397, %v398
      %v400 = vrot.slane %v233, 1
      %v401 = vrot.slane %v234, 1
      %v402 = vsel %vm382, %v400, %v401
      %v403 = vrot.slane %v235, 1
      %v404 = vrot.slane %v236, 1
      %v405 = vsel %vm382, %v403, %v404
      %v406 = vrot.slane %v237, 1
      %v407 = vrot.slane %v238, 1
      %v408 = vsel %vm382, %v406, %v407
      %v409 = vrot.slane %v239, 1
      %v410 = vrot.slane %v240, 1
      %v411 = vsel %vm382, %v409, %v410
      %v412 = vrot.slane %v241, 1
      %v413 = vrot.slane %v242, 1
      %v414 = vsel %vm382, %v412, %v413
      %v415 = vrot.slane %v243, 1
      %v416 = vrot.slane %v244, 1
      %v417 = vsel %vm382, %v415, %v416
      %v418 = vrot.slane %v245, 1
      %v419 = vrot.slane %v246, 1
      %v420 = vsel %vm382, %v418, %v419
      %v421 = vrot.slane %v247, 1
      %v422 = vrot.slane %v248, 1
      %v423 = vsel %vm382, %v421, %v422
      %v424 = vrot.slane %v249, 1
      %v425 = vrot.slane %v250, 1
      %v426 = vsel %vm382, %v424, %v425
      %v427 = vrot.slane %v251, 1
      %v428 = vrot.slane %v252, 1
      %v429 = vsel %vm382, %v427, %v428
      %v446 = vsel %vm382, %v383, 0.0
      %v447 = vsel %vm382, %v386, 0.0
      %v448 = vsel %vm382, %v389, 0.0
      %v449 = vsel %vm382, %v392, 0.0
      %v450 = vsel %vm382, %v395, 0.0
      %v451 = vsel %vm382, %v398, 0.0
      %v452 = vsel %vm382, %v401, 0.0
      %v453 = vsel %vm382, %v404, 0.0
      %v454 = vsel %vm382, %v407, 0.0
      %v455 = vsel %vm382, %v410, 0.0
      %v456 = vsel %vm382, %v413, 0.0
      %v457 = vsel %vm382, %v416, 0.0
      %v458 = vsel %vm382, %v419, 0.0
      %v459 = vsel %vm382, %v422, 0.0
      %v460 = vsel %vm382, %v425, 0.0
      %v461 = vsel %vm382, %v428, 0.0
      %462 = vrot.lane.b32.xlu0 0.0, 4
      %v463 = vpop.permute.xlu0 %462
      %464 = vrot.lane.b32.xlu0 %v223, 4
      %v465 = vpop.permute.xlu0 %464
      %466 = vrot.lane.b32.xlu0 %v224, 4
      %v467 = vpop.permute.xlu0 %466
      %468 = vrot.lane.b32.xlu0 %v225, 4
      %v469 = vpop.permute.xlu0 %468
      %470 = vrot.lane.b32.xlu0 %v226, 4
      %v471 = vpop.permute.xlu0 %470
      %472 = vrot.lane.b32.xlu0 %v227, 4
      %v473 = vpop.permute.xlu0 %472
      %474 = vrot.lane.b32.xlu0 %v228, 4
      %v475 = vpop.permute.xlu0 %474
      %476 = vrot.lane.b32.xlu0 %v229, 4
      %v477 = vpop.permute.xlu0 %476
      %478 = vrot.lane.b32.xlu0 %v230, 4
      %v479 = vpop.permute.xlu0 %478
      %480 = vrot.lane.b32.xlu0 %v231, 4
      %v481 = vpop.permute.xlu0 %480
      %482 = vrot.lane.b32.xlu0 %v232, 4
      %v483 = vpop.permute.xlu0 %482
      %484 = vrot.lane.b32.xlu0 %v233, 4
      %v485 = vpop.permute.xlu0 %484
      %486 = vrot.lane.b32.xlu0 %v234, 4
      %v487 = vpop.permute.xlu0 %486
      %488 = vrot.lane.b32.xlu0 %v235, 4
      %v489 = vpop.permute.xlu0 %488
      %490 = vrot.lane.b32.xlu0 %v236, 4
      %v491 = vpop.permute.xlu0 %490
      %492 = vrot.lane.b32.xlu0 %v237, 4
      %v493 = vpop.permute.xlu0 %492
      %494 = vrot.lane.b32.xlu0 %v238, 4
      %v495 = vpop.permute.xlu0 %494
      %496 = vrot.lane.b32.xlu0 %v239, 4
      %v497 = vpop.permute.xlu0 %496
      %498 = vrot.lane.b32.xlu0 %v240, 4
      %v499 = vpop.permute.xlu0 %498
      %500 = vrot.lane.b32.xlu0 %v241, 4
      %v501 = vpop.permute.xlu0 %500
      %502 = vrot.lane.b32.xlu0 %v242, 4
      %v503 = vpop.permute.xlu0 %502
      %504 = vrot.lane.b32.xlu0 %v243, 4
      %v505 = vpop.permute.xlu0 %504
      %506 = vrot.lane.b32.xlu0 %v244, 4
      %v507 = vpop.permute.xlu0 %506
      %508 = vrot.lane.b32.xlu0 %v245, 4
      %v509 = vpop.permute.xlu0 %508
      %510 = vrot.lane.b32.xlu0 %v246, 4
      %v511 = vpop.permute.xlu0 %510
      %512 = vrot.lane.b32.xlu0 %v247, 4
      %v513 = vpop.permute.xlu0 %512
      %514 = vrot.lane.b32.xlu0 %v248, 4
      %v515 = vpop.permute.xlu0 %514
      %516 = vrot.lane.b32.xlu0 %v249, 4
      %v517 = vpop.permute.xlu0 %516
      %518 = vrot.lane.b32.xlu0 %v250, 4
      %v519 = vpop.permute.xlu0 %518
      %520 = vrot.lane.b32.xlu0 %v251, 4
      %v521 = vpop.permute.xlu0 %520
      %522 = vrot.lane.b32.xlu0 %v252, 4
      %v523 = vpop.permute.xlu0 %522
      %571 = vrot.lane.b32.xlu0 %v384, 8
      %v572 = vpop.permute.xlu0 %571
      %573 = vrot.lane.b32.xlu0 %v446, 8
      %v574 = vpop.permute.xlu0 %573
      %575 = vrot.lane.b32.xlu0 %v387, 8
      %v576 = vpop.permute.xlu0 %575
      %577 = vrot.lane.b32.xlu0 %v447, 8
      %v578 = vpop.permute.xlu0 %577
      %579 = vrot.lane.b32.xlu0 %v390, 8
      %v580 = vpop.permute.xlu0 %579
      %581 = vrot.lane.b32.xlu0 %v448, 8
      %v582 = vpop.permute.xlu0 %581
      %583 = vrot.lane.b32.xlu0 %v393, 8
      %v584 = vpop.permute.xlu0 %583
      %585 = vrot.lane.b32.xlu0 %v449, 8
      %v586 = vpop.permute.xlu0 %585
      %587 = vrot.lane.b32.xlu0 %v396, 8
      %v588 = vpop.permute.xlu0 %587
      %589 = vrot.lane.b32.xlu0 %v450, 8
      %v590 = vpop.permute.xlu0 %589
      %591 = vrot.lane.b32.xlu0 %v399, 8
      %v592 = vpop.permute.xlu0 %591
      %593 = vrot.lane.b32.xlu0 %v451, 8
      %v594 = vpop.permute.xlu0 %593
      %595 = vrot.lane.b32.xlu0 %v402, 8
      %v596 = vpop.permute.xlu0 %595
      %597 = vrot.lane.b32.xlu0 %v452, 8
      %v598 = vpop.permute.xlu0 %597
      %599 = vrot.lane.b32.xlu0 %v405, 8
      %v600 = vpop.permute.xlu0 %599
      %601 = vrot.lane.b32.xlu0 %v453, 8
      %v602 = vpop.permute.xlu0 %601
      %603 = vrot.lane.b32.xlu0 %v408, 8
      %v604 = vpop.permute.xlu0 %603
      %605 = vrot.lane.b32.xlu0 %v454, 8
      %v606 = vpop.permute.xlu0 %605
      %607 = vrot.lane.b32.xlu0 %v411, 8
      %v608 = vpop.permute.xlu0 %607
      %609 = vrot.lane.b32.xlu0 %v455, 8
      %v610 = vpop.permute.xlu0 %609
      %611 = vrot.lane.b32.xlu0 %v414, 8
      %v612 = vpop.permute.xlu0 %611
      %613 = vrot.lane.b32.xlu0 %v456, 8
      %v614 = vpop.permute.xlu0 %613
      %615 = vrot.lane.b32.xlu0 %v417, 8
      %v616 = vpop.permute.xlu0 %615
      %617 = vrot.lane.b32.xlu0 %v457, 8
      %v618 = vpop.permute.xlu0 %617
      %619 = vrot.lane.b32.xlu0 %v420, 8
      %v620 = vpop.permute.xlu0 %619
      %621 = vrot.lane.b32.xlu0 %v458, 8
      %v622 = vpop.permute.xlu0 %621
      %623 = vrot.lane.b32.xlu0 %v423, 8
      %v624 = vpop.permute.xlu0 %623
      %625 = vrot.lane.b32.xlu0 %v459, 8
      %v626 = vpop.permute.xlu0 %625
      %627 = vrot.lane.b32.xlu0 %v426, 8
      %v628 = vpop.permute.xlu0 %627
      %629 = vrot.lane.b32.xlu0 %v460, 8
      %v630 = vpop.permute.xlu0 %629
      %631 = vrot.lane.b32.xlu0 %v429, 8
      %v632 = vpop.permute.xlu0 %631
      %633 = vrot.lane.b32.xlu0 %v461, 8
      %v634 = vpop.permute.xlu0 %633
      %vm667 = vcmask 31744
      %v668 = vsel %vm667, %v366, %v463
      %v669 = vsel %vm667, %v288, %v463
      %v670 = vsel %vm667, %v367, %v465
      %v671 = vsel %vm667, %v291, %v467
      %v672 = vsel %vm667, %v368, %v469
      %v673 = vsel %vm667, %v294, %v471
      %v674 = vsel %vm667, %v369, %v473
      %v675 = vsel %vm667, %v297, %v475
      %v676 = vsel %vm667, %v370, %v477
      %v677 = vsel %vm667, %v300, %v479
      %v678 = vsel %vm667, %v371, %v481
      %v679 = vsel %vm667, %v303, %v483
      %v680 = vsel %vm667, %v372, %v485
      %v681 = vsel %vm667, %v306, %v487
      %v682 = vsel %vm667, %v373, %v489
      %v683 = vsel %vm667, %v309, %v491
      %v684 = vsel %vm667, %v374, %v493
      %v685 = vsel %vm667, %v312, %v495
      %v686 = vsel %vm667, %v375, %v497
      %v687 = vsel %vm667, %v315, %v499
      %v688 = vsel %vm667, %v376, %v501
      %v689 = vsel %vm667, %v318, %v503
      %v690 = vsel %vm667, %v377, %v505
      %v691 = vsel %vm667, %v321, %v507
      %v692 = vsel %vm667, %v378, %v509
      %v693 = vsel %vm667, %v324, %v511
      %v694 = vsel %vm667, %v379, %v513
      %v695 = vsel %vm667, %v327, %v515
      %v696 = vsel %vm667, %v380, %v517
      %v697 = vsel %vm667, %v330, %v519
      %v698 = vsel %vm667, %v381, %v521
      %v699 = vsel %vm667, %v333, %v523
      %vm700 = vcmask 64512
      %v701 = vsel %vm700, %v668, %v572
      %v702 = vsel %vm700, %v669, %v574
      %v703 = vsel %vm700, %v670, %v576
      %v704 = vsel %vm700, %v671, %v578
      %v705 = vsel %vm700, %v672, %v580
      %v706 = vsel %vm700, %v673, %v582
      %v707 = vsel %vm700, %v674, %v584
      %v708 = vsel %vm700, %v675, %v586
      %v709 = vsel %vm700, %v676, %v588
      %v710 = vsel %vm700, %v677, %v590
      %v711 = vsel %vm700, %v678, %v592
      %v712 = vsel %vm700, %v679, %v594
      %v713 = vsel %vm700, %v680, %v596
      %v714 = vsel %vm700, %v681, %v598
      %v715 = vsel %vm700, %v682, %v600
      %v716 = vsel %vm700, %v683, %v602
      %v717 = vsel %vm700, %v684, %v604
      %v718 = vsel %vm700, %v685, %v606
      %v719 = vsel %vm700, %v686, %v608
      %v720 = vsel %vm700, %v687, %v610
      %v721 = vsel %vm700, %v688, %v612
      %v722 = vsel %vm700, %v689, %v614
      %v723 = vsel %vm700, %v690, %v616
      %v724 = vsel %vm700, %v691, %v618
      %v725 = vsel %vm700, %v692, %v620
      %v726 = vsel %vm700, %v693, %v622
      %v727 = vsel %vm700, %v694, %v624
      %v728 = vsel %vm700, %v695, %v626
      %v729 = vsel %vm700, %v696, %v628
      %v730 = vsel %vm700, %v697, %v630
      %v731 = vsel %vm700, %v698, %v632
      %v732 = vsel %vm700, %v699, %v634
      %v733 = vld [vmem:[%s1] sm:$0xff]
      %v734 = vld [vmem:[%s1 + $0x8] sm:$0xf]
      %v737 = vrot.slane %v253, 7
      %v738 = vrot.slane %v254, 7
      %v739 = vsel %vm286, %v737, %v738
      %v742 = vsel %vm286, 0.0, %v737
      %v743 = vrot.slane %v253, 1
      %v744 = vrot.slane %v254, 1
      %v745 = vsel %vm382, %v743, %v744
      %v747 = vsel %vm382, %v744, 0.0
      %748 = vrot.lane.b32.xlu0 %v253, 4
      %v749 = vpop.permute.xlu0 %748
      %750 = vrot.lane.b32.xlu0 %v254, 4
      %v751 = vpop.permute.xlu0 %750
      %755 = vrot.lane.b32.xlu0 %v745, 8
      %v756 = vpop.permute.xlu0 %755
      %757 = vrot.lane.b32.xlu0 %v747, 8
      %v758 = vpop.permute.xlu0 %757
      %v761 = vsel %vm667, %v742, %v749
      %v762 = vsel %vm667, %v739, %v751
      %v763 = vsel %vm700, %v761, %v756
      %v764 = vsel %vm700, %v762, %v758
      %v765 = vld [vmem:[%s1 + $0xc] sm:$0xff]
      %v766 = vld [vmem:[%s1 + $0x14] sm:$0xf]
      %vm767 = vcmask 97280
      %v769 = vsel %vm767, %v703, 0
      %v772 = vsel %vm767, %v704, 0
      %v775 = vsel %vm767, %v705, 0
      %v778 = vsel %vm767, %v706, 0
      %v781 = vsel %vm767, %v707, 0
      %v784 = vsel %vm767, %v708, 0
      %v787 = vsel %vm767, %v709, 0
      %v790 = vsel %vm767, %v710, 0
      %v793 = vsel %vm767, %v711, 0
      %v796 = vsel %vm767, %v712, 0
      %v799 = vsel %vm767, %v713, 0
      %v802 = vsel %vm767, %v714, 0
      %v805 = vsel %vm767, %v715, 0
      %v808 = vsel %vm767, %v716, 0
      %v811 = vsel %vm767, %v717, 0
      %v814 = vsel %vm767, %v718, 0
      %v817 = vsel %vm767, %v719, 0
      %v820 = vsel %vm767, %v720, 0
      %v823 = vsel %vm767, %v721, 0
      %v826 = vsel %vm767, %v722, 0
      %v829 = vsel %vm767, %v723, 0
      %v832 = vsel %vm767, %v724, 0
      %v835 = vsel %vm767, %v725, 0
      %v838 = vsel %vm767, %v726, 0
      %v841 = vsel %vm767, %v727, 0
      %v844 = vsel %vm767, %v728, 0
      %v847 = vsel %vm767, %v729, 0
      %v850 = vsel %vm767, %v730, 0
      %v853 = vsel %vm767, %v731, 0
      %v856 = vsel %vm767, %v732, 0
      %v859 = vsel %vm767, %v763, 0
      %v862 = vsel %vm767, %v764, 0
      %vm864 = vcmask 1043456
      %v866 = vsel %vm864, %v766, 0
      %868 = vmatprep.subr.mxu0 0.0
      %869 = vmatpush1.msra.mxu0 %v765
      %870 = vmatprep.subr.mxu0 0.0
      %871 = vmatpush1.msra.mxu0 %v866
      %872 = vmatprep.subr.mxu0 0.0
      %873 = vmatpush1.msra.mxu0 0.0
      %874 = vmatprep.subr.mxu0 0.0
      %875 = vmatpush1.msra.mxu0 0.0
      %876 = vmatprep.subr.mxu0 0.0
      %877 = vmatpush1.msra.mxu0 0.0
      %878 = vmatprep.subr.mxu0 0.0
      %879 = vmatpush1.msra.mxu0 0.0
      %880 = vmatprep.subr.mxu0 0.0
      %881 = vmatpush1.msra.mxu0 0.0
      %882 = vmatprep.subr.mxu0 0.0
      %883 = vmatpush1.msra.mxu0 0.0
      %884 = vmatprep.subr.mxu0 0.0
      %885 = vmatpush1.msra.mxu0 0.0
      %886 = vmatprep.subr.mxu0 0.0
      %887 = vmatpush1.msra.mxu0 0.0
      %888 = vmatprep.subr.mxu0 0.0
      %889 = vmatpush1.msra.mxu0 0.0
      %890 = vmatprep.subr.mxu0 0.0
      %891 = vmatpush1.msra.mxu0 0.0
      %892 = vmatprep.subr.mxu0 0.0
      %893 = vmatpush1.msra.mxu0 0.0
      %894 = vmatprep.subr.mxu0 0.0
      %895 = vmatpush1.msra.mxu0 0.0
      %896 = vmatprep.subr.mxu0 0.0
      %897 = vmatpush1.msra.mxu0 0.0
      %898 = vmatprep.subr.mxu0 0.0
      %899 = vmatpush1.msra.mxu0 0.0
      %900 = vmatprep.subr.mxu0 0.0
      %901 = vmatpush1.msra.mxu0 0.0
      %902 = vmatprep.subr.mxu0 0.0
      %903 = vmatpush1.msra.mxu0 0.0
      %904 = vmatprep.subr.mxu0 0.0
      %905 = vmatpush1.msra.mxu0 0.0
      %906 = vmatprep.subr.mxu0 0.0
      %907 = vmatpush1.msra.mxu0 0.0
      %908 = vmatprep.subr.mxu0 0.0
      %909 = vmatpush1.msra.mxu0 0.0
      %910 = vmatprep.subr.mxu0 0.0
      %911 = vmatpush1.msra.mxu0 0.0
      %912 = vmatprep.subr.mxu0 0.0
      %913 = vmatpush1.msra.mxu0 0.0
      %914 = vmatprep.subr.mxu0 0.0
      %915 = vmatpush1.msra.mxu0 0.0
      %916 = vmatprep.subr.mxu0 0.0
      %917 = vmatpush1.msra.mxu0 0.0
      %918 = vmatprep.subr.mxu0 0.0
      %919 = vmatpush1.msra.mxu0 0.0
      %920 = vmatprep.subr.mxu0 0.0
      %921 = vmatpush1.msra.mxu0 0.0
      %922 = vmatprep.subr.mxu0 0.0
      %923 = vmatpush1.msra.mxu0 0.0
      %924 = vmatprep.subr.mxu0 0.0
      %925 = vmatpush1.msra.mxu0 0.0
      %926 = vmatprep.subr.mxu0 0.0
      %927 = vmatpush1.msra.mxu0 0.0
      %928 = vmatprep.subr.mxu0 0.0
      %929 = vmatpush1.msra.mxu0 0.0
      %930 = vmatprep.subr.mxu0 0.0
      %931 = vmatpush1.msra.mxu0 0.0
      %932 = vmatprep.mubr.f32.mxu0 0.0
      %933 = vmatmul.mubr.f32.gmra.mrb[0].mxu0 %v769
      %v934 = vpop.f32.mrb[0].mxu0
      %v935 = vadd.f32 0.0, %v934
      %v936 = vpop.f32.mrb[0].mxu0
      %937 = vmatprep.mubr.f32.mxu0 0.0
      %938 = vmatmul.mubr.f32.gmra.mrb[0].mxu0 %v772
      %v939 = vpop.f32.mrb[0].mxu0
      %v940 = vadd.f32 0.0, %v939
      %v941 = vpop.f32.mrb[0].mxu0
      %942 = vmatprep.mubr.f32.mxu0 0.0
      %943 = vmatmul.mubr.f32.gmra.mrb[0].mxu0 %v775
      %v944 = vpop.f32.mrb[0].mxu0
      %v945 = vadd.f32 0.0, %v944
      %v946 = vpop.f32.mrb[0].mxu0
      %947 = vmatprep.mubr.f32.mxu0 0.0
      %948 = vmatmul.mubr.f32.gmra.mrb[0].mxu0 %v778
      %v949 = vpop.f32.mrb[0].mxu0
      %v950 = vadd.f32 0.0, %v949
      %v951 = vpop.f32.mrb[0].mxu0
      %952 = vmatprep.mubr.f32.mxu0 0.0
      %953 = vmatmul.mubr.f32.gmra.mrb[0].mxu0 %v781
      %v954 = vpop.f32.mrb[0].mxu0
      %v955 = vadd.f32 0.0, %v954
      %v956 = vpop.f32.mrb[0].mxu0
      %957 = vmatprep.mubr.f32.mxu0 0.0
      %958 = vmatmul.mubr.f32.gmra.mrb[0].mxu0 %v784
      %v959 = vpop.f32.mrb[0].mxu0
      %v960 = vadd.f32 0.0, %v959
      %v961 = vpop.f32.mrb[0].mxu0
      %962 = vmatprep.mubr.f32.mxu0 0.0
      %963 = vmatmul.mubr.f32.gmra.mrb[0].mxu0 %v787
      %v964 = vpop.f32.mrb[0].mxu0
      %v965 = vadd.f32 0.0, %v964
      %v966 = vpop.f32.mrb[0].mxu0
      %967 = vmatprep.mubr.f32.mxu0 0.0
      %968 = vmatmul.mubr.f32.gmra.mrb[0].mxu0 %v790
      %v969 = vpop.f32.mrb[0].mxu0
      %v970 = vadd.f32 0.0, %v969
      %v971 = vpop.f32.mrb[0].mxu0
      %972 = vmatprep.mubr.f32.mxu0 0.0
      %973 = vmatmul.mubr.f32.gmra.mrb[0].mxu0 %v793
      %v974 = vpop.f32.mrb[0].mxu0
      %v975 = vadd.f32 0.0, %v974
      %v976 = vpop.f32.mrb[0].mxu0
      %977 = vmatprep.mubr.f32.mxu0 0.0
      %978 = vmatmul.mubr.f32.gmra.mrb[0].mxu0 %v796
      %v979 = vpop.f32.mrb[0].mxu0
      %v980 = vadd.f32 0.0, %v979
      %v981 = vpop.f32.mrb[0].mxu0
      %982 = vmatprep.mubr.f32.mxu0 0.0
      %983 = vmatmul.mubr.f32.gmra.mrb[0].mxu0 %v799
      %v984 = vpop.f32.mrb[0].mxu0
      %v985 = vadd.f32 0.0, %v984
      %v986 = vpop.f32.mrb[0].mxu0
      %987 = vmatprep.mubr.f32.mxu0 0.0
      %988 = vmatmul.mubr.f32.gmra.mrb[0].mxu0 %v802
      %v989 = vpop.f32.mrb[0].mxu0
      %v990 = vadd.f32 0.0, %v989
      %v991 = vpop.f32.mrb[0].mxu0
      %992 = vmatprep.mubr.f32.mxu0 0.0
      %993 = vmatmul.mubr.f32.gmra.mrb[0].mxu0 %v805
      %v994 = vpop.f32.mrb[0].mxu0
      %v995 = vadd.f32 0.0, %v994
      %v996 = vpop.f32.mrb[0].mxu0
      %997 = vmatprep.mubr.f32.mxu0 0.0
      %998 = vmatmul.mubr.f32.gmra.mrb[0].mxu0 %v808
      %v999 = vpop.f32.mrb[0].mxu0
      %v1000 = vadd.f32 0.0, %v999
      %v1001 = vpop.f32.mrb[0].mxu0
      %1002 = vmatprep.mubr.f32.mxu0 0.0
      %1003 = vmatmul.mubr.f32.gmra.mrb[0].mxu0 %v811
      %v1004 = vpop.f32.mrb[0].mxu0
      %v1005 = vadd.f32 0.0, %v1004
      %v1006 = vpop.f32.mrb[0].mxu0
      %1007 = vmatprep.mubr.f32.mxu0 0.0
      %1008 = vmatmul.mubr.f32.gmra.mrb[0].mxu0 %v814
      %v1009 = vpop.f32.mrb[0].mxu0
      %v1010 = vadd.f32 0.0, %v1009
      %v1011 = vpop.f32.mrb[0].mxu0
      %1012 = vmatprep.mubr.f32.mxu0 0.0
      %1013 = vmatmul.mubr.f32.gmra.mrb[0].mxu0 %v817
      %v1014 = vpop.f32.mrb[0].mxu0
      %v1015 = vadd.f32 0.0, %v1014
      %v1016 = vpop.f32.mrb[0].mxu0
      %1017 = vmatprep.mubr.f32.mxu0 0.0
      %1018 = vmatmul.mubr.f32.gmra.mrb[0].mxu0 %v820
      %v1019 = vpop.f32.mrb[0].mxu0
      %v1020 = vadd.f32 0.0, %v1019
      %v1021 = vpop.f32.mrb[0].mxu0
      %1022 = vmatprep.mubr.f32.mxu0 0.0
      %1023 = vmatmul.mubr.f32.gmra.mrb[0].mxu0 %v823
      %v1024 = vpop.f32.mrb[0].mxu0
      %v1025 = vadd.f32 0.0, %v1024
      %v1026 = vpop.f32.mrb[0].mxu0
      %1027 = vmatprep.mubr.f32.mxu0 0.0
      %1028 = vmatmul.mubr.f32.gmra.mrb[0].mxu0 %v826
      %v1029 = vpop.f32.mrb[0].mxu0
      %v1030 = vadd.f32 0.0, %v1029
      %v1031 = vpop.f32.mrb[0].mxu0
      %1032 = vmatprep.mubr.f32.mxu0 0.0
      %1033 = vmatmul.mubr.f32.gmra.mrb[0].mxu0 %v829
      %v1034 = vpop.f32.mrb[0].mxu0
      %v1035 = vadd.f32 0.0, %v1034
      %v1036 = vpop.f32.mrb[0].mxu0
      %1037 = vmatprep.mubr.f32.mxu0 0.0
      %1038 = vmatmul.mubr.f32.gmra.mrb[0].mxu0 %v832
      %v1039 = vpop.f32.mrb[0].mxu0
      %v1040 = vadd.f32 0.0, %v1039
      %v1041 = vpop.f32.mrb[0].mxu0
      %1042 = vmatprep.mubr.f32.mxu0 0.0
      %1043 = vmatmul.mubr.f32.gmra.mrb[0].mxu0 %v835
      %v1044 = vpop.f32.mrb[0].mxu0
      %v1045 = vadd.f32 0.0, %v1044
      %v1046 = vpop.f32.mrb[0].mxu0
      %1047 = vmatprep.mubr.f32.mxu0 0.0
      %1048 = vmatmul.mubr.f32.gmra.mrb[0].mxu0 %v838
      %v1049 = vpop.f32.mrb[0].mxu0
      %v1050 = vadd.f32 0.0, %v1049
      %v1051 = vpop.f32.mrb[0].mxu0
      %1052 = vmatprep.mubr.f32.mxu0 0.0
      %1053 = vmatmul.mubr.f32.gmra.mrb[0].mxu0 %v841
      %v1054 = vpop.f32.mrb[0].mxu0
      %v1055 = vadd.f32 0.0, %v1054
      %v1056 = vpop.f32.mrb[0].mxu0
      %1057 = vmatprep.mubr.f32.mxu0 0.0
      %1058 = vmatmul.mubr.f32.gmra.mrb[0].mxu0 %v844
      %v1059 = vpop.f32.mrb[0].mxu0
      %v1060 = vadd.f32 0.0, %v1059
      %v1061 = vpop.f32.mrb[0].mxu0
      %1062 = vmatprep.mubr.f32.mxu0 0.0
      %1063 = vmatmul.mubr.f32.gmra.mrb[0].mxu0 %v847
      %v1064 = vpop.f32.mrb[0].mxu0
      %v1065 = vadd.f32 0.0, %v1064
      %v1066 = vpop.f32.mrb[0].mxu0
      %1067 = vmatprep.mubr.f32.mxu0 0.0
      %1068 = vmatmul.mubr.f32.gmra.mrb[0].mxu0 %v850
      %v1069 = vpop.f32.mrb[0].mxu0
      %v1070 = vadd.f32 0.0, %v1069
      %v1071 = vpop.f32.mrb[0].mxu0
      %1072 = vmatprep.mubr.f32.mxu0 0.0
      %1073 = vmatmul.mubr.f32.gmra.mrb[0].mxu0 %v853
      %v1074 = vpop.f32.mrb[0].mxu0
      %v1075 = vadd.f32 0.0, %v1074
      %v1076 = vpop.f32.mrb[0].mxu0
      %1077 = vmatprep.mubr.f32.mxu0 0.0
      %1078 = vmatmul.mubr.f32.gmra.mrb[0].mxu0 %v856
      %v1079 = vpop.f32.mrb[0].mxu0
      %v1080 = vadd.f32 0.0, %v1079
      %v1081 = vpop.f32.mrb[0].mxu0
      %1082 = vmatprep.mubr.f32.mxu0 0.0
      %1083 = vmatmul.mubr.f32.gmra.mrb[0].mxu0 %v859
      %v1084 = vpop.f32.mrb[0].mxu0
      %v1085 = vadd.f32 0.0, %v1084
      %v1086 = vpop.f32.mrb[0].mxu0
      %1087 = vmatprep.mubr.f32.mxu0 0.0
      %1088 = vmatmul.mubr.f32.gmra.mrb[0].mxu0 %v862
      %v1089 = vpop.f32.mrb[0].mxu0
      %v1090 = vadd.f32 0.0, %v1089
      %v1091 = vpop.f32.mrb[0].mxu0
      %1092 = vdwg.mxu0
      %v1094 = vsel %vm767, %v701, 0
      %v1097 = vsel %vm767, %v702, 0
      %v1100 = vsel %vm864, %v734, 0
      %1102 = vmatprep.subr.mxu0 0.0
      %1103 = vmatpush1.msra.mxu0 %v733
      %1104 = vmatprep.subr.mxu0 0.0
      %1105 = vmatpush1.msra.mxu0 %v1100
      %1106 = vmatprep.subr.mxu0 0.0
      %1107 = vmatpush1.msra.mxu0 0.0
      %1108 = vmatprep.subr.mxu0 0.0
      %1109 = vmatpush1.msra.mxu0 0.0
      %1110 = vmatprep.subr.mxu0 0.0
      %1111 = vmatpush1.msra.mxu0 0.0
      %1112 = vmatprep.subr.mxu0 0.0
      %1113 = vmatpush1.msra.mxu0 0.0
      %1114 = vmatprep.subr.mxu0 0.0
      %1115 = vmatpush1.msra.mxu0 0.0
      %1116 = vmatprep.subr.mxu0 0.0
      %1117 = vmatpush1.msra.mxu0 0.0
      %1118 = vmatprep.subr.mxu0 0.0
      %1119 = vmatpush1.msra.mxu0 0.0
      %1120 = vmatprep.subr.mxu0 0.0
      %1121 = vmatpush1.msra.mxu0 0.0
      %1122 = vmatprep.subr.mxu0 0.0
      %1123 = vmatpush1.msra.mxu0 0.0
      %1124 = vmatprep.subr.mxu0 0.0
      %1125 = vmatpush1.msra.mxu0 0.0
      %1126 = vmatprep.subr.mxu0 0.0
      %1127 = vmatpush1.msra.mxu0 0.0
      %1128 = vmatprep.subr.mxu0 0.0
      %1129 = vmatpush1.msra.mxu0 0.0
      %1130 = vmatprep.subr.mxu0 0.0
      %1131 = vmatpush1.msra.mxu0 0.0
      %1132 = vmatprep.subr.mxu0 0.0
      %1133 = vmatpush1.msra.mxu0 0.0
      %1134 = vmatprep.subr.mxu0 0.0
      %1135 = vmatpush1.msra.mxu0 0.0
      %1136 = vmatprep.subr.mxu0 0.0
      %1137 = vmatpush1.msra.mxu0 0.0
      %1138 = vmatprep.subr.mxu0 0.0
      %1139 = vmatpush1.msra.mxu0 0.0
      %1140 = vmatprep.subr.mxu0 0.0
      %1141 = vmatpush1.msra.mxu0 0.0
      %1142 = vmatprep.subr.mxu0 0.0
      %1143 = vmatpush1.msra.mxu0 0.0
      %1144 = vmatprep.subr.mxu0 0.0
      %1145 = vmatpush1.msra.mxu0 0.0
      %1146 = vmatprep.subr.mxu0 0.0
      %1147 = vmatpush1.msra.mxu0 0.0
      %1148 = vmatprep.subr.mxu0 0.0
      %1149 = vmatpush1.msra.mxu0 0.0
      %1150 = vmatprep.subr.mxu0 0.0
      %1151 = vmatpush1.msra.mxu0 0.0
      %1152 = vmatprep.subr.mxu0 0.0
      %1153 = vmatpush1.msra.mxu0 0.0
      %1154 = vmatprep.subr.mxu0 0.0
      %1155 = vmatpush1.msra.mxu0 0.0
      %1156 = vmatprep.subr.mxu0 0.0
      %1157 = vmatpush1.msra.mxu0 0.0
      %1158 = vmatprep.subr.mxu0 0.0
      %1159 = vmatpush1.msra.mxu0 0.0
      %1160 = vmatprep.subr.mxu0 0.0
      %1161 = vmatpush1.msra.mxu0 0.0
      %1162 = vmatprep.subr.mxu0 0.0
      %1163 = vmatpush1.msra.mxu0 0.0
      %1164 = vmatprep.subr.mxu0 0.0
      %1165 = vmatpush1.msra.mxu0 0.0
      %1166 = vmatprep.mubr.f32.mxu0 0.0
      %1167 = vmatmul.mubr.f32.gmra.mrb[0].mxu0 %v1094
      %v1168 = vpop.f32.mrb[0].mxu0
      %v1169 = vadd.f32 %v935, %v1168
      %v1170 = vpop.f32.mrb[0].mxu0
      %1171 = vmatprep.mubr.f32.mxu0 0.0
      %1172 = vmatmul.mubr.f32.gmra.mrb[0].mxu0 %v1097
      %v1173 = vpop.f32.mrb[0].mxu0
      %v1174 = vadd.f32 %v940, %v1173
      %v1175 = vpop.f32.mrb[0].mxu0
      %1176 = vmatprep.mubr.f32.mxu0 0.0
      %1177 = vmatmul.mubr.f32.gmra.mrb[0].mxu0 %v769
      %v1178 = vpop.f32.mrb[0].mxu0
      %v1179 = vadd.f32 %v945, %v1178
      %v1180 = vpop.f32.mrb[0].mxu0
      %1181 = vmatprep.mubr.f32.mxu0 0.0
      %1182 = vmatmul.mubr.f32.gmra.mrb[0].mxu0 %v772
      %v1183 = vpop.f32.mrb[0].mxu0
      %v1184 = vadd.f32 %v950, %v1183
      %v1185 = vpop.f32.mrb[0].mxu0
      %1186 = vmatprep.mubr.f32.mxu0 0.0
      %1187 = vmatmul.mubr.f32.gmra.mrb[0].mxu0 %v775
      %v1188 = vpop.f32.mrb[0].mxu0
      %v1189 = vadd.f32 %v955, %v1188
      %v1190 = vpop.f32.mrb[0].mxu0
      %1191 = vmatprep.mubr.f32.mxu0 0.0
      %1192 = vmatmul.mubr.f32.gmra.mrb[0].mxu0 %v778
      %v1193 = vpop.f32.mrb[0].mxu0
      %v1194 = vadd.f32 %v960, %v1193
      %v1195 = vpop.f32.mrb[0].mxu0
      %1196 = vmatprep.mubr.f32.mxu0 0.0
      %1197 = vmatmul.mubr.f32.gmra.mrb[0].mxu0 %v781
      %v1198 = vpop.f32.mrb[0].mxu0
      %v1199 = vadd.f32 %v965, %v1198
      %v1200 = vpop.f32.mrb[0].mxu0
      %1201 = vmatprep.mubr.f32.mxu0 0.0
      %1202 = vmatmul.mubr.f32.gmra.mrb[0].mxu0 %v784
      %v1203 = vpop.f32.mrb[0].mxu0
      %v1204 = vadd.f32 %v970, %v1203
      %v1205 = vpop.f32.mrb[0].mxu0
      %1206 = vmatprep.mubr.f32.mxu0 0.0
      %1207 = vmatmul.mubr.f32.gmra.mrb[0].mxu0 %v787
      %v1208 = vpop.f32.mrb[0].mxu0
      %v1209 = vadd.f32 %v975, %v1208
      %v1210 = vpop.f32.mrb[0].mxu0
      %1211 = vmatprep.mubr.f32.mxu0 0.0
      %1212 = vmatmul.mubr.f32.gmra.mrb[0].mxu0 %v790
      %v1213 = vpop.f32.mrb[0].mxu0
      %v1214 = vadd.f32 %v980, %v1213
      %v1215 = vpop.f32.mrb[0].mxu0
      %1216 = vmatprep.mubr.f32.mxu0 0.0
      %1217 = vmatmul.mubr.f32.gmra.mrb[0].mxu0 %v793
      %v1218 = vpop.f32.mrb[0].mxu0
      %v1219 = vadd.f32 %v985, %v1218
      %v1220 = vpop.f32.mrb[0].mxu0
      %1221 = vmatprep.mubr.f32.mxu0 0.0
      %1222 = vmatmul.mubr.f32.gmra.mrb[0].mxu0 %v796
      %v1223 = vpop.f32.mrb[0].mxu0
      %v1224 = vadd.f32 %v990, %v1223
      %v1225 = vpop.f32.mrb[0].mxu0
      %1226 = vmatprep.mubr.f32.mxu0 0.0
      %1227 = vmatmul.mubr.f32.gmra.mrb[0].mxu0 %v799
      %v1228 = vpop.f32.mrb[0].mxu0
      %v1229 = vadd.f32 %v995, %v1228
      %v1230 = vpop.f32.mrb[0].mxu0
      %1231 = vmatprep.mubr.f32.mxu0 0.0
      %1232 = vmatmul.mubr.f32.gmra.mrb[0].mxu0 %v802
      %v1233 = vpop.f32.mrb[0].mxu0
      %v1234 = vadd.f32 %v1000, %v1233
      %v1235 = vpop.f32.mrb[0].mxu0
      %1236 = vmatprep.mubr.f32.mxu0 0.0
      %1237 = vmatmul.mubr.f32.gmra.mrb[0].mxu0 %v805
      %v1238 = vpop.f32.mrb[0].mxu0
      %v1239 = vadd.f32 %v1005, %v1238
      %v1240 = vpop.f32.mrb[0].mxu0
      %1241 = vmatprep.mubr.f32.mxu0 0.0
      %1242 = vmatmul.mubr.f32.gmra.mrb[0].mxu0 %v808
      %v1243 = vpop.f32.mrb[0].mxu0
      %v1244 = vadd.f32 %v1010, %v1243
      %v1245 = vpop.f32.mrb[0].mxu0
      %1246 = vmatprep.mubr.f32.mxu0 0.0
      %1247 = vmatmul.mubr.f32.gmra.mrb[0].mxu0 %v811
      %v1248 = vpop.f32.mrb[0].mxu0
      %v1249 = vadd.f32 %v1015, %v1248
      %v1250 = vpop.f32.mrb[0].mxu0
      %1251 = vmatprep.mubr.f32.mxu0 0.0
      %1252 = vmatmul.mubr.f32.gmra.mrb[0].mxu0 %v814
      %v1253 = vpop.f32.mrb[0].mxu0
      %v1254 = vadd.f32 %v1020, %v1253
      %v1255 = vpop.f32.mrb[0].mxu0
      %1256 = vmatprep.mubr.f32.mxu0 0.0
      %1257 = vmatmul.mubr.f32.gmra.mrb[0].mxu0 %v817
      %v1258 = vpop.f32.mrb[0].mxu0
      %v1259 = vadd.f32 %v1025, %v1258
      %v1260 = vpop.f32.mrb[0].mxu0
      %1261 = vmatprep.mubr.f32.mxu0 0.0
      %1262 = vmatmul.mubr.f32.gmra.mrb[0].mxu0 %v820
      %v1263 = vpop.f32.mrb[0].mxu0
      %v1264 = vadd.f32 %v1030, %v1263
      %v1265 = vpop.f32.mrb[0].mxu0
      %1266 = vmatprep.mubr.f32.mxu0 0.0
      %1267 = vmatmul.mubr.f32.gmra.mrb[0].mxu0 %v823
      %v1268 = vpop.f32.mrb[0].mxu0
      %v1269 = vadd.f32 %v1035, %v1268
      %v1270 = vpop.f32.mrb[0].mxu0
      %1271 = vmatprep.mubr.f32.mxu0 0.0
      %1272 = vmatmul.mubr.f32.gmra.mrb[0].mxu0 %v826
      %v1273 = vpop.f32.mrb[0].mxu0
      %v1274 = vadd.f32 %v1040, %v1273
      %v1275 = vpop.f32.mrb[0].mxu0
      %1276 = vmatprep.mubr.f32.mxu0 0.0
      %1277 = vmatmul.mubr.f32.gmra.mrb[0].mxu0 %v829
      %v1278 = vpop.f32.mrb[0].mxu0
      %v1279 = vadd.f32 %v1045, %v1278
      %v1280 = vpop.f32.mrb[0].mxu0
      %1281 = vmatprep.mubr.f32.mxu0 0.0
      %1282 = vmatmul.mubr.f32.gmra.mrb[0].mxu0 %v832
      %v1283 = vpop.f32.mrb[0].mxu0
      %v1284 = vadd.f32 %v1050, %v1283
      %v1285 = vpop.f32.mrb[0].mxu0
      %1286 = vmatprep.mubr.f32.mxu0 0.0
      %1287 = vmatmul.mubr.f32.gmra.mrb[0].mxu0 %v835
      %v1288 = vpop.f32.mrb[0].mxu0
      %v1289 = vadd.f32 %v1055, %v1288
      %v1290 = vpop.f32.mrb[0].mxu0
      %1291 = vmatprep.mubr.f32.mxu0 0.0
      %1292 = vmatmul.mubr.f32.gmra.mrb[0].mxu0 %v838
      %v1293 = vpop.f32.mrb[0].mxu0
      %v1294 = vadd.f32 %v1060, %v1293
      %v1295 = vpop.f32.mrb[0].mxu0
      %1296 = vmatprep.mubr.f32.mxu0 0.0
      %1297 = vmatmul.mubr.f32.gmra.mrb[0].mxu0 %v841
      %v1298 = vpop.f32.mrb[0].mxu0
      %v1299 = vadd.f32 %v1065, %v1298
      %v1300 = vpop.f32.mrb[0].mxu0
      %1301 = vmatprep.mubr.f32.mxu0 0.0
      %1302 = vmatmul.mubr.f32.gmra.mrb[0].mxu0 %v844
      %v1303 = vpop.f32.mrb[0].mxu0
      %v1304 = vadd.f32 %v1070, %v1303
      %v1305 = vpop.f32.mrb[0].mxu0
      %1306 = vmatprep.mubr.f32.mxu0 0.0
      %1307 = vmatmul.mubr.f32.gmra.mrb[0].mxu0 %v847
      %v1308 = vpop.f32.mrb[0].mxu0
      %v1309 = vadd.f32 %v1075, %v1308
      %v1310 = vpop.f32.mrb[0].mxu0
      %1311 = vmatprep.mubr.f32.mxu0 0.0
      %1312 = vmatmul.mubr.f32.gmra.mrb[0].mxu0 %v850
      %v1313 = vpop.f32.mrb[0].mxu0
      %v1314 = vadd.f32 %v1080, %v1313
      %v1315 = vpop.f32.mrb[0].mxu0
      %1316 = vmatprep.mubr.f32.mxu0 0.0
      %1317 = vmatmul.mubr.f32.gmra.mrb[0].mxu0 %v853
      %v1318 = vpop.f32.mrb[0].mxu0
      %v1319 = vadd.f32 %v1085, %v1318
      %v1320 = vpop.f32.mrb[0].mxu0
      %1321 = vmatprep.mubr.f32.mxu0 0.0
      %1322 = vmatmul.mubr.f32.gmra.mrb[0].mxu0 %v856
      %v1323 = vpop.f32.mrb[0].mxu0
      %v1324 = vadd.f32 %v1090, %v1323
      %v1325 = vpop.f32.mrb[0].mxu0
      %1326 = vdwg.mxu0
      %v1327 = vld [vmem:[%s1 + $0x18] sm:$0xff]
      %v1328 = vld [vmem:[%s1 + $0x20] sm:$0xf]
      %v1330 = vsel %vm864, %v1328, 0
      %1332 = vmatprep.subr.mxu0 0.0
      %1333 = vmatpush1.msra.mxu0 %v1327
      %1334 = vmatprep.subr.mxu0 0.0
      %1335 = vmatpush1.msra.mxu0 %v1330
      %1336 = vmatprep.subr.mxu0 0.0
      %1337 = vmatpush1.msra.mxu0 0.0
      %1338 = vmatprep.subr.mxu0 0.0
      %1339 = vmatpush1.msra.mxu0 0.0
      %1340 = vmatprep.subr.mxu0 0.0
      %1341 = vmatpush1.msra.mxu0 0.0
      %1342 = vmatprep.subr.mxu0 0.0
      %1343 = vmatpush1.msra.mxu0 0.0
      %1344 = vmatprep.subr.mxu0 0.0
      %1345 = vmatpush1.msra.mxu0 0.0
      %1346 = vmatprep.subr.mxu0 0.0
      %1347 = vmatpush1.msra.mxu0 0.0
      %1348 = vmatprep.subr.mxu0 0.0
      %1349 = vmatpush1.msra.mxu0 0.0
      %1350 = vmatprep.subr.mxu0 0.0
      %1351 = vmatpush1.msra.mxu0 0.0
      %1352 = vmatprep.subr.mxu0 0.0
      %1353 = vmatpush1.msra.mxu0 0.0
      %1354 = vmatprep.subr.mxu0 0.0
      %1355 = vmatpush1.msra.mxu0 0.0
      %1356 = vmatprep.subr.mxu0 0.0
      %1357 = vmatpush1.msra.mxu0 0.0
      %1358 = vmatprep.subr.mxu0 0.0
      %1359 = vmatpush1.msra.mxu0 0.0
      %1360 = vmatprep.subr.mxu0 0.0
      %1361 = vmatpush1.msra.mxu0 0.0
      %1362 = vmatprep.subr.mxu0 0.0
      %1363 = vmatpush1.msra.mxu0 0.0
      %1364 = vmatprep.subr.mxu0 0.0
      %1365 = vmatpush1.msra.mxu0 0.0
      %1366 = vmatprep.subr.mxu0 0.0
      %1367 = vmatpush1.msra.mxu0 0.0
      %1368 = vmatprep.subr.mxu0 0.0
      %1369 = vmatpush1.msra.mxu0 0.0
      %1370 = vmatprep.subr.mxu0 0.0
      %1371 = vmatpush1.msra.mxu0 0.0
      %1372 = vmatprep.subr.mxu0 0.0
      %1373 = vmatpush1.msra.mxu0 0.0
      %1374 = vmatprep.subr.mxu0 0.0
      %1375 = vmatpush1.msra.mxu0 0.0
      %1376 = vmatprep.subr.mxu0 0.0
      %1377 = vmatpush1.msra.mxu0 0.0
      %1378 = vmatprep.subr.mxu0 0.0
      %1379 = vmatpush1.msra.mxu0 0.0
      %1380 = vmatprep.subr.mxu0 0.0
      %1381 = vmatpush1.msra.mxu0 0.0
      %1382 = vmatprep.subr.mxu0 0.0
      %1383 = vmatpush1.msra.mxu0 0.0
      %1384 = vmatprep.subr.mxu0 0.0
      %1385 = vmatpush1.msra.mxu0 0.0
      %1386 = vmatprep.subr.mxu0 0.0
      %1387 = vmatpush1.msra.mxu0 0.0
      %1388 = vmatprep.subr.mxu0 0.0
      %1389 = vmatpush1.msra.mxu0 0.0
      %1390 = vmatprep.subr.mxu0 0.0
      %1391 = vmatpush1.msra.mxu0 0.0
      %1392 = vmatprep.subr.mxu0 0.0
      %1393 = vmatpush1.msra.mxu0 0.0
      %1394 = vmatprep.subr.mxu0 0.0
      %1395 = vmatpush1.msra.mxu0 0.0
      %1396 = vmatprep.mubr.f32.mxu0 0.0
      %1397 = vmatmul.mubr.f32.gmra.mrb[0].mxu0 %v775
      %v1398 = vpop.f32.mrb[0].mxu0
      %v1399 = vadd.f32 0.0, %v1398
      %v1400 = vpop.f32.mrb[0].mxu0
      %1401 = vmatprep.mubr.f32.mxu0 0.0
      %1402 = vmatmul.mubr.f32.gmra.mrb[0].mxu0 %v778
      %v1403 = vpop.f32.mrb[0].mxu0
      %v1404 = vadd.f32 0.0, %v1403
      %v1405 = vpop.f32.mrb[0].mxu0
      %1406 = vmatprep.mubr.f32.mxu0 0.0
      %1407 = vmatmul.mubr.f32.gmra.mrb[0].mxu0 %v781
      %v1408 = vpop.f32.mrb[0].mxu0
      %v1409 = vadd.f32 0.0, %v1408
      %v1410 = vpop.f32.mrb[0].mxu0
      %1411 = vmatprep.mubr.f32.mxu0 0.0
      %1412 = vmatmul.mubr.f32.gmra.mrb[0].mxu0 %v784
      %v1413 = vpop.f32.mrb[0].mxu0
      %v1414 = vadd.f32 0.0, %v1413
      %v1415 = vpop.f32.mrb[0].mxu0
      %1416 = vmatprep.mubr.f32.mxu0 0.0
      %1417 = vmatmul.mubr.f32.gmra.mrb[0].mxu0 %v787
      %v1418 = vpop.f32.mrb[0].mxu0
      %v1419 = vadd.f32 0.0, %v1418
      %v1420 = vpop.f32.mrb[0].mxu0
      %1421 = vmatprep.mubr.f32.mxu0 0.0
      %1422 = vmatmul.mubr.f32.gmra.mrb[0].mxu0 %v790
      %v1423 = vpop.f32.mrb[0].mxu0
      %v1424 = vadd.f32 0.0, %v1423
      %v1425 = vpop.f32.mrb[0].mxu0
      %1426 = vmatprep.mubr.f32.mxu0 0.0
      %1427 = vmatmul.mubr.f32.gmra.mrb[0].mxu0 %v793
      %v1428 = vpop.f32.mrb[0].mxu0
      %v1429 = vadd.f32 0.0, %v1428
      %v1430 = vpop.f32.mrb[0].mxu0
      %1431 = vmatprep.mubr.f32.mxu0 0.0
      %1432 = vmatmul.mubr.f32.gmra.mrb[0].mxu0 %v796
      %v1433 = vpop.f32.mrb[0].mxu0
      %v1434 = vadd.f32 0.0, %v1433
      %v1435 = vpop.f32.mrb[0].mxu0
      %1436 = vmatprep.mubr.f32.mxu0 0.0
      %1437 = vmatmul.mubr.f32.gmra.mrb[0].mxu0 %v799
      %v1438 = vpop.f32.mrb[0].mxu0
      %v1439 = vadd.f32 0.0, %v1438
      %v1440 = vpop.f32.mrb[0].mxu0
      %1441 = vmatprep.mubr.f32.mxu0 0.0
      %1442 = vmatmul.mubr.f32.gmra.mrb[0].mxu0 %v802
      %v1443 = vpop.f32.mrb[0].mxu0
      %v1444 = vadd.f32 0.0, %v1443
      %v1445 = vpop.f32.mrb[0].mxu0
      %1446 = vmatprep.mubr.f32.mxu0 0.0
      %1447 = vmatmul.mubr.f32.gmra.mrb[0].mxu0 %v805
      %v1448 = vpop.f32.mrb[0].mxu0
      %v1449 = vadd.f32 0.0, %v1448
      %v1450 = vpop.f32.mrb[0].mxu0
      %1451 = vmatprep.mubr.f32.mxu0 0.0
      %1452 = vmatmul.mubr.f32.gmra.mrb[0].mxu0 %v808
      %v1453 = vpop.f32.mrb[0].mxu0
      %v1454 = vadd.f32 0.0, %v1453
      %v1455 = vpop.f32.mrb[0].mxu0
      %1456 = vmatprep.mubr.f32.mxu0 0.0
      %1457 = vmatmul.mubr.f32.gmra.mrb[0].mxu0 %v811
      %v1458 = vpop.f32.mrb[0].mxu0
      %v1459 = vadd.f32 0.0, %v1458
      %v1460 = vpop.f32.mrb[0].mxu0
      %1461 = vmatprep.mubr.f32.mxu0 0.0
      %1462 = vmatmul.mubr.f32.gmra.mrb[0].mxu0 %v814
      %v1463 = vpop.f32.mrb[0].mxu0
      %v1464 = vadd.f32 0.0, %v1463
      %v1465 = vpop.f32.mrb[0].mxu0
      %1466 = vmatprep.mubr.f32.mxu0 0.0
      %1467 = vmatmul.mubr.f32.gmra.mrb[0].mxu0 %v817
      %v1468 = vpop.f32.mrb[0].mxu0
      %v1469 = vadd.f32 0.0, %v1468
      %v1470 = vpop.f32.mrb[0].mxu0
      %1471 = vmatprep.mubr.f32.mxu0 0.0
      %1472 = vmatmul.mubr.f32.gmra.mrb[0].mxu0 %v820
      %v1473 = vpop.f32.mrb[0].mxu0
      %v1474 = vadd.f32 0.0, %v1473
      %v1475 = vpop.f32.mrb[0].mxu0
      %1476 = vmatprep.mubr.f32.mxu0 0.0
      %1477 = vmatmul.mubr.f32.gmra.mrb[0].mxu0 %v823
      %v1478 = vpop.f32.mrb[0].mxu0
      %v1479 = vadd.f32 0.0, %v1478
      %v1480 = vpop.f32.mrb[0].mxu0
      %1481 = vmatprep.mubr.f32.mxu0 0.0
      %1482 = vmatmul.mubr.f32.gmra.mrb[0].mxu0 %v826
      %v1483 = vpop.f32.mrb[0].mxu0
      %v1484 = vadd.f32 0.0, %v1483
      %v1485 = vpop.f32.mrb[0].mxu0
      %1486 = vmatprep.mubr.f32.mxu0 0.0
      %1487 = vmatmul.mubr.f32.gmra.mrb[0].mxu0 %v829
      %v1488 = vpop.f32.mrb[0].mxu0
      %v1489 = vadd.f32 0.0, %v1488
      %v1490 = vpop.f32.mrb[0].mxu0
      %1491 = vmatprep.mubr.f32.mxu0 0.0
      %1492 = vmatmul.mubr.f32.gmra.mrb[0].mxu0 %v832
      %v1493 = vpop.f32.mrb[0].mxu0
      %v1494 = vadd.f32 0.0, %v1493
      %v1495 = vpop.f32.mrb[0].mxu0
      %1496 = vmatprep.mubr.f32.mxu0 0.0
      %1497 = vmatmul.mubr.f32.gmra.mrb[0].mxu0 %v835
      %v1498 = vpop.f32.mrb[0].mxu0
      %v1499 = vadd.f32 0.0, %v1498
      %v1500 = vpop.f32.mrb[0].mxu0
      %1501 = vmatprep.mubr.f32.mxu0 0.0
      %1502 = vmatmul.mubr.f32.gmra.mrb[0].mxu0 %v838
      %v1503 = vpop.f32.mrb[0].mxu0
      %v1504 = vadd.f32 0.0, %v1503
      %v1505 = vpop.f32.mrb[0].mxu0
      %1506 = vmatprep.mubr.f32.mxu0 0.0
      %1507 = vmatmul.mubr.f32.gmra.mrb[0].mxu0 %v841
      %v1508 = vpop.f32.mrb[0].mxu0
      %v1509 = vadd.f32 0.0, %v1508
      %v1510 = vpop.f32.mrb[0].mxu0
      %1511 = vmatprep.mubr.f32.mxu0 0.0
      %1512 = vmatmul.mubr.f32.gmra.mrb[0].mxu0 %v844
      %v1513 = vpop.f32.mrb[0].mxu0
      %v1514 = vadd.f32 0.0, %v1513
      %v1515 = vpop.f32.mrb[0].mxu0
      %1516 = vmatprep.mubr.f32.mxu0 0.0
      %1517 = vmatmul.mubr.f32.gmra.mrb[0].mxu0 %v847
      %v1518 = vpop.f32.mrb[0].mxu0
      %v1519 = vadd.f32 0.0, %v1518
      %v1520 = vpop.f32.mrb[0].mxu0
      %1521 = vmatprep.mubr.f32.mxu0 0.0
      %1522 = vmatmul.mubr.f32.gmra.mrb[0].mxu0 %v850
      %v1523 = vpop.f32.mrb[0].mxu0
      %v1524 = vadd.f32 0.0, %v1523
      %v1525 = vpop.f32.mrb[0].mxu0
      %1526 = vmatprep.mubr.f32.mxu0 0.0
      %1527 = vmatmul.mubr.f32.gmra.mrb[0].mxu0 %v853
      %v1528 = vpop.f32.mrb[0].mxu0
      %v1529 = vadd.f32 0.0, %v1528
      %v1530 = vpop.f32.mrb[0].mxu0
      %1531 = vmatprep.mubr.f32.mxu0 0.0
      %1532 = vmatmul.mubr.f32.gmra.mrb[0].mxu0 %v856
      %v1533 = vpop.f32.mrb[0].mxu0
      %v1534 = vadd.f32 0.0, %v1533
      %v1535 = vpop.f32.mrb[0].mxu0
      %1536 = vmatprep.mubr.f32.mxu0 0.0
      %1537 = vmatmul.mubr.f32.gmra.mrb[0].mxu0 %v859
      %v1538 = vpop.f32.mrb[0].mxu0
      %v1539 = vadd.f32 0.0, %v1538
      %v1540 = vpop.f32.mrb[0].mxu0
      %1541 = vmatprep.mubr.f32.mxu0 0.0
      %1542 = vmatmul.mubr.f32.gmra.mrb[0].mxu0 %v862
      %v1543 = vpop.f32.mrb[0].mxu0
      %v1544 = vadd.f32 0.0, %v1543
      %v1545 = vpop.f32.mrb[0].mxu0
      %1546 = vmatprep.mubr.f32.mxu0 0.0
      %1547 = vmatmul.mubr.f32.gmra.mrb[0].mxu0 %v1094
      %v1548 = vpop.f32.mrb[0].mxu0
      %v1549 = vadd.f32 0.0, %v1548
      %v1550 = vpop.f32.mrb[0].mxu0
      %1551 = vmatprep.mubr.f32.mxu0 0.0
      %1552 = vmatmul.mubr.f32.gmra.mrb[0].mxu0 %v1097
      %v1553 = vpop.f32.mrb[0].mxu0
      %v1554 = vadd.f32 0.0, %v1553
      %v1555 = vpop.f32.mrb[0].mxu0
      %1556 = vdwg.mxu0
      %v1557 = vadd.f32 %v1169, %v1399
      %v1558 = vadd.f32 %v1174, %v1404
      %v1559 = vadd.f32 %v1179, %v1409
      %v1560 = vadd.f32 %v1184, %v1414
      %v1561 = vadd.f32 %v1189, %v1419
      %v1562 = vadd.f32 %v1194, %v1424
      %v1563 = vadd.f32 %v1199, %v1429
      %v1564 = vadd.f32 %v1204, %v1434
      %v1565 = vadd.f32 %v1209, %v1439
      %v1566 = vadd.f32 %v1214, %v1444
      %v1567 = vadd.f32 %v1219, %v1449
      %v1568 = vadd.f32 %v1224, %v1454
      %v1569 = vadd.f32 %v1229, %v1459
      %v1570 = vadd.f32 %v1234, %v1464
      %v1571 = vadd.f32 %v1239, %v1469
      %v1572 = vadd.f32 %v1244, %v1474
      %v1573 = vadd.f32 %v1249, %v1479
      %v1574 = vadd.f32 %v1254, %v1484
      %v1575 = vadd.f32 %v1259, %v1489
      %v1576 = vadd.f32 %v1264, %v1494
      %v1577 = vadd.f32 %v1269, %v1499
      %v1578 = vadd.f32 %v1274, %v1504
      %v1579 = vadd.f32 %v1279, %v1509
      %v1580 = vadd.f32 %v1284, %v1514
      %v1581 = vadd.f32 %v1289, %v1519
      %v1582 = vadd.f32 %v1294, %v1524
      %v1583 = vadd.f32 %v1299, %v1529
      %v1584 = vadd.f32 %v1304, %v1534
      %v1585 = vadd.f32 %v1309, %v1539
      %v1586 = vadd.f32 %v1314, %v1544
      %v1587 = vadd.f32 %v1319, %v1549
      %v1588 = vadd.f32 %v1324, %v1554
      %v1589 = vld [vmem:[%s2] sm:$0x1]
      %v1591 = vlaneseq
      %v1592 = vshrl.u32 %v1591, 7
      %v1593 = vsub.s32 0, %v1592
      %v1594 = vrot.slane %v1589, %v1593
      %v1596 = vadd.f32 %v1557, %v1594
      %v1597 = vadd.f32 %v1558, %v1594
      %v1598 = vadd.f32 %v1559, %v1594
      %v1599 = vadd.f32 %v1560, %v1594
      %v1600 = vadd.f32 %v1561, %v1594
      %v1601 = vadd.f32 %v1562, %v1594
      %v1602 = vadd.f32 %v1563, %v1594
      %v1603 = vadd.f32 %v1564, %v1594
      %v1604 = vadd.f32 %v1565, %v1594
      %v1605 = vadd.f32 %v1566, %v1594
      %v1606 = vadd.f32 %v1567, %v1594
      %v1607 = vadd.f32 %v1568, %v1594
      %v1608 = vadd.f32 %v1569, %v1594
      %v1609 = vadd.f32 %v1570, %v1594
      %v1610 = vadd.f32 %v1571, %v1594
      %v1611 = vadd.f32 %v1572, %v1594
      %v1612 = vadd.f32 %v1573, %v1594
      %v1613 = vadd.f32 %v1574, %v1594
      %v1614 = vadd.f32 %v1575, %v1594
      %v1615 = vadd.f32 %v1576, %v1594
      %v1616 = vadd.f32 %v1577, %v1594
      %v1617 = vadd.f32 %v1578, %v1594
      %v1618 = vadd.f32 %v1579, %v1594
      %v1619 = vadd.f32 %v1580, %v1594
      %v1620 = vadd.f32 %v1581, %v1594
      %v1621 = vadd.f32 %v1582, %v1594
      %v1622 = vadd.f32 %v1583, %v1594
      %v1623 = vadd.f32 %v1584, %v1594
      %v1624 = vadd.f32 %v1585, %v1594
      %v1625 = vadd.f32 %v1586, %v1594
      %v1626 = vadd.f32 %v1587, %v1594
      %v1627 = vadd.f32 %v1588, %v1594
      %v1628 = vmax.f32 %v1596, 0.0
      %v1629 = vmax.f32 %v1597, 0.0
      %v1630 = vmax.f32 %v1598, 0.0
      %v1631 = vmax.f32 %v1599, 0.0
      %v1632 = vmax.f32 %v1600, 0.0
      %v1633 = vmax.f32 %v1601, 0.0
      %v1634 = vmax.f32 %v1602, 0.0
      %v1635 = vmax.f32 %v1603, 0.0
      %v1636 = vmax.f32 %v1604, 0.0
      %v1637 = vmax.f32 %v1605, 0.0
      %v1638 = vmax.f32 %v1606, 0.0
      %v1639 = vmax.f32 %v1607, 0.0
      %v1640 = vmax.f32 %v1608, 0.0
      %v1641 = vmax.f32 %v1609, 0.0
      %v1642 = vmax.f32 %v1610, 0.0
      %v1643 = vmax.f32 %v1611, 0.0
      %v1644 = vmax.f32 %v1612, 0.0
      %v1645 = vmax.f32 %v1613, 0.0
      %v1646 = vmax.f32 %v1614, 0.0
      %v1647 = vmax.f32 %v1615, 0.0
      %v1648 = vmax.f32 %v1616, 0.0
      %v1649 = vmax.f32 %v1617, 0.0
      %v1650 = vmax.f32 %v1618, 0.0
      %v1651 = vmax.f32 %v1619, 0.0
      %v1652 = vmax.f32 %v1620, 0.0
      %v1653 = vmax.f32 %v1621, 0.0
      %v1654 = vmax.f32 %v1622, 0.0
      %v1655 = vmax.f32 %v1623, 0.0
      %v1656 = vmax.f32 %v1624, 0.0
      %v1657 = vmax.f32 %v1625, 0.0
      %v1658 = vmax.f32 %v1626, 0.0
      %v1659 = vmax.f32 %v1627, 0.0
      %v1690 = vrot.slane %v1628, 7
      %v1691 = vrot.slane %v1629, 7
      %v1692 = vsel %vm286, %v1690, %v1691
      %v1693 = vrot.slane %v1630, 7
      %v1694 = vrot.slane %v1631, 7
      %v1695 = vsel %vm286, %v1693, %v1694
      %v1696 = vrot.slane %v1632, 7
      %v1697 = vrot.slane %v1633, 7
      %v1698 = vsel %vm286, %v1696, %v1697
      %v1699 = vrot.slane %v1634, 7
      %v1700 = vrot.slane %v1635, 7
      %v1701 = vsel %vm286, %v1699, %v1700
      %v1702 = vrot.slane %v1636, 7
      %v1703 = vrot.slane %v1637, 7
      %v1704 = vsel %vm286, %v1702, %v1703
      %v1705 = vrot.slane %v1638, 7
      %v1706 = vrot.slane %v1639, 7
      %v1707 = vsel %vm286, %v1705, %v1706
      %v1708 = vrot.slane %v1640, 7
      %v1709 = vrot.slane %v1641, 7
      %v1710 = vsel %vm286, %v1708, %v1709
      %v1711 = vrot.slane %v1642, 7
      %v1712 = vrot.slane %v1643, 7
      %v1713 = vsel %vm286, %v1711, %v1712
      %v1714 = vrot.slane %v1644, 7
      %v1715 = vrot.slane %v1645, 7
      %v1716 = vsel %vm286, %v1714, %v1715
      %v1717 = vrot.slane %v1646, 7
      %v1718 = vrot.slane %v1647, 7
      %v1719 = vsel %vm286, %v1717, %v1718
      %v1720 = vrot.slane %v1648, 7
      %v1721 = vrot.slane %v1649, 7
      %v1722 = vsel %vm286, %v1720, %v1721
      %v1723 = vrot.slane %v1650, 7
      %v1724 = vrot.slane %v1651, 7
      %v1725 = vsel %vm286, %v1723, %v1724
      %v1726 = vrot.slane %v1652, 7
      %v1727 = vrot.slane %v1653, 7
      %v1728 = vsel %vm286, %v1726, %v1727
      %v1729 = vrot.slane %v1654, 7
      %v1730 = vrot.slane %v1655, 7
      %v1731 = vsel %vm286, %v1729, %v1730
      %v1732 = vrot.slane %v1656, 7
      %v1733 = vrot.slane %v1657, 7
      %v1734 = vsel %vm286, %v1732, %v1733
      %v1765 = vsel %vm286, 0.0, %v1690
      %v1766 = vsel %vm286, 0.0, %v1693
      %v1767 = vsel %vm286, 0.0, %v1696
      %v1768 = vsel %vm286, 0.0, %v1699
      %v1769 = vsel %vm286, 0.0, %v1702
      %v1770 = vsel %vm286, 0.0, %v1705
      %v1771 = vsel %vm286, 0.0, %v1708
      %v1772 = vsel %vm286, 0.0, %v1711
      %v1773 = vsel %vm286, 0.0, %v1714
      %v1774 = vsel %vm286, 0.0, %v1717
      %v1775 = vsel %vm286, 0.0, %v1720
      %v1776 = vsel %vm286, 0.0, %v1723
      %v1777 = vsel %vm286, 0.0, %v1726
      %v1778 = vsel %vm286, 0.0, %v1729
      %v1779 = vsel %vm286, 0.0, %v1732
      %v1780 = vrot.slane %v1628, 1
      %v1781 = vrot.slane %v1629, 1
      %v1782 = vsel %vm382, %v1780, %v1781
      %v1783 = vrot.slane %v1630, 1
      %v1784 = vrot.slane %v1631, 1
      %v1785 = vsel %vm382, %v1783, %v1784
      %v1786 = vrot.slane %v1632, 1
      %v1787 = vrot.slane %v1633, 1
      %v1788 = vsel %vm382, %v1786, %v1787
      %v1789 = vrot.slane %v1634, 1
      %v1790 = vrot.slane %v1635, 1
      %v1791 = vsel %vm382, %v1789, %v1790
      %v1792 = vrot.slane %v1636, 1
      %v1793 = vrot.slane %v1637, 1
      %v1794 = vsel %vm382, %v1792, %v1793
      %v1795 = vrot.slane %v1638, 1
      %v1796 = vrot.slane %v1639, 1
      %v1797 = vsel %vm382, %v1795, %v1796
      %v1798 = vrot.slane %v1640, 1
      %v1799 = vrot.slane %v1641, 1
      %v1800 = vsel %vm382, %v1798, %v1799
      %v1801 = vrot.slane %v1642, 1
      %v1802 = vrot.slane %v1643, 1
      %v1803 = vsel %vm382, %v1801, %v1802
      %v1804 = vrot.slane %v1644, 1
      %v1805 = vrot.slane %v1645, 1
      %v1806 = vsel %vm382, %v1804, %v1805
      %v1807 = vrot.slane %v1646, 1
      %v1808 = vrot.slane %v1647, 1
      %v1809 = vsel %vm382, %v1807, %v1808
      %v1810 = vrot.slane %v1648, 1
      %v1811 = vrot.slane %v1649, 1
      %v1812 = vsel %vm382, %v1810, %v1811
      %v1813 = vrot.slane %v1650, 1
      %v1814 = vrot.slane %v1651, 1
      %v1815 = vsel %vm382, %v1813, %v1814
      %v1816 = vrot.slane %v1652, 1
      %v1817 = vrot.slane %v1653, 1
      %v1818 = vsel %vm382, %v1816, %v1817
      %v1819 = vrot.slane %v1654, 1
      %v1820 = vrot.slane %v1655, 1
      %v1821 = vsel %vm382, %v1819, %v1820
      %v1822 = vrot.slane %v1656, 1
      %v1823 = vrot.slane %v1657, 1
      %v1824 = vsel %vm382, %v1822, %v1823
      %v1840 = vsel %vm382, %v1781, 0.0
      %v1841 = vsel %vm382, %v1784, 0.0
      %v1842 = vsel %vm382, %v1787, 0.0
      %v1843 = vsel %vm382, %v1790, 0.0
      %v1844 = vsel %vm382, %v1793, 0.0
      %v1845 = vsel %vm382, %v1796, 0.0
      %v1846 = vsel %vm382, %v1799, 0.0
      %v1847 = vsel %vm382, %v1802, 0.0
      %v1848 = vsel %vm382, %v1805, 0.0
      %v1849 = vsel %vm382, %v1808, 0.0
      %v1850 = vsel %vm382, %v1811, 0.0
      %v1851 = vsel %vm382, %v1814, 0.0
      %v1852 = vsel %vm382, %v1817, 0.0
      %v1853 = vsel %vm382, %v1820, 0.0
      %v1854 = vsel %vm382, %v1823, 0.0
      %1855 = vrot.lane.b32.xlu0 0.0, 8
      %v1856 = vpop.permute.xlu0 %1855
      %1857 = vrot.lane.b32.xlu0 %v1628, 8
      %v1858 = vpop.permute.xlu0 %1857
      %1859 = vrot.lane.b32.xlu0 %v1629, 8
      %v1860 = vpop.permute.xlu0 %1859
      %1861 = vrot.lane.b32.xlu0 %v1630, 8
      %v1862 = vpop.permute.xlu0 %1861
      %1863 = vrot.lane.b32.xlu0 %v1631, 8
      %v1864 = vpop.permute.xlu0 %1863
      %1865 = vrot.lane.b32.xlu0 %v1632, 8
      %v1866 = vpop.permute.xlu0 %1865
      %1867 = vrot.lane.b32.xlu0 %v1633, 8
      %v1868 = vpop.permute.xlu0 %1867
      %1869 = vrot.lane.b32.xlu0 %v1634, 8
      %v1870 = vpop.permute.xlu0 %1869
      %1871 = vrot.lane.b32.xlu0 %v1635, 8
      %v1872 = vpop.permute.xlu0 %1871
      %1873 = vrot.lane.b32.xlu0 %v1636, 8
      %v1874 = vpop.permute.xlu0 %1873
      %1875 = vrot.lane.b32.xlu0 %v1637, 8
      %v1876 = vpop.permute.xlu0 %1875
      %1877 = vrot.lane.b32.xlu0 %v1638, 8
      %v1878 = vpop.permute.xlu0 %1877
      %1879 = vrot.lane.b32.xlu0 %v1639, 8
      %v1880 = vpop.permute.xlu0 %1879
      %1881 = vrot.lane.b32.xlu0 %v1640, 8
      %v1882 = vpop.permute.xlu0 %1881
      %1883 = vrot.lane.b32.xlu0 %v1641, 8
      %v1884 = vpop.permute.xlu0 %1883
      %1885 = vrot.lane.b32.xlu0 %v1642, 8
      %v1886 = vpop.permute.xlu0 %1885
      %1887 = vrot.lane.b32.xlu0 %v1643, 8
      %v1888 = vpop.permute.xlu0 %1887
      %1889 = vrot.lane.b32.xlu0 %v1644, 8
      %v1890 = vpop.permute.xlu0 %1889
      %1891 = vrot.lane.b32.xlu0 %v1645, 8
      %v1892 = vpop.permute.xlu0 %1891
      %1893 = vrot.lane.b32.xlu0 %v1646, 8
      %v1894 = vpop.permute.xlu0 %1893
      %1895 = vrot.lane.b32.xlu0 %v1647, 8
      %v1896 = vpop.permute.xlu0 %1895
      %1897 = vrot.lane.b32.xlu0 %v1648, 8
      %v1898 = vpop.permute.xlu0 %1897
      %1899 = vrot.lane.b32.xlu0 %v1649, 8
      %v1900 = vpop.permute.xlu0 %1899
      %1901 = vrot.lane.b32.xlu0 %v1650, 8
      %v1902 = vpop.permute.xlu0 %1901
      %1903 = vrot.lane.b32.xlu0 %v1651, 8
      %v1904 = vpop.permute.xlu0 %1903
      %1905 = vrot.lane.b32.xlu0 %v1652, 8
      %v1906 = vpop.permute.xlu0 %1905
      %1907 = vrot.lane.b32.xlu0 %v1653, 8
      %v1908 = vpop.permute.xlu0 %1907
      %1909 = vrot.lane.b32.xlu0 %v1654, 8
      %v1910 = vpop.permute.xlu0 %1909
      %1911 = vrot.lane.b32.xlu0 %v1655, 8
      %v1912 = vpop.permute.xlu0 %1911
      %1913 = vrot.lane.b32.xlu0 %v1656, 8
      %v1914 = vpop.permute.xlu0 %1913
      %1915 = vrot.lane.b32.xlu0 %v1657, 8
      %v1916 = vpop.permute.xlu0 %1915
      %1963 = vrot.lane.b32.xlu0 %v384, 16
      %v1964 = vpop.permute.xlu0 %1963
      %1965 = vrot.lane.b32.xlu0 %v446, 16
      %v1966 = vpop.permute.xlu0 %1965
      %1967 = vrot.lane.b32.xlu0 %v1782, 16
      %v1968 = vpop.permute.xlu0 %1967
      %1969 = vrot.lane.b32.xlu0 %v1840, 16
      %v1970 = vpop.permute.xlu0 %1969
      %1971 = vrot.lane.b32.xlu0 %v1785, 16
      %v1972 = vpop.permute.xlu0 %1971
      %1973 = vrot.lane.b32.xlu0 %v1841, 16
      %v1974 = vpop.permute.xlu0 %1973
      %1975 = vrot.lane.b32.xlu0 %v1788, 16
      %v1976 = vpop.permute.xlu0 %1975
      %1977 = vrot.lane.b32.xlu0 %v1842, 16
      %v1978 = vpop.permute.xlu0 %1977
      %1979 = vrot.lane.b32.xlu0 %v1791, 16
      %v1980 = vpop.permute.xlu0 %1979
      %1981 = vrot.lane.b32.xlu0 %v1843, 16
      %v1982 = vpop.permute.xlu0 %1981
      %1983 = vrot.lane.b32.xlu0 %v1794, 16
      %v1984 = vpop.permute.xlu0 %1983
      %1985 = vrot.lane.b32.xlu0 %v1844, 16
      %v1986 = vpop.permute.xlu0 %1985
      %1987 = vrot.lane.b32.xlu0 %v1797, 16
      %v1988 = vpop.permute.xlu0 %1987
      %1989 = vrot.lane.b32.xlu0 %v1845, 16
      %v1990 = vpop.permute.xlu0 %1989
      %1991 = vrot.lane.b32.xlu0 %v1800, 16
      %v1992 = vpop.permute.xlu0 %1991
      %1993 = vrot.lane.b32.xlu0 %v1846, 16
      %v1994 = vpop.permute.xlu0 %1993
      %1995 = vrot.lane.b32.xlu0 %v1803, 16
      %v1996 = vpop.permute.xlu0 %1995
      %1997 = vrot.lane.b32.xlu0 %v1847, 16
      %v1998 = vpop.permute.xlu0 %1997
      %1999 = vrot.lane.b32.xlu0 %v1806, 16
      %v2000 = vpop.permute.xlu0 %1999
      %2001 = vrot.lane.b32.xlu0 %v1848, 16
      %v2002 = vpop.permute.xlu0 %2001
      %2003 = vrot.lane.b32.xlu0 %v1809, 16
      %v2004 = vpop.permute.xlu0 %2003
      %2005 = vrot.lane.b32.xlu0 %v1849, 16
      %v2006 = vpop.permute.xlu0 %2005
      %2007 = vrot.lane.b32.xlu0 %v1812, 16
      %v2008 = vpop.permute.xlu0 %2007
      %2009 = vrot.lane.b32.xlu0 %v1850, 16
      %v2010 = vpop.permute.xlu0 %2009
      %2011 = vrot.lane.b32.xlu0 %v1815, 16
      %v2012 = vpop.permute.xlu0 %2011
      %2013 = vrot.lane.b32.xlu0 %v1851, 16
      %v2014 = vpop.permute.xlu0 %2013
      %2015 = vrot.lane.b32.xlu0 %v1818, 16
      %v2016 = vpop.permute.xlu0 %2015
      %2017 = vrot.lane.b32.xlu0 %v1852, 16
      %v2018 = vpop.permute.xlu0 %2017
      %2019 = vrot.lane.b32.xlu0 %v1821, 16
      %v2020 = vpop.permute.xlu0 %2019
      %2021 = vrot.lane.b32.xlu0 %v1853, 16
      %v2022 = vpop.permute.xlu0 %2021
      %2023 = vrot.lane.b32.xlu0 %v1824, 16
      %v2024 = vpop.permute.xlu0 %2023
      %2025 = vrot.lane.b32.xlu0 %v1854, 16
      %v2026 = vpop.permute.xlu0 %2025
      %v2059 = vsel %vm700, %v366, %v1856
      %v2060 = vsel %vm700, %v288, %v1856
      %v2061 = vsel %vm700, %v1765, %v1858
      %v2062 = vsel %vm700, %v1692, %v1860
      %v2063 = vsel %vm700, %v1766, %v1862
      %v2064 = vsel %vm700, %v1695, %v1864
      %v2065 = vsel %vm700, %v1767, %v1866
      %v2066 = vsel %vm700, %v1698, %v1868
      %v2067 = vsel %vm700, %v1768, %v1870
      %v2068 = vsel %vm700, %v1701, %v1872
      %v2069 = vsel %vm700, %v1769, %v1874
      %v2070 = vsel %vm700, %v1704, %v1876
      %v2071 = vsel %vm700, %v1770, %v1878
      %v2072 = vsel %vm700, %v1707, %v1880
      %v2073 = vsel %vm700, %v1771, %v1882
      %v2074 = vsel %vm700, %v1710, %v1884
      %v2075 = vsel %vm700, %v1772, %v1886
      %v2076 = vsel %vm700, %v1713, %v1888
      %v2077 = vsel %vm700, %v1773, %v1890
      %v2078 = vsel %vm700, %v1716, %v1892
      %v2079 = vsel %vm700, %v1774, %v1894
      %v2080 = vsel %vm700, %v1719, %v1896
      %v2081 = vsel %vm700, %v1775, %v1898
      %v2082 = vsel %vm700, %v1722, %v1900
      %v2083 = vsel %vm700, %v1776, %v1902
      %v2084 = vsel %vm700, %v1725, %v1904
      %v2085 = vsel %vm700, %v1777, %v1906
      %v2086 = vsel %vm700, %v1728, %v1908
      %v2087 = vsel %vm700, %v1778, %v1910
      %v2088 = vsel %vm700, %v1731, %v1912
      %v2089 = vsel %vm700, %v1779, %v1914
      %v2090 = vsel %vm700, %v1734, %v1916
      %vm2091 = vcmask 130048
      %v2092 = vsel %vm2091, %v2059, %v1964
      %v2093 = vsel %vm2091, %v2060, %v1966
      %v2094 = vsel %vm2091, %v2061, %v1968
      %v2095 = vsel %vm2091, %v2062, %v1970
      %v2096 = vsel %vm2091, %v2063, %v1972
      %v2097 = vsel %vm2091, %v2064, %v1974
      %v2098 = vsel %vm2091, %v2065, %v1976
      %v2099 = vsel %vm2091, %v2066, %v1978
      %v2100 = vsel %vm2091, %v2067, %v1980
      %v2101 = vsel %vm2091, %v2068, %v1982
      %v2102 = vsel %vm2091, %v2069, %v1984
      %v2103 = vsel %vm2091, %v2070, %v1986
      %v2104 = vsel %vm2091, %v2071, %v1988
      %v2105 = vsel %vm2091, %v2072, %v1990
      %v2106 = vsel %vm2091, %v2073, %v1992
      %v2107 = vsel %vm2091, %v2074, %v1994
      %v2108 = vsel %vm2091, %v2075, %v1996
      %v2109 = vsel %vm2091, %v2076, %v1998
      %v2110 = vsel %vm2091, %v2077, %v2000
      %v2111 = vsel %vm2091, %v2078, %v2002
      %v2112 = vsel %vm2091, %v2079, %v2004
      %v2113 = vsel %vm2091, %v2080, %v2006
      %v2114 = vsel %vm2091, %v2081, %v2008
      %v2115 = vsel %vm2091, %v2082, %v2010
      %v2116 = vsel %vm2091, %v2083, %v2012
      %v2117 = vsel %vm2091, %v2084, %v2014
      %v2118 = vsel %vm2091, %v2085, %v2016
      %v2119 = vsel %vm2091, %v2086, %v2018
      %v2120 = vsel %vm2091, %v2087, %v2020
      %v2121 = vsel %vm2091, %v2088, %v2022
      %v2122 = vsel %vm2091, %v2089, %v2024
      %v2123 = vsel %vm2091, %v2090, %v2026
      %v2124 = vld [vmem:[%s3] sm:$0xff]
      %v2125 = vld [vmem:[%s3 + $0x8] sm:$0xff]
      %v2126 = vld [vmem:[%s3 + $0x10] sm:$0xff]
      %v2129 = vrot.slane %v1658, 7
      %v2130 = vrot.slane %v1659, 7
      %v2131 = vsel %vm286, %v2129, %v2130
      %v2134 = vsel %vm286, 0.0, %v2129
      %v2135 = vrot.slane %v1658, 1
      %v2136 = vrot.slane %v1659, 1
      %v2137 = vsel %vm382, %v2135, %v2136
      %v2139 = vsel %vm382, %v2136, 0.0
      %2140 = vrot.lane.b32.xlu0 %v1658, 8
      %v2141 = vpop.permute.xlu0 %2140
      %2142 = vrot.lane.b32.xlu0 %v1659, 8
      %v2143 = vpop.permute.xlu0 %2142
      %2147 = vrot.lane.b32.xlu0 %v2137, 16
      %v2148 = vpop.permute.xlu0 %2147
      %2149 = vrot.lane.b32.xlu0 %v2139, 16
      %v2150 = vpop.permute.xlu0 %2149
      %v2153 = vsel %vm700, %v2134, %v2141
      %v2154 = vsel %vm700, %v2131, %v2143
      %v2155 = vsel %vm2091, %v2153, %v2148
      %v2156 = vsel %vm2091, %v2154, %v2150
      %v2157 = vld [vmem:[%s3 + $0x18] sm:$0xff]
      %v2158 = vld [vmem:[%s3 + $0x20] sm:$0xff]
      %v2159 = vld [vmem:[%s3 + $0x28] sm:$0xff]
      %vm2160 = vcmask 195584
      %v2162 = vsel %vm2160, %v2094, 0
      %v2165 = vsel %vm2160, %v2095, 0
      %v2168 = vsel %vm2160, %v2096, 0
      %v2171 = vsel %vm2160, %v2097, 0
      %v2174 = vsel %vm2160, %v2098, 0
      %v2177 = vsel %vm2160, %v2099, 0
      %v2180 = vsel %vm2160, %v2100, 0
      %v2183 = vsel %vm2160, %v2101, 0
      %v2186 = vsel %vm2160, %v2102, 0
      %v2189 = vsel %vm2160, %v2103, 0
      %v2192 = vsel %vm2160, %v2104, 0
      %v2195 = vsel %vm2160, %v2105, 0
      %v2198 = vsel %vm2160, %v2106, 0
      %v2201 = vsel %vm2160, %v2107, 0
      %v2204 = vsel %vm2160, %v2108, 0
      %v2207 = vsel %vm2160, %v2109, 0
      %v2210 = vsel %vm2160, %v2110, 0
      %v2213 = vsel %vm2160, %v2111, 0
      %v2216 = vsel %vm2160, %v2112, 0
      %v2219 = vsel %vm2160, %v2113, 0
      %v2222 = vsel %vm2160, %v2114, 0
      %v2225 = vsel %vm2160, %v2115, 0
      %v2228 = vsel %vm2160, %v2116, 0
      %v2231 = vsel %vm2160, %v2117, 0
      %v2234 = vsel %vm2160, %v2118, 0
      %v2237 = vsel %vm2160, %v2119, 0
      %v2240 = vsel %vm2160, %v2120, 0
      %v2243 = vsel %vm2160, %v2121, 0
      %v2246 = vsel %vm2160, %v2122, 0
      %v2249 = vsel %vm2160, %v2123, 0
      %v2252 = vsel %vm2160, %v2155, 0
      %v2255 = vsel %vm2160, %v2156, 0
      %2257 = vmatprep.subr.mxu0 0.0
      %2258 = vmatpush1.msra.mxu0 %v2157
      %2259 = vmatprep.subr.mxu0 0.0
      %2260 = vmatpush1.msra.mxu0 %v2158
      %2261 = vmatprep.subr.mxu0 0.0
      %2262 = vmatpush1.msra.mxu0 %v2159
      %2263 = vmatprep.subr.mxu0 0.0
      %2264 = vmatpush1.msra.mxu0 0.0
      %2265 = vmatprep.subr.mxu0 0.0
      %2266 = vmatpush1.msra.mxu0 0.0
      %2267 = vmatprep.subr.mxu0 0.0
      %2268 = vmatpush1.msra.mxu0 0.0
      %2269 = vmatprep.subr.mxu0 0.0
      %2270 = vmatpush1.msra.mxu0 0.0
      %2271 = vmatprep.subr.mxu0 0.0
      %2272 = vmatpush1.msra.mxu0 0.0
      %2273 = vmatprep.subr.mxu0 0.0
      %2274 = vmatpush1.msra.mxu0 0.0
      %2275 = vmatprep.subr.mxu0 0.0
      %2276 = vmatpush1.msra.mxu0 0.0
      %2277 = vmatprep.subr.mxu0 0.0
      %2278 = vmatpush1.msra.mxu0 0.0
      %2279 = vmatprep.subr.mxu0 0.0
      %2280 = vmatpush1.msra.mxu0 0.0
      %2281 = vmatprep.subr.mxu0 0.0
      %2282 = vmatpush1.msra.mxu0 0.0
      %2283 = vmatprep.subr.mxu0 0.0
      %2284 = vmatpush1.msra.mxu0 0.0
      %2285 = vmatprep.subr.mxu0 0.0
      %2286 = vmatpush1.msra.mxu0 0.0
      %2287 = vmatprep.subr.mxu0 0.0
      %2288 = vmatpush1.msra.mxu0 0.0
      %2289 = vmatprep.subr.mxu0 0.0
      %2290 = vmatpush1.msra.mxu0 0.0
      %2291 = vmatprep.subr.mxu0 0.0
      %2292 = vmatpush1.msra.mxu0 0.0
      %2293 = vmatprep.subr.mxu0 0.0
      %2294 = vmatpush1.msra.mxu0 0.0
      %2295 = vmatprep.subr.mxu0 0.0
      %2296 = vmatpush1.msra.mxu0 0.0
      %2297 = vmatprep.subr.mxu0 0.0
      %2298 = vmatpush1.msra.mxu0 0.0
      %2299 = vmatprep.subr.mxu0 0.0
      %2300 = vmatpush1.msra.mxu0 0.0
      %2301 = vmatprep.subr.mxu0 0.0
      %2302 = vmatpush1.msra.mxu0 0.0
      %2303 = vmatprep.subr.mxu0 0.0
      %2304 = vmatpush1.msra.mxu0 0.0
      %2305 = vmatprep.subr.mxu0 0.0
      %2306 = vmatpush1.msra.mxu0 0.0
      %2307 = vmatprep.subr.mxu0 0.0
      %2308 = vmatpush1.msra.mxu0 0.0
      %2309 = vmatprep.subr.mxu0 0.0
      %2310 = vmatpush1.msra.mxu0 0.0
      %2311 = vmatprep.subr.mxu0 0.0
      %2312 = vmatpush1.msra.mxu0 0.0
      %2313 = vmatprep.subr.mxu0 0.0
      %2314 = vmatpush1.msra.mxu0 0.0
      %2315 = vmatprep.subr.mxu0 0.0
      %2316 = vmatpush1.msra.mxu0 0.0
      %2317 = vmatprep.subr.mxu0 0.0
      %2318 = vmatpush1.msra.mxu0 0.0
      %2319 = vmatprep.subr.mxu0 0.0
      %2320 = vmatpush1.msra.mxu0 0.0
      %2321 = vmatprep.mubr.f32.mxu0 0.0
      %2322 = vmatmul.mubr.f32.gmra.mrb[0].mxu0 %v2162
      %v2323 = vpop.f32.mrb[0].mxu0
      %v2324 = vadd.f32 0.0, %v2323
      %v2325 = vpop.f32.mrb[0].mxu0
      %2326 = vmatprep.mubr.f32.mxu0 0.0
      %2327 = vmatmul.mubr.f32.gmra.mrb[0].mxu0 %v2165
      %v2328 = vpop.f32.mrb[0].mxu0
      %v2329 = vadd.f32 0.0, %v2328
      %v2330 = vpop.f32.mrb[0].mxu0
      %2331 = vmatprep.mubr.f32.mxu0 0.0
      %2332 = vmatmul.mubr.f32.gmra.mrb[0].mxu0 %v2168
      %v2333 = vpop.f32.mrb[0].mxu0
      %v2334 = vadd.f32 0.0, %v2333
      %v2335 = vpop.f32.mrb[0].mxu0
      %2336 = vmatprep.mubr.f32.mxu0 0.0
      %2337 = vmatmul.mubr.f32.gmra.mrb[0].mxu0 %v2171
      %v2338 = vpop.f32.mrb[0].mxu0
      %v2339 = vadd.f32 0.0, %v2338
      %v2340 = vpop.f32.mrb[0].mxu0
      %2341 = vmatprep.mubr.f32.mxu0 0.0
      %2342 = vmatmul.mubr.f32.gmra.mrb[0].mxu0 %v2174
      %v2343 = vpop.f32.mrb[0].mxu0
      %v2344 = vadd.f32 0.0, %v2343
      %v2345 = vpop.f32.mrb[0].mxu0
      %2346 = vmatprep.mubr.f32.mxu0 0.0
      %2347 = vmatmul.mubr.f32.gmra.mrb[0].mxu0 %v2177
      %v2348 = vpop.f32.mrb[0].mxu0
      %v2349 = vadd.f32 0.0, %v2348
      %v2350 = vpop.f32.mrb[0].mxu0
      %2351 = vmatprep.mubr.f32.mxu0 0.0
      %2352 = vmatmul.mubr.f32.gmra.mrb[0].mxu0 %v2180
      %v2353 = vpop.f32.mrb[0].mxu0
      %v2354 = vadd.f32 0.0, %v2353
      %v2355 = vpop.f32.mrb[0].mxu0
      %2356 = vmatprep.mubr.f32.mxu0 0.0
      %2357 = vmatmul.mubr.f32.gmra.mrb[0].mxu0 %v2183
      %v2358 = vpop.f32.mrb[0].mxu0
      %v2359 = vadd.f32 0.0, %v2358
      %v2360 = vpop.f32.mrb[0].mxu0
      %2361 = vmatprep.mubr.f32.mxu0 0.0
      %2362 = vmatmul.mubr.f32.gmra.mrb[0].mxu0 %v2186
      %v2363 = vpop.f32.mrb[0].mxu0
      %v2364 = vadd.f32 0.0, %v2363
      %v2365 = vpop.f32.mrb[0].mxu0
      %2366 = vmatprep.mubr.f32.mxu0 0.0
      %2367 = vmatmul.mubr.f32.gmra.mrb[0].mxu0 %v2189
      %v2368 = vpop.f32.mrb[0].mxu0
      %v2369 = vadd.f32 0.0, %v2368
      %v2370 = vpop.f32.mrb[0].mxu0
      %2371 = vmatprep.mubr.f32.mxu0 0.0
      %2372 = vmatmul.mubr.f32.gmra.mrb[0].mxu0 %v2192
      %v2373 = vpop.f32.mrb[0].mxu0
      %v2374 = vadd.f32 0.0, %v2373
      %v2375 = vpop.f32.mrb[0].mxu0
      %2376 = vmatprep.mubr.f32.mxu0 0.0
      %2377 = vmatmul.mubr.f32.gmra.mrb[0].mxu0 %v2195
      %v2378 = vpop.f32.mrb[0].mxu0
      %v2379 = vadd.f32 0.0, %v2378
      %v2380 = vpop.f32.mrb[0].mxu0
      %2381 = vmatprep.mubr.f32.mxu0 0.0
      %2382 = vmatmul.mubr.f32.gmra.mrb[0].mxu0 %v2198
      %v2383 = vpop.f32.mrb[0].mxu0
      %v2384 = vadd.f32 0.0, %v2383
      %v2385 = vpop.f32.mrb[0].mxu0
      %2386 = vmatprep.mubr.f32.mxu0 0.0
      %2387 = vmatmul.mubr.f32.gmra.mrb[0].mxu0 %v2201
      %v2388 = vpop.f32.mrb[0].mxu0
      %v2389 = vadd.f32 0.0, %v2388
      %v2390 = vpop.f32.mrb[0].mxu0
      %2391 = vmatprep.mubr.f32.mxu0 0.0
      %2392 = vmatmul.mubr.f32.gmra.mrb[0].mxu0 %v2204
      %v2393 = vpop.f32.mrb[0].mxu0
      %v2394 = vadd.f32 0.0, %v2393
      %v2395 = vpop.f32.mrb[0].mxu0
      %2396 = vmatprep.mubr.f32.mxu0 0.0
      %2397 = vmatmul.mubr.f32.gmra.mrb[0].mxu0 %v2207
      %v2398 = vpop.f32.mrb[0].mxu0
      %v2399 = vadd.f32 0.0, %v2398
      %v2400 = vpop.f32.mrb[0].mxu0
      %2401 = vmatprep.mubr.f32.mxu0 0.0
      %2402 = vmatmul.mubr.f32.gmra.mrb[0].mxu0 %v2210
      %v2403 = vpop.f32.mrb[0].mxu0
      %v2404 = vadd.f32 0.0, %v2403
      %v2405 = vpop.f32.mrb[0].mxu0
      %2406 = vmatprep.mubr.f32.mxu0 0.0
      %2407 = vmatmul.mubr.f32.gmra.mrb[0].mxu0 %v2213
      %v2408 = vpop.f32.mrb[0].mxu0
      %v2409 = vadd.f32 0.0, %v2408
      %v2410 = vpop.f32.mrb[0].mxu0
      %2411 = vmatprep.mubr.f32.mxu0 0.0
      %2412 = vmatmul.mubr.f32.gmra.mrb[0].mxu0 %v2216
      %v2413 = vpop.f32.mrb[0].mxu0
      %v2414 = vadd.f32 0.0, %v2413
      %v2415 = vpop.f32.mrb[0].mxu0
      %2416 = vmatprep.mubr.f32.mxu0 0.0
      %2417 = vmatmul.mubr.f32.gmra.mrb[0].mxu0 %v2219
      %v2418 = vpop.f32.mrb[0].mxu0
      %v2419 = vadd.f32 0.0, %v2418
      %v2420 = vpop.f32.mrb[0].mxu0
      %2421 = vmatprep.mubr.f32.mxu0 0.0
      %2422 = vmatmul.mubr.f32.gmra.mrb[0].mxu0 %v2222
      %v2423 = vpop.f32.mrb[0].mxu0
      %v2424 = vadd.f32 0.0, %v2423
      %v2425 = vpop.f32.mrb[0].mxu0
      %2426 = vmatprep.mubr.f32.mxu0 0.0
      %2427 = vmatmul.mubr.f32.gmra.mrb[0].mxu0 %v2225
      %v2428 = vpop.f32.mrb[0].mxu0
      %v2429 = vadd.f32 0.0, %v2428
      %v2430 = vpop.f32.mrb[0].mxu0
      %2431 = vmatprep.mubr.f32.mxu0 0.0
      %2432 = vmatmul.mubr.f32.gmra.mrb[0].mxu0 %v2228
      %v2433 = vpop.f32.mrb[0].mxu0
      %v2434 = vadd.f32 0.0, %v2433
      %v2435 = vpop.f32.mrb[0].mxu0
      %2436 = vmatprep.mubr.f32.mxu0 0.0
      %2437 = vmatmul.mubr.f32.gmra.mrb[0].mxu0 %v2231
      %v2438 = vpop.f32.mrb[0].mxu0
      %v2439 = vadd.f32 0.0, %v2438
      %v2440 = vpop.f32.mrb[0].mxu0
      %2441 = vmatprep.mubr.f32.mxu0 0.0
      %2442 = vmatmul.mubr.f32.gmra.mrb[0].mxu0 %v2234
      %v2443 = vpop.f32.mrb[0].mxu0
      %v2444 = vadd.f32 0.0, %v2443
      %v2445 = vpop.f32.mrb[0].mxu0
      %2446 = vmatprep.mubr.f32.mxu0 0.0
      %2447 = vmatmul.mubr.f32.gmra.mrb[0].mxu0 %v2237
      %v2448 = vpop.f32.mrb[0].mxu0
      %v2449 = vadd.f32 0.0, %v2448
      %v2450 = vpop.f32.mrb[0].mxu0
      %2451 = vmatprep.mubr.f32.mxu0 0.0
      %2452 = vmatmul.mubr.f32.gmra.mrb[0].mxu0 %v2240
      %v2453 = vpop.f32.mrb[0].mxu0
      %v2454 = vadd.f32 0.0, %v2453
      %v2455 = vpop.f32.mrb[0].mxu0
      %2456 = vmatprep.mubr.f32.mxu0 0.0
      %2457 = vmatmul.mubr.f32.gmra.mrb[0].mxu0 %v2243
      %v2458 = vpop.f32.mrb[0].mxu0
      %v2459 = vadd.f32 0.0, %v2458
      %v2460 = vpop.f32.mrb[0].mxu0
      %2461 = vmatprep.mubr.f32.mxu0 0.0
      %2462 = vmatmul.mubr.f32.gmra.mrb[0].mxu0 %v2246
      %v2463 = vpop.f32.mrb[0].mxu0
      %v2464 = vadd.f32 0.0, %v2463
      %v2465 = vpop.f32.mrb[0].mxu0
      %2466 = vmatprep.mubr.f32.mxu0 0.0
      %2467 = vmatmul.mubr.f32.gmra.mrb[0].mxu0 %v2249
      %v2468 = vpop.f32.mrb[0].mxu0
      %v2469 = vadd.f32 0.0, %v2468
      %v2470 = vpop.f32.mrb[0].mxu0
      %2471 = vmatprep.mubr.f32.mxu0 0.0
      %2472 = vmatmul.mubr.f32.gmra.mrb[0].mxu0 %v2252
      %v2473 = vpop.f32.mrb[0].mxu0
      %v2474 = vadd.f32 0.0, %v2473
      %v2475 = vpop.f32.mrb[0].mxu0
      %2476 = vmatprep.mubr.f32.mxu0 0.0
      %2477 = vmatmul.mubr.f32.gmra.mrb[0].mxu0 %v2255
      %v2478 = vpop.f32.mrb[0].mxu0
      %v2479 = vadd.f32 0.0, %v2478
      %v2480 = vpop.f32.mrb[0].mxu0
      %2481 = vdwg.mxu0
      %v2483 = vsel %vm2160, %v2092, 0
      %v2486 = vsel %vm2160, %v2093, 0
      %2488 = vmatprep.subr.mxu0 0.0
      %2489 = vmatpush1.msra.mxu0 %v2124
      %2490 = vmatprep.subr.mxu0 0.0
      %2491 = vmatpush1.msra.mxu0 %v2125
      %2492 = vmatprep.subr.mxu0 0.0
      %2493 = vmatpush1.msra.mxu0 %v2126
      %2494 = vmatprep.subr.mxu0 0.0
      %2495 = vmatpush1.msra.mxu0 0.0
      %2496 = vmatprep.subr.mxu0 0.0
      %2497 = vmatpush1.msra.mxu0 0.0
      %2498 = vmatprep.subr.mxu0 0.0
      %2499 = vmatpush1.msra.mxu0 0.0
      %2500 = vmatprep.subr.mxu0 0.0
      %2501 = vmatpush1.msra.mxu0 0.0
      %2502 = vmatprep.subr.mxu0 0.0
      %2503 = vmatpush1.msra.mxu0 0.0
      %2504 = vmatprep.subr.mxu0 0.0
      %2505 = vmatpush1.msra.mxu0 0.0
      %2506 = vmatprep.subr.mxu0 0.0
      %2507 = vmatpush1.msra.mxu0 0.0
      %2508 = vmatprep.subr.mxu0 0.0
      %2509 = vmatpush1.msra.mxu0 0.0
      %2510 = vmatprep.subr.mxu0 0.0
      %2511 = vmatpush1.msra.mxu0 0.0
      %2512 = vmatprep.subr.mxu0 0.0
      %2513 = vmatpush1.msra.mxu0 0.0
      %2514 = vmatprep.subr.mxu0 0.0
      %2515 = vmatpush1.msra.mxu0 0.0
      %2516 = vmatprep.subr.mxu0 0.0
      %2517 = vmatpush1.msra.mxu0 0.0
      %2518 = vmatprep.subr.mxu0 0.0
      %2519 = vmatpush1.msra.mxu0 0.0
      %2520 = vmatprep.subr.mxu0 0.0
      %2521 = vmatpush1.msra.mxu0 0.0
      %2522 = vmatprep.subr.mxu0 0.0
      %2523 = vmatpush1.msra.mxu0 0.0
      %2524 = vmatprep.subr.mxu0 0.0
      %2525 = vmatpush1.msra.mxu0 0.0
      %2526 = vmatprep.subr.mxu0 0.0
      %2527 = vmatpush1.msra.mxu0 0.0
      %2528 = vmatprep.subr.mxu0 0.0
      %2529 = vmatpush1.msra.mxu0 0.0
      %2530 = vmatprep.subr.mxu0 0.0
      %2531 = vmatpush1.msra.mxu0 0.0
      %2532 = vmatprep.subr.mxu0 0.0
      %2533 = vmatpush1.msra.mxu0 0.0
      %2534 = vmatprep.subr.mxu0 0.0
      %2535 = vmatpush1.msra.mxu0 0.0
      %2536 = vmatprep.subr.mxu0 0.0
      %2537 = vmatpush1.msra.mxu0 0.0
      %2538 = vmatprep.subr.mxu0 0.0
      %2539 = vmatpush1.msra.mxu0 0.0
      %2540 = vmatprep.subr.mxu0 0.0
      %2541 = vmatpush1.msra.mxu0 0.0
      %2542 = vmatprep.subr.mxu0 0.0
      %2543 = vmatpush1.msra.mxu0 0.0
      %2544 = vmatprep.subr.mxu0 0.0
      %2545 = vmatpush1.msra.mxu0 0.0
      %2546 = vmatprep.subr.mxu0 0.0
      %2547 = vmatpush1.msra.mxu0 0.0
      %2548 = vmatprep.subr.mxu0 0.0
      %2549 = vmatpush1.msra.mxu0 0.0
      %2550 = vmatprep.subr.mxu0 0.0
      %2551 = vmatpush1.msra.mxu0 0.0
      %2552 = vmatprep.mubr.f32.mxu0 0.0
      %2553 = vmatmul.mubr.f32.gmra.mrb[0].mxu0 %v2483
      %v2554 = vpop.f32.mrb[0].mxu0
      %v2555 = vadd.f32 %v2324, %v2554
      %v2556 = vpop.f32.mrb[0].mxu0
      %2557 = vmatprep.mubr.f32.mxu0 0.0
      %2558 = vmatmul.mubr.f32.gmra.mrb[0].mxu0 %v2486
      %v2559 = vpop.f32.mrb[0].mxu0
      %v2560 = vadd.f32 %v2329, %v2559
      %v2561 = vpop.f32.mrb[0].mxu0
      %2562 = vmatprep.mubr.f32.mxu0 0.0
      %2563 = vmatmul.mubr.f32.gmra.mrb[0].mxu0 %v2162
      %v2564 = vpop.f32.mrb[0].mxu0
      %v2565 = vadd.f32 %v2334, %v2564
      %v2566 = vpop.f32.mrb[0].mxu0
      %2567 = vmatprep.mubr.f32.mxu0 0.0
      %2568 = vmatmul.mubr.f32.gmra.mrb[0].mxu0 %v2165
      %v2569 = vpop.f32.mrb[0].mxu0
      %v2570 = vadd.f32 %v2339, %v2569
      %v2571 = vpop.f32.mrb[0].mxu0
      %2572 = vmatprep.mubr.f32.mxu0 0.0
      %2573 = vmatmul.mubr.f32.gmra.mrb[0].mxu0 %v2168
      %v2574 = vpop.f32.mrb[0].mxu0
      %v2575 = vadd.f32 %v2344, %v2574
      %v2576 = vpop.f32.mrb[0].mxu0
      %2577 = vmatprep.mubr.f32.mxu0 0.0
      %2578 = vmatmul.mubr.f32.gmra.mrb[0].mxu0 %v2171
      %v2579 = vpop.f32.mrb[0].mxu0
      %v2580 = vadd.f32 %v2349, %v2579
      %v2581 = vpop.f32.mrb[0].mxu0
      %2582 = vmatprep.mubr.f32.mxu0 0.0
      %2583 = vmatmul.mubr.f32.gmra.mrb[0].mxu0 %v2174
      %v2584 = vpop.f32.mrb[0].mxu0
      %v2585 = vadd.f32 %v2354, %v2584
      %v2586 = vpop.f32.mrb[0].mxu0
      %2587 = vmatprep.mubr.f32.mxu0 0.0
      %2588 = vmatmul.mubr.f32.gmra.mrb[0].mxu0 %v2177
      %v2589 = vpop.f32.mrb[0].mxu0
      %v2590 = vadd.f32 %v2359, %v2589
      %v2591 = vpop.f32.mrb[0].mxu0
      %2592 = vmatprep.mubr.f32.mxu0 0.0
      %2593 = vmatmul.mubr.f32.gmra.mrb[0].mxu0 %v2180
      %v2594 = vpop.f32.mrb[0].mxu0
      %v2595 = vadd.f32 %v2364, %v2594
      %v2596 = vpop.f32.mrb[0].mxu0
      %2597 = vmatprep.mubr.f32.mxu0 0.0
      %2598 = vmatmul.mubr.f32.gmra.mrb[0].mxu0 %v2183
      %v2599 = vpop.f32.mrb[0].mxu0
      %v2600 = vadd.f32 %v2369, %v2599
      %v2601 = vpop.f32.mrb[0].mxu0
      %2602 = vmatprep.mubr.f32.mxu0 0.0
      %2603 = vmatmul.mubr.f32.gmra.mrb[0].mxu0 %v2186
      %v2604 = vpop.f32.mrb[0].mxu0
      %v2605 = vadd.f32 %v2374, %v2604
      %v2606 = vpop.f32.mrb[0].mxu0
      %2607 = vmatprep.mubr.f32.mxu0 0.0
      %2608 = vmatmul.mubr.f32.gmra.mrb[0].mxu0 %v2189
      %v2609 = vpop.f32.mrb[0].mxu0
      %v2610 = vadd.f32 %v2379, %v2609
      %v2611 = vpop.f32.mrb[0].mxu0
      %2612 = vmatprep.mubr.f32.mxu0 0.0
      %2613 = vmatmul.mubr.f32.gmra.mrb[0].mxu0 %v2192
      %v2614 = vpop.f32.mrb[0].mxu0
      %v2615 = vadd.f32 %v2384, %v2614
      %v2616 = vpop.f32.mrb[0].mxu0
      %2617 = vmatprep.mubr.f32.mxu0 0.0
      %2618 = vmatmul.mubr.f32.gmra.mrb[0].mxu0 %v2195
      %v2619 = vpop.f32.mrb[0].mxu0
      %v2620 = vadd.f32 %v2389, %v2619
      %v2621 = vpop.f32.mrb[0].mxu0
      %2622 = vmatprep.mubr.f32.mxu0 0.0
      %2623 = vmatmul.mubr.f32.gmra.mrb[0].mxu0 %v2198
      %v2624 = vpop.f32.mrb[0].mxu0
      %v2625 = vadd.f32 %v2394, %v2624
      %v2626 = vpop.f32.mrb[0].mxu0
      %2627 = vmatprep.mubr.f32.mxu0 0.0
      %2628 = vmatmul.mubr.f32.gmra.mrb[0].mxu0 %v2201
      %v2629 = vpop.f32.mrb[0].mxu0
      %v2630 = vadd.f32 %v2399, %v2629
      %v2631 = vpop.f32.mrb[0].mxu0
      %2632 = vmatprep.mubr.f32.mxu0 0.0
      %2633 = vmatmul.mubr.f32.gmra.mrb[0].mxu0 %v2204
      %v2634 = vpop.f32.mrb[0].mxu0
      %v2635 = vadd.f32 %v2404, %v2634
      %v2636 = vpop.f32.mrb[0].mxu0
      %2637 = vmatprep.mubr.f32.mxu0 0.0
      %2638 = vmatmul.mubr.f32.gmra.mrb[0].mxu0 %v2207
      %v2639 = vpop.f32.mrb[0].mxu0
      %v2640 = vadd.f32 %v2409, %v2639
      %v2641 = vpop.f32.mrb[0].mxu0
      %2642 = vmatprep.mubr.f32.mxu0 0.0
      %2643 = vmatmul.mubr.f32.gmra.mrb[0].mxu0 %v2210
      %v2644 = vpop.f32.mrb[0].mxu0
      %v2645 = vadd.f32 %v2414, %v2644
      %v2646 = vpop.f32.mrb[0].mxu0
      %2647 = vmatprep.mubr.f32.mxu0 0.0
      %2648 = vmatmul.mubr.f32.gmra.mrb[0].mxu0 %v2213
      %v2649 = vpop.f32.mrb[0].mxu0
      %v2650 = vadd.f32 %v2419, %v2649
      %v2651 = vpop.f32.mrb[0].mxu0
      %2652 = vmatprep.mubr.f32.mxu0 0.0
      %2653 = vmatmul.mubr.f32.gmra.mrb[0].mxu0 %v2216
      %v2654 = vpop.f32.mrb[0].mxu0
      %v2655 = vadd.f32 %v2424, %v2654
      %v2656 = vpop.f32.mrb[0].mxu0
      %2657 = vmatprep.mubr.f32.mxu0 0.0
      %2658 = vmatmul.mubr.f32.gmra.mrb[0].mxu0 %v2219
      %v2659 = vpop.f32.mrb[0].mxu0
      %v2660 = vadd.f32 %v2429, %v2659
      %v2661 = vpop.f32.mrb[0].mxu0
      %2662 = vmatprep.mubr.f32.mxu0 0.0
      %2663 = vmatmul.mubr.f32.gmra.mrb[0].mxu0 %v2222
      %v2664 = vpop.f32.mrb[0].mxu0
      %v2665 = vadd.f32 %v2434, %v2664
      %v2666 = vpop.f32.mrb[0].mxu0
      %2667 = vmatprep.mubr.f32.mxu0 0.0
      %2668 = vmatmul.mubr.f32.gmra.mrb[0].mxu0 %v2225
      %v2669 = vpop.f32.mrb[0].mxu0
      %v2670 = vadd.f32 %v2439, %v2669
      %v2671 = vpop.f32.mrb[0].mxu0
      %2672 = vmatprep.mubr.f32.mxu0 0.0
      %2673 = vmatmul.mubr.f32.gmra.mrb[0].mxu0 %v2228
      %v2674 = vpop.f32.mrb[0].mxu0
      %v2675 = vadd.f32 %v2444, %v2674
      %v2676 = vpop.f32.mrb[0].mxu0
      %2677 = vmatprep.mubr.f32.mxu0 0.0
      %2678 = vmatmul.mubr.f32.gmra.mrb[0].mxu0 %v2231
      %v2679 = vpop.f32.mrb[0].mxu0
      %v2680 = vadd.f32 %v2449, %v2679
      %v2681 = vpop.f32.mrb[0].mxu0
      %2682 = vmatprep.mubr.f32.mxu0 0.0
      %2683 = vmatmul.mubr.f32.gmra.mrb[0].mxu0 %v2234
      %v2684 = vpop.f32.mrb[0].mxu0
      %v2685 = vadd.f32 %v2454, %v2684
      %v2686 = vpop.f32.mrb[0].mxu0
      %2687 = vmatprep.mubr.f32.mxu0 0.0
      %2688 = vmatmul.mubr.f32.gmra.mrb[0].mxu0 %v2237
      %v2689 = vpop.f32.mrb[0].mxu0
      %v2690 = vadd.f32 %v2459, %v2689
      %v2691 = vpop.f32.mrb[0].mxu0
      %2692 = vmatprep.mubr.f32.mxu0 0.0
      %2693 = vmatmul.mubr.f32.gmra.mrb[0].mxu0 %v2240
      %v2694 = vpop.f32.mrb[0].mxu0
      %v2695 = vadd.f32 %v2464, %v2694
      %v2696 = vpop.f32.mrb[0].mxu0
      %2697 = vmatprep.mubr.f32.mxu0 0.0
      %2698 = vmatmul.mubr.f32.gmra.mrb[0].mxu0 %v2243
      %v2699 = vpop.f32.mrb[0].mxu0
      %v2700 = vadd.f32 %v2469, %v2699
      %v2701 = vpop.f32.mrb[0].mxu0
      %2702 = vmatprep.mubr.f32.mxu0 0.0
      %2703 = vmatmul.mubr.f32.gmra.mrb[0].mxu0 %v2246
      %v2704 = vpop.f32.mrb[0].mxu0
      %v2705 = vadd.f32 %v2474, %v2704
      %v2706 = vpop.f32.mrb[0].mxu0
      %2707 = vmatprep.mubr.f32.mxu0 0.0
      %2708 = vmatmul.mubr.f32.gmra.mrb[0].mxu0 %v2249
      %v2709 = vpop.f32.mrb[0].mxu0
      %v2710 = vadd.f32 %v2479, %v2709
      %v2711 = vpop.f32.mrb[0].mxu0
      %2712 = vdwg.mxu0
      %v2713 = vld [vmem:[%s3 + $0x30] sm:$0xff]
      %v2714 = vld [vmem:[%s3 + $0x38] sm:$0xff]
      %v2715 = vld [vmem:[%s3 + $0x40] sm:$0xff]
      %2716 = vmatprep.subr.mxu0 0.0
      %2717 = vmatpush1.msra.mxu0 %v2713
      %2718 = vmatprep.subr.mxu0 0.0
      %2719 = vmatpush1.msra.mxu0 %v2714
      %2720 = vmatprep.subr.mxu0 0.0
      %2721 = vmatpush1.msra.mxu0 %v2715
      %2722 = vmatprep.subr.mxu0 0.0
      %2723 = vmatpush1.msra.mxu0 0.0
      %2724 = vmatprep.subr.mxu0 0.0
      %2725 = vmatpush1.msra.mxu0 0.0
      %2726 = vmatprep.subr.mxu0 0.0
      %2727 = vmatpush1.msra.mxu0 0.0
      %2728 = vmatprep.subr.mxu0 0.0
      %2729 = vmatpush1.msra.mxu0 0.0
      %2730 = vmatprep.subr.mxu0 0.0
      %2731 = vmatpush1.msra.mxu0 0.0
      %2732 = vmatprep.subr.mxu0 0.0
      %2733 = vmatpush1.msra.mxu0 0.0
      %2734 = vmatprep.subr.mxu0 0.0
      %2735 = vmatpush1.msra.mxu0 0.0
      %2736 = vmatprep.subr.mxu0 0.0
      %2737 = vmatpush1.msra.mxu0 0.0
      %2738 = vmatprep.subr.mxu0 0.0
      %2739 = vmatpush1.msra.mxu0 0.0
      %2740 = vmatprep.subr.mxu0 0.0
      %2741 = vmatpush1.msra.mxu0 0.0
      %2742 = vmatprep.subr.mxu0 0.0
      %2743 = vmatpush1.msra.mxu0 0.0
      %2744 = vmatprep.subr.mxu0 0.0
      %2745 = vmatpush1.msra.mxu0 0.0
      %2746 = vmatprep.subr.mxu0 0.0
      %2747 = vmatpush1.msra.mxu0 0.0
      %2748 = vmatprep.subr.mxu0 0.0
      %2749 = vmatpush1.msra.mxu0 0.0
      %2750 = vmatprep.subr.mxu0 0.0
      %2751 = vmatpush1.msra.mxu0 0.0
      %2752 = vmatprep.subr.mxu0 0.0
      %2753 = vmatpush1.msra.mxu0 0.0
      %2754 = vmatprep.subr.mxu0 0.0
      %2755 = vmatpush1.msra.mxu0 0.0
      %2756 = vmatprep.subr.mxu0 0.0
      %2757 = vmatpush1.msra.mxu0 0.0
      %2758 = vmatprep.subr.mxu0 0.0
      %2759 = vmatpush1.msra.mxu0 0.0
      %2760 = vmatprep.subr.mxu0 0.0
      %2761 = vmatpush1.msra.mxu0 0.0
      %2762 = vmatprep.subr.mxu0 0.0
      %2763 = vmatpush1.msra.mxu0 0.0
      %2764 = vmatprep.subr.mxu0 0.0
      %2765 = vmatpush1.msra.mxu0 0.0
      %2766 = vmatprep.subr.mxu0 0.0
      %2767 = vmatpush1.msra.mxu0 0.0
      %2768 = vmatprep.subr.mxu0 0.0
      %2769 = vmatpush1.msra.mxu0 0.0
      %2770 = vmatprep.subr.mxu0 0.0
      %2771 = vmatpush1.msra.mxu0 0.0
      %2772 = vmatprep.subr.mxu0 0.0
      %2773 = vmatpush1.msra.mxu0 0.0
      %2774 = vmatprep.subr.mxu0 0.0
      %2775 = vmatpush1.msra.mxu0 0.0
      %2776 = vmatprep.subr.mxu0 0.0
      %2777 = vmatpush1.msra.mxu0 0.0
      %2778 = vmatprep.subr.mxu0 0.0
      %2779 = vmatpush1.msra.mxu0 0.0
      %2780 = vmatprep.mubr.f32.mxu0 0.0
      %2781 = vmatmul.mubr.f32.gmra.mrb[0].mxu0 %v2168
      %v2782 = vpop.f32.mrb[0].mxu0
      %v2783 = vadd.f32 0.0, %v2782
      %v2784 = vpop.f32.mrb[0].mxu0
      %2785 = vmatprep.mubr.f32.mxu0 0.0
      %2786 = vmatmul.mubr.f32.gmra.mrb[0].mxu0 %v2171
      %v2787 = vpop.f32.mrb[0].mxu0
      %v2788 = vadd.f32 0.0, %v2787
      %v2789 = vpop.f32.mrb[0].mxu0
      %2790 = vmatprep.mubr.f32.mxu0 0.0
      %2791 = vmatmul.mubr.f32.gmra.mrb[0].mxu0 %v2174
      %v2792 = vpop.f32.mrb[0].mxu0
      %v2793 = vadd.f32 0.0, %v2792
      %v2794 = vpop.f32.mrb[0].mxu0
      %2795 = vmatprep.mubr.f32.mxu0 0.0
      %2796 = vmatmul.mubr.f32.gmra.mrb[0].mxu0 %v2177
      %v2797 = vpop.f32.mrb[0].mxu0
      %v2798 = vadd.f32 0.0, %v2797
      %v2799 = vpop.f32.mrb[0].mxu0
      %2800 = vmatprep.mubr.f32.mxu0 0.0
      %2801 = vmatmul.mubr.f32.gmra.mrb[0].mxu0 %v2180
      %v2802 = vpop.f32.mrb[0].mxu0
      %v2803 = vadd.f32 0.0, %v2802
      %v2804 = vpop.f32.mrb[0].mxu0
      %2805 = vmatprep.mubr.f32.mxu0 0.0
      %2806 = vmatmul.mubr.f32.gmra.mrb[0].mxu0 %v2183
      %v2807 = vpop.f32.mrb[0].mxu0
      %v2808 = vadd.f32 0.0, %v2807
      %v2809 = vpop.f32.mrb[0].mxu0
      %2810 = vmatprep.mubr.f32.mxu0 0.0
      %2811 = vmatmul.mubr.f32.gmra.mrb[0].mxu0 %v2186
      %v2812 = vpop.f32.mrb[0].mxu0
      %v2813 = vadd.f32 0.0, %v2812
      %v2814 = vpop.f32.mrb[0].mxu0
      %2815 = vmatprep.mubr.f32.mxu0 0.0
      %2816 = vmatmul.mubr.f32.gmra.mrb[0].mxu0 %v2189
      %v2817 = vpop.f32.mrb[0].mxu0
      %v2818 = vadd.f32 0.0, %v2817
      %v2819 = vpop.f32.mrb[0].mxu0
      %2820 = vmatprep.mubr.f32.mxu0 0.0
      %2821 = vmatmul.mubr.f32.gmra.mrb[0].mxu0 %v2192
      %v2822 = vpop.f32.mrb[0].mxu0
      %v2823 = vadd.f32 0.0, %v2822
      %v2824 = vpop.f32.mrb[0].mxu0
      %2825 = vmatprep.mubr.f32.mxu0 0.0
      %2826 = vmatmul.mubr.f32.gmra.mrb[0].mxu0 %v2195
      %v2827 = vpop.f32.mrb[0].mxu0
      %v2828 = vadd.f32 0.0, %v2827
      %v2829 = vpop.f32.mrb[0].mxu0
      %2830 = vmatprep.mubr.f32.mxu0 0.0
      %2831 = vmatmul.mubr.f32.gmra.mrb[0].mxu0 %v2198
      %v2832 = vpop.f32.mrb[0].mxu0
      %v2833 = vadd.f32 0.0, %v2832
      %v2834 = vpop.f32.mrb[0].mxu0
      %2835 = vmatprep.mubr.f32.mxu0 0.0
      %2836 = vmatmul.mubr.f32.gmra.mrb[0].mxu0 %v2201
      %v2837 = vpop.f32.mrb[0].mxu0
      %v2838 = vadd.f32 0.0, %v2837
      %v2839 = vpop.f32.mrb[0].mxu0
      %2840 = vmatprep.mubr.f32.mxu0 0.0
      %2841 = vmatmul.mubr.f32.gmra.mrb[0].mxu0 %v2204
      %v2842 = vpop.f32.mrb[0].mxu0
      %v2843 = vadd.f32 0.0, %v2842
      %v2844 = vpop.f32.mrb[0].mxu0
      %2845 = vmatprep.mubr.f32.mxu0 0.0
      %2846 = vmatmul.mubr.f32.gmra.mrb[0].mxu0 %v2207
      %v2847 = vpop.f32.mrb[0].mxu0
      %v2848 = vadd.f32 0.0, %v2847
      %v2849 = vpop.f32.mrb[0].mxu0
      %2850 = vmatprep.mubr.f32.mxu0 0.0
      %2851 = vmatmul.mubr.f32.gmra.mrb[0].mxu0 %v2210
      %v2852 = vpop.f32.mrb[0].mxu0
      %v2853 = vadd.f32 0.0, %v2852
      %v2854 = vpop.f32.mrb[0].mxu0
      %2855 = vmatprep.mubr.f32.mxu0 0.0
      %2856 = vmatmul.mubr.f32.gmra.mrb[0].mxu0 %v2213
      %v2857 = vpop.f32.mrb[0].mxu0
      %v2858 = vadd.f32 0.0, %v2857
      %v2859 = vpop.f32.mrb[0].mxu0
      %2860 = vmatprep.mubr.f32.mxu0 0.0
      %2861 = vmatmul.mubr.f32.gmra.mrb[0].mxu0 %v2216
      %v2862 = vpop.f32.mrb[0].mxu0
      %v2863 = vadd.f32 0.0, %v2862
      %v2864 = vpop.f32.mrb[0].mxu0
      %2865 = vmatprep.mubr.f32.mxu0 0.0
      %2866 = vmatmul.mubr.f32.gmra.mrb[0].mxu0 %v2219
      %v2867 = vpop.f32.mrb[0].mxu0
      %v2868 = vadd.f32 0.0, %v2867
      %v2869 = vpop.f32.mrb[0].mxu0
      %2870 = vmatprep.mubr.f32.mxu0 0.0
      %2871 = vmatmul.mubr.f32.gmra.mrb[0].mxu0 %v2222
      %v2872 = vpop.f32.mrb[0].mxu0
      %v2873 = vadd.f32 0.0, %v2872
      %v2874 = vpop.f32.mrb[0].mxu0
      %2875 = vmatprep.mubr.f32.mxu0 0.0
      %2876 = vmatmul.mubr.f32.gmra.mrb[0].mxu0 %v2225
      %v2877 = vpop.f32.mrb[0].mxu0
      %v2878 = vadd.f32 0.0, %v2877
      %v2879 = vpop.f32.mrb[0].mxu0
      %2880 = vmatprep.mubr.f32.mxu0 0.0
      %2881 = vmatmul.mubr.f32.gmra.mrb[0].mxu0 %v2228
      %v2882 = vpop.f32.mrb[0].mxu0
      %v2883 = vadd.f32 0.0, %v2882
      %v2884 = vpop.f32.mrb[0].mxu0
      %2885 = vmatprep.mubr.f32.mxu0 0.0
      %2886 = vmatmul.mubr.f32.gmra.mrb[0].mxu0 %v2231
      %v2887 = vpop.f32.mrb[0].mxu0
      %v2888 = vadd.f32 0.0, %v2887
      %v2889 = vpop.f32.mrb[0].mxu0
      %2890 = vmatprep.mubr.f32.mxu0 0.0
      %2891 = vmatmul.mubr.f32.gmra.mrb[0].mxu0 %v2234
      %v2892 = vpop.f32.mrb[0].mxu0
      %v2893 = vadd.f32 0.0, %v2892
      %v2894 = vpop.f32.mrb[0].mxu0
      %2895 = vmatprep.mubr.f32.mxu0 0.0
      %2896 = vmatmul.mubr.f32.gmra.mrb[0].mxu0 %v2237
      %v2897 = vpop.f32.mrb[0].mxu0
      %v2898 = vadd.f32 0.0, %v2897
      %v2899 = vpop.f32.mrb[0].mxu0
      %2900 = vmatprep.mubr.f32.mxu0 0.0
      %2901 = vmatmul.mubr.f32.gmra.mrb[0].mxu0 %v2240
      %v2902 = vpop.f32.mrb[0].mxu0
      %v2903 = vadd.f32 0.0, %v2902
      %v2904 = vpop.f32.mrb[0].mxu0
      %2905 = vmatprep.mubr.f32.mxu0 0.0
      %2906 = vmatmul.mubr.f32.gmra.mrb[0].mxu0 %v2243
      %v2907 = vpop.f32.mrb[0].mxu0
      %v2908 = vadd.f32 0.0, %v2907
      %v2909 = vpop.f32.mrb[0].mxu0
      %2910 = vmatprep.mubr.f32.mxu0 0.0
      %2911 = vmatmul.mubr.f32.gmra.mrb[0].mxu0 %v2246
      %v2912 = vpop.f32.mrb[0].mxu0
      %v2913 = vadd.f32 0.0, %v2912
      %v2914 = vpop.f32.mrb[0].mxu0
      %2915 = vmatprep.mubr.f32.mxu0 0.0
      %2916 = vmatmul.mubr.f32.gmra.mrb[0].mxu0 %v2249
      %v2917 = vpop.f32.mrb[0].mxu0
      %v2918 = vadd.f32 0.0, %v2917
      %v2919 = vpop.f32.mrb[0].mxu0
      %2920 = vmatprep.mubr.f32.mxu0 0.0
      %2921 = vmatmul.mubr.f32.gmra.mrb[0].mxu0 %v2252
      %v2922 = vpop.f32.mrb[0].mxu0
      %v2923 = vadd.f32 0.0, %v2922
      %v2924 = vpop.f32.mrb[0].mxu0
      %2925 = vmatprep.mubr.f32.mxu0 0.0
      %2926 = vmatmul.mubr.f32.gmra.mrb[0].mxu0 %v2255
      %v2927 = vpop.f32.mrb[0].mxu0
      %v2928 = vadd.f32 0.0, %v2927
      %v2929 = vpop.f32.mrb[0].mxu0
      %2930 = vmatprep.mubr.f32.mxu0 0.0
      %2931 = vmatmul.mubr.f32.gmra.mrb[0].mxu0 %v2483
      %v2932 = vpop.f32.mrb[0].mxu0
      %v2933 = vadd.f32 0.0, %v2932
      %v2934 = vpop.f32.mrb[0].mxu0
      %2935 = vmatprep.mubr.f32.mxu0 0.0
      %2936 = vmatmul.mubr.f32.gmra.mrb[0].mxu0 %v2486
      %v2937 = vpop.f32.mrb[0].mxu0
      %v2938 = vadd.f32 0.0, %v2937
      %v2939 = vpop.f32.mrb[0].mxu0
      %2940 = vdwg.mxu0
      %v2941 = vadd.f32 %v2555, %v2783
      %v2942 = vadd.f32 %v2560, %v2788
      %v2943 = vadd.f32 %v2565, %v2793
      %v2944 = vadd.f32 %v2570, %v2798
      %v2945 = vadd.f32 %v2575, %v2803
      %v2946 = vadd.f32 %v2580, %v2808
      %v2947 = vadd.f32 %v2585, %v2813
      %v2948 = vadd.f32 %v2590, %v2818
      %v2949 = vadd.f32 %v2595, %v2823
      %v2950 = vadd.f32 %v2600, %v2828
      %v2951 = vadd.f32 %v2605, %v2833
      %v2952 = vadd.f32 %v2610, %v2838
      %v2953 = vadd.f32 %v2615, %v2843
      %v2954 = vadd.f32 %v2620, %v2848
      %v2955 = vadd.f32 %v2625, %v2853
      %v2956 = vadd.f32 %v2630, %v2858
      %v2957 = vadd.f32 %v2635, %v2863
      %v2958 = vadd.f32 %v2640, %v2868
      %v2959 = vadd.f32 %v2645, %v2873
      %v2960 = vadd.f32 %v2650, %v2878
      %v2961 = vadd.f32 %v2655, %v2883
      %v2962 = vadd.f32 %v2660, %v2888
      %v2963 = vadd.f32 %v2665, %v2893
      %v2964 = vadd.f32 %v2670, %v2898
      %v2965 = vadd.f32 %v2675, %v2903
      %v2966 = vadd.f32 %v2680, %v2908
      %v2967 = vadd.f32 %v2685, %v2913
      %v2968 = vadd.f32 %v2690, %v2918
      %v2969 = vadd.f32 %v2695, %v2923
      %v2970 = vadd.f32 %v2700, %v2928
      %v2971 = vadd.f32 %v2705, %v2933
      %v2972 = vadd.f32 %v2710, %v2938
      %v2973 = vld [vmem:[%s4] sm:$0x1]
      %v2975 = vlaneseq
      %v2976 = vshrl.u32 %v2975, 7
      %v2977 = vsub.s32 0, %v2976
      %v2978 = vrot.slane %v2973, %v2977
      %v2980 = vadd.f32 %v2941, %v2978
      %v2981 = vadd.f32 %v2942, %v2978
      %v2982 = vadd.f32 %v2943, %v2978
      %v2983 = vadd.f32 %v2944, %v2978
      %v2984 = vadd.f32 %v2945, %v2978
      %v2985 = vadd.f32 %v2946, %v2978
      %v2986 = vadd.f32 %v2947, %v2978
      %v2987 = vadd.f32 %v2948, %v2978
      %v2988 = vadd.f32 %v2949, %v2978
      %v2989 = vadd.f32 %v2950, %v2978
      %v2990 = vadd.f32 %v2951, %v2978
      %v2991 = vadd.f32 %v2952, %v2978
      %v2992 = vadd.f32 %v2953, %v2978
      %v2993 = vadd.f32 %v2954, %v2978
      %v2994 = vadd.f32 %v2955, %v2978
      %v2995 = vadd.f32 %v2956, %v2978
      %v2996 = vadd.f32 %v2957, %v2978
      %v2997 = vadd.f32 %v2958, %v2978
      %v2998 = vadd.f32 %v2959, %v2978
      %v2999 = vadd.f32 %v2960, %v2978
      %v3000 = vadd.f32 %v2961, %v2978
      %v3001 = vadd.f32 %v2962, %v2978
      %v3002 = vadd.f32 %v2963, %v2978
      %v3003 = vadd.f32 %v2964, %v2978
      %v3004 = vadd.f32 %v2965, %v2978
      %v3005 = vadd.f32 %v2966, %v2978
      %v3006 = vadd.f32 %v2967, %v2978
      %v3007 = vadd.f32 %v2968, %v2978
      %v3008 = vadd.f32 %v2969, %v2978
      %v3009 = vadd.f32 %v2970, %v2978
      %v3010 = vadd.f32 %v2971, %v2978
      %v3011 = vadd.f32 %v2972, %v2978
      %3044 = vrot.lane.b32.xlu0 %v1596, 120
      %v3045 = vpop.permute.xlu0 %3044
      %3046 = vrot.lane.b32.xlu0 %v1597, 120
      %v3047 = vpop.permute.xlu0 %3046
      %3048 = vrot.lane.b32.xlu0 %v1598, 120
      %v3049 = vpop.permute.xlu0 %3048
      %3050 = vrot.lane.b32.xlu0 %v1599, 120
      %v3051 = vpop.permute.xlu0 %3050
      %3052 = vrot.lane.b32.xlu0 %v1600, 120
      %v3053 = vpop.permute.xlu0 %3052
      %3054 = vrot.lane.b32.xlu0 %v1601, 120
      %v3055 = vpop.permute.xlu0 %3054
      %3056 = vrot.lane.b32.xlu0 %v1602, 120
      %v3057 = vpop.permute.xlu0 %3056
      %3058 = vrot.lane.b32.xlu0 %v1603, 120
      %v3059 = vpop.permute.xlu0 %3058
      %3060 = vrot.lane.b32.xlu0 %v1604, 120
      %v3061 = vpop.permute.xlu0 %3060
      %3062 = vrot.lane.b32.xlu0 %v1605, 120
      %v3063 = vpop.permute.xlu0 %3062
      %3064 = vrot.lane.b32.xlu0 %v1606, 120
      %v3065 = vpop.permute.xlu0 %3064
      %3066 = vrot.lane.b32.xlu0 %v1607, 120
      %v3067 = vpop.permute.xlu0 %3066
      %3068 = vrot.lane.b32.xlu0 %v1608, 120
      %v3069 = vpop.permute.xlu0 %3068
      %3070 = vrot.lane.b32.xlu0 %v1609, 120
      %v3071 = vpop.permute.xlu0 %3070
      %3072 = vrot.lane.b32.xlu0 %v1610, 120
      %v3073 = vpop.permute.xlu0 %3072
      %3074 = vrot.lane.b32.xlu0 %v1611, 120
      %v3075 = vpop.permute.xlu0 %3074
      %3076 = vrot.lane.b32.xlu0 %v1612, 120
      %v3077 = vpop.permute.xlu0 %3076
      %3078 = vrot.lane.b32.xlu0 %v1613, 120
      %v3079 = vpop.permute.xlu0 %3078
      %3080 = vrot.lane.b32.xlu0 %v1614, 120
      %v3081 = vpop.permute.xlu0 %3080
      %3082 = vrot.lane.b32.xlu0 %v1615, 120
      %v3083 = vpop.permute.xlu0 %3082
      %3084 = vrot.lane.b32.xlu0 %v1616, 120
      %v3085 = vpop.permute.xlu0 %3084
      %3086 = vrot.lane.b32.xlu0 %v1617, 120
      %v3087 = vpop.permute.xlu0 %3086
      %3088 = vrot.lane.b32.xlu0 %v1618, 120
      %v3089 = vpop.permute.xlu0 %3088
      %3090 = vrot.lane.b32.xlu0 %v1619, 120
      %v3091 = vpop.permute.xlu0 %3090
      %3092 = vrot.lane.b32.xlu0 %v1620, 120
      %v3093 = vpop.permute.xlu0 %3092
      %3094 = vrot.lane.b32.xlu0 %v1621, 120
      %v3095 = vpop.permute.xlu0 %3094
      %3096 = vrot.lane.b32.xlu0 %v1622, 120
      %v3097 = vpop.permute.xlu0 %3096
      %3098 = vrot.lane.b32.xlu0 %v1623, 120
      %v3099 = vpop.permute.xlu0 %3098
      %3100 = vrot.lane.b32.xlu0 %v1624, 120
      %v3101 = vpop.permute.xlu0 %3100
      %3102 = vrot.lane.b32.xlu0 %v1625, 120
      %v3103 = vpop.permute.xlu0 %3102
      %3104 = vrot.lane.b32.xlu0 %v1626, 120
      %v3105 = vpop.permute.xlu0 %3104
      %3106 = vrot.lane.b32.xlu0 %v1627, 120
      %v3107 = vpop.permute.xlu0 %3106
      %v3140 = vadd.f32 %v2980, %v3045
      %v3141 = vadd.f32 %v2981, %v3047
      %v3142 = vadd.f32 %v2982, %v3049
      %v3143 = vadd.f32 %v2983, %v3051
      %v3144 = vadd.f32 %v2984, %v3053
      %v3145 = vadd.f32 %v2985, %v3055
      %v3146 = vadd.f32 %v2986, %v3057
      %v3147 = vadd.f32 %v2987, %v3059
      %v3148 = vadd.f32 %v2988, %v3061
      %v3149 = vadd.f32 %v2989, %v3063
      %v3150 = vadd.f32 %v2990, %v3065
      %v3151 = vadd.f32 %v2991, %v3067
      %v3152 = vadd.f32 %v2992, %v3069
      %v3153 = vadd.f32 %v2993, %v3071
      %v3154 = vadd.f32 %v2994, %v3073
      %v3155 = vadd.f32 %v2995, %v3075
      %v3156 = vadd.f32 %v2996, %v3077
      %v3157 = vadd.f32 %v2997, %v3079
      %v3158 = vadd.f32 %v2998, %v3081
      %v3159 = vadd.f32 %v2999, %v3083
      %v3160 = vadd.f32 %v3000, %v3085
      %v3161 = vadd.f32 %v3001, %v3087
      %v3162 = vadd.f32 %v3002, %v3089
      %v3163 = vadd.f32 %v3003, %v3091
      %v3164 = vadd.f32 %v3004, %v3093
      %v3165 = vadd.f32 %v3005, %v3095
      %v3166 = vadd.f32 %v3006, %v3097
      %v3167 = vadd.f32 %v3007, %v3099
      %v3168 = vadd.f32 %v3008, %v3101
      %v3169 = vadd.f32 %v3009, %v3103
      %v3170 = vadd.f32 %v3010, %v3105
      %v3171 = vadd.f32 %v3011, %v3107
      %v3172 = vadd.f32 %v3140, %v3142
      %v3173 = vadd.f32 %v3141, %v3143
      %v3174 = vadd.f32 %v3144, %v3146
      %v3175 = vadd.f32 %v3145, %v3147
      %v3176 = vadd.f32 %v3148, %v3150
      %v3177 = vadd.f32 %v3149, %v3151
      %v3178 = vadd.f32 %v3152, %v3154
      %v3179 = vadd.f32 %v3153, %v3155
      %v3180 = vadd.f32 %v3156, %v3158
      %v3181 = vadd.f32 %v3157, %v3159
      %v3182 = vadd.f32 %v3160, %v3162
      %v3183 = vadd.f32 %v3161, %v3163
      %v3184 = vadd.f32 %v3164, %v3166
      %v3185 = vadd.f32 %v3165, %v3167
      %v3186 = vadd.f32 %v3168, %v3170
      %v3187 = vadd.f32 %v3169, %v3171
      %v3196 = vrot.slane %v3172, 1
      %v3197 = vrot.slane %v3174, 1
      %v3198 = vrot.slane %v3176, 1
      %v3199 = vrot.slane %v3178, 1
      %v3200 = vrot.slane %v3180, 1
      %v3201 = vrot.slane %v3182, 1
      %v3202 = vrot.slane %v3184, 1
      %v3203 = vrot.slane %v3186, 1
      %v3212 = vadd.f32 %v3172, %v3196
      %v3213 = vadd.f32 %v3174, %v3197
      %v3214 = vadd.f32 %v3176, %v3198
      %v3215 = vadd.f32 %v3178, %v3199
      %v3216 = vadd.f32 %v3180, %v3200
      %v3217 = vadd.f32 %v3182, %v3201
      %v3218 = vadd.f32 %v3184, %v3202
      %v3219 = vadd.f32 %v3186, %v3203
      %v3228 = vrot.slane %v3173, 1
      %v3229 = vrot.slane %v3175, 1
      %v3230 = vrot.slane %v3177, 1
      %v3231 = vrot.slane %v3179, 1
      %v3232 = vrot.slane %v3181, 1
      %v3233 = vrot.slane %v3183, 1
      %v3234 = vrot.slane %v3185, 1
      %v3235 = vrot.slane %v3187, 1
      %v3244 = vadd.f32 %v3173, %v3228
      %v3245 = vadd.f32 %v3175, %v3229
      %v3246 = vadd.f32 %v3177, %v3230
      %v3247 = vadd.f32 %v3179, %v3231
      %v3248 = vadd.f32 %v3181, %v3232
      %v3249 = vadd.f32 %v3183, %v3233
      %v3250 = vadd.f32 %v3185, %v3234
      %v3251 = vadd.f32 %v3187, %v3235
      %v3260 = vrot.slane %v3213, 7
      %vm3261 = vcmask 1041409
      %v3262 = vsel %vm3261, %v3260, %v3212
      %v3263 = vrot.slane %v3214, 6
      %vm3264 = vcmask 1042434
      %v3265 = vsel %vm3264, %v3263, %v3262
      %v3266 = vrot.slane %v3215, 5
      %vm3267 = vcmask 1043459
      %v3268 = vsel %vm3267, %v3266, %v3265
      %v3269 = vrot.slane %v3216, 4
      %vm3270 = vcmask 1044484
      %v3271 = vsel %vm3270, %v3269, %v3268
      %v3272 = vrot.slane %v3217, 3
      %vm3273 = vcmask 1045509
      %v3274 = vsel %vm3273, %v3272, %v3271
      %v3275 = vrot.slane %v3218, 2
      %vm3276 = vcmask 1046534
      %v3277 = vsel %vm3276, %v3275, %v3274
      %v3278 = vrot.slane %v3219, 1
      %vm3279 = vcmask 1047559
      %v3280 = vsel %vm3279, %v3278, %v3277
      %v3282 = vrot.slane %v3212, 2
      %v3283 = vrot.slane %v3213, 1
      %v3284 = vsel %vm3261, %v3283, %v3282
      %v3285 = vsel %vm3264, %v3214, %v3284
      %v3286 = vrot.slane %v3215, 7
      %v3287 = vsel %vm3267, %v3286, %v3285
      %v3288 = vrot.slane %v3216, 6
      %v3289 = vsel %vm3270, %v3288, %v3287
      %v3290 = vrot.slane %v3217, 5
      %v3291 = vsel %vm3273, %v3290, %v3289
      %v3292 = vrot.slane %v3218, 4
      %v3293 = vsel %vm3276, %v3292, %v3291
      %v3294 = vrot.slane %v3219, 3
      %v3295 = vsel %vm3279, %v3294, %v3293
      %3296 = vrot.lane.b32.xlu0 %v3295, 8
      %v3297 = vpop.permute.xlu0 %3296
      %v3299 = vrot.slane %v3212, 4
      %v3300 = vrot.slane %v3213, 3
      %v3301 = vsel %vm3261, %v3300, %v3299
      %v3302 = vrot.slane %v3214, 2
      %v3303 = vsel %vm3264, %v3302, %v3301
      %v3304 = vrot.slane %v3215, 1
      %v3305 = vsel %vm3267, %v3304, %v3303
      %v3306 = vsel %vm3270, %v3216, %v3305
      %v3307 = vrot.slane %v3217, 7
      %v3308 = vsel %vm3273, %v3307, %v3306
      %v3309 = vrot.slane %v3218, 6
      %v3310 = vsel %vm3276, %v3309, %v3308
      %v3311 = vrot.slane %v3219, 5
      %v3312 = vsel %vm3279, %v3311, %v3310
      %3313 = vrot.lane.b32.xlu0 %v3312, 16
      %v3314 = vpop.permute.xlu0 %3313
      %v3316 = vrot.slane %v3212, 6
      %v3317 = vrot.slane %v3213, 5
      %v3318 = vsel %vm3261, %v3317, %v3316
      %v3319 = vrot.slane %v3214, 4
      %v3320 = vsel %vm3264, %v3319, %v3318
      %v3321 = vrot.slane %v3215, 3
      %v3322 = vsel %vm3267, %v3321, %v3320
      %v3323 = vrot.slane %v3216, 2
      %v3324 = vsel %vm3270, %v3323, %v3322
      %v3325 = vrot.slane %v3217, 1
      %v3326 = vsel %vm3273, %v3325, %v3324
      %v3327 = vsel %vm3276, %v3218, %v3326
      %v3328 = vrot.slane %v3219, 7
      %v3329 = vsel %vm3279, %v3328, %v3327
      %3330 = vrot.lane.b32.xlu0 %v3329, 24
      %v3331 = vpop.permute.xlu0 %3330
      %v3341 = vrot.slane %v3245, 7
      %v3342 = vsel %vm3261, %v3341, %v3244
      %v3343 = vrot.slane %v3246, 6
      %v3344 = vsel %vm3264, %v3343, %v3342
      %v3345 = vrot.slane %v3247, 5
      %v3346 = vsel %vm3267, %v3345, %v3344
      %v3347 = vrot.slane %v3248, 4
      %v3348 = vsel %vm3270, %v3347, %v3346
      %v3349 = vrot.slane %v3249, 3
      %v3350 = vsel %vm3273, %v3349, %v3348
      %v3351 = vrot.slane %v3250, 2
      %v3352 = vsel %vm3276, %v3351, %v3350
      %v3353 = vrot.slane %v3251, 1
      %v3354 = vsel %vm3279, %v3353, %v3352
      %3355 = vrot.lane.b32.xlu0 %v3354, 32
      %v3356 = vpop.permute.xlu0 %3355
      %v3358 = vrot.slane %v3244, 2
      %v3359 = vrot.slane %v3245, 1
      %v3360 = vsel %vm3261, %v3359, %v3358
      %v3361 = vsel %vm3264, %v3246, %v3360
      %v3362 = vrot.slane %v3247, 7
      %v3363 = vsel %vm3267, %v3362, %v3361
      %v3364 = vrot.slane %v3248, 6
      %v3365 = vsel %vm3270, %v3364, %v3363
      %v3366 = vrot.slane %v3249, 5
      %v3367 = vsel %vm3273, %v3366, %v3365
      %v3368 = vrot.slane %v3250, 4
      %v3369 = vsel %vm3276, %v3368, %v3367
      %v3370 = vrot.slane %v3251, 3
      %v3371 = vsel %vm3279, %v3370, %v3369
      %3372 = vrot.lane.b32.xlu0 %v3371, 40
      %v3373 = vpop.permute.xlu0 %3372
      %v3375 = vrot.slane %v3244, 4
      %v3376 = vrot.slane %v3245, 3
      %v3377 = vsel %vm3261, %v3376, %v3375
      %v3378 = vrot.slane %v3246, 2
      %v3379 = vsel %vm3264, %v3378, %v3377
      %v3380 = vrot.slane %v3247, 1
      %v3381 = vsel %vm3267, %v3380, %v3379
      %v3382 = vsel %vm3270, %v3248, %v3381
      %v3383 = vrot.slane %v3249, 7
      %v3384 = vsel %vm3273, %v3383, %v3382
      %v3385 = vrot.slane %v3250, 6
      %v3386 = vsel %vm3276, %v3385, %v3384
      %v3387 = vrot.slane %v3251, 5
      %v3388 = vsel %vm3279, %v3387, %v3386
      %3389 = vrot.lane.b32.xlu0 %v3388, 48
      %v3390 = vpop.permute.xlu0 %3389
      %v3392 = vrot.slane %v3244, 6
      %v3393 = vrot.slane %v3245, 5
      %v3394 = vsel %vm3261, %v3393, %v3392
      %v3395 = vrot.slane %v3246, 4
      %v3396 = vsel %vm3264, %v3395, %v3394
      %v3397 = vrot.slane %v3247, 3
      %v3398 = vsel %vm3267, %v3397, %v3396
      %v3399 = vrot.slane %v3248, 2
      %v3400 = vsel %vm3270, %v3399, %v3398
      %v3401 = vrot.slane %v3249, 1
      %v3402 = vsel %vm3273, %v3401, %v3400
      %v3403 = vsel %vm3276, %v3250, %v3402
      %v3404 = vrot.slane %v3251, 7
      %v3405 = vsel %vm3279, %v3404, %v3403
      %3406 = vrot.lane.b32.xlu0 %v3405, 56
      %v3407 = vpop.permute.xlu0 %3406
      %v3409 = vsel %vm700, %v3280, %v3297
      %v3410 = vsel %vm2091, %v3409, %v3314
      %v3411 = vsel %vm2160, %v3410, %v3331
      %vm3412 = vcmask 261120
      %v3413 = vsel %vm3412, %v3411, %v3356
      %vm3414 = vcmask 326656
      %v3415 = vsel %vm3414, %v3413, %v3373
      %vm3416 = vcmask 392192
      %v3417 = vsel %vm3416, %v3415, %v3390
      %vm3418 = vcmask 457728
      %v3419 = vsel %vm3418, %v3417, %v3407
      %v3420 = vmul.f32 %v3419, 0.25
      %vm3421 = vcmask 523264
      %3422 = vst.msk [vmem:[%s222] sm:$0xff] %vm3421, %v3420
      %p3423 = scmp.lt.s32.totalorder %s16, 1
      %s3424 = scalar_select %p3423, %s16, 1
      %s3425 = smul.addr %s3424, 8
      %s3426 = scalar_lea.vmem %s5, %s3425
      // Predicated region
      $region41: #{_lambda_.1} parent=39 // pred_check
        %p3427 = pneg %p144
      $region42: #{_lambda_.1} parent=39 // pred_check_branch
        %3429 = sbr.rel (%p3427) target = $region44
      $region43: #{_lambda_.1} parent=39 // pred_region
        _
      $region44: #{_lambda_.1} parent=39 // pred_fallthru
        _
    $region40: #{_lambda_.1} parent=5 // pred_fallthru
      _
    %p3430 = scmp.le.s32.totalorder 2, %s11
    // Predicated region
    $region45: #{_lambda_.1} parent=5 // pred_check
      %p3431 = pneg %p3430
    $region46: #{_lambda_.1} parent=5 // pred_check_branch
      %3433 = sbr.rel (%p3431) target = $region48
    $region47: #{_lambda_.1} parent=5 // pred_region
      %s3434 = ssub.s32 %s11, 2
      // Predicated region
      $region49: #{_lambda_.1} parent=47 // pred_check
        %p3435 = pneg %p150
      $region50: #{_lambda_.1} parent=47 // pred_check_branch
        %3437 = sbr.rel (%p3435) target = $region52
      $region51: #{_lambda_.1} parent=47 // pred_region
        %p3438 = scmp.lt.s32.totalorder %s17, 1
        %s3439 = scalar_select %p3438, %s17, 1
        %s3440 = smul.addr %s3439, 8
        %s3441 = scalar_lea.vmem %s5, %s3440
      $region52: #{_lambda_.1} parent=47 // pred_fallthru
        _
    $region48: #{_lambda_.1} parent=5 // pred_fallthru
      _
  $region6: #{_lambda_.1} parent=0 // loop_footer
    %s15 = sadd.s32 1, %s11
  $region7: #{_lambda_.1} parent=0 // loop_footer_branch
    %10 = sbr.rel target = $region3
  $region8: #{_lambda_.1} parent=0 // loop_exit
    _

</llo_original>
